<compile_context>
chip_gen: v7x
topology: tpu7x:2x2x1
jax: 0.10.0
libtpu: 0.0.40
codegen_flags: <defaults>
</compile_context>

<pallas_src>
import functools

import numpy as np
import jax
import jax.numpy as jnp
from jax.experimental import pallas as pl
from jax.experimental.pallas import tpu as pltpu

NUM_NODES = 9
NEG_SLOPE = 0.01   # LeakyReLU(0.01) in input_processor
LN_EPS = 1e-5
MASK_NEG = -1e30   # additive mask for cross-sample attention entries


# ----------------------------- shared math helpers ---------------------------

def _leaky_relu(x):
    return jnp.where(x > 0, x, NEG_SLOPE * x)


def _layer_act(layer_idx, x):
    # TODO(synk): exact Hyperbolic/Quaternion/Wavelet/ModularField vortex-layer
    # math lives in the external `vortexnn` package (not provided); each layer
    # is realized as adjacency message passing + linear + a per-type nonlinearity.
    if layer_idx == 0:
        return jnp.tanh(x)              # HyperbolicVortexLayer
    elif layer_idx == 1:
        return _leaky_relu(x)           # QuaternionVortexLayer
    elif layer_idx % 2 == 0:
        return x * jax.nn.sigmoid(x)    # WaveletVortexLayer
    else:
        return jnp.maximum(x, 0.0)      # ModularFieldVortexLayer


# --------------------------------- Pallas kernel ------------------------------

def vortex_gnn_kernel(num_layers, tb, hidden,
                      x_ref,                      # [TB, Din]
                      w_in_ref, b_in_ref,         # [Din, 9H], [1, 9H]
                      w_dr_ref, b_dr_ref,         # [H, H], [1, H]
                      adjb_ref,                   # [L, M, M]  (kron(A_l, I_TB))
                      mask_ref,                   # [M, M]     additive attn mask
                      w_v_ref, b_v_ref,           # [L, H, H], [L, H]
                      w_qkv_ref, b_qkv_ref,       # [L, H, 3H], [L, 3H]
                      gamma_ref, beta_ref,        # [L, H], [L, H]
                      w_out_ref, b_out_ref,       # [H, Dout], [1, Dout]
                      out_ref,                    # [TB, Dout]
                      node_scratch):              # VMEM [M, H] scratch
    H = hidden
    N = NUM_NODES
    inv_sqrt_h = 1.0 / float(H) ** 0.5

    # --- input_processor: ONE [TB, Din] x [Din, 9H] matmul + LeakyReLU ---
    proj = jnp.dot(x_ref[...], w_in_ref[...],
                   preferred_element_type=jnp.float32) + b_in_ref[...]
    proj = _leaky_relu(proj)                                            # [TB, 9H]

    # Scatter per-node lane chunks into the node-major flat layout [9*TB, H]
    # (row = node * TB + sample).  Sublane-aligned full-tile stores.
    for n in range(N):
        node_scratch[n * tb:(n + 1) * tb, :] = proj[:, n * H:(n + 1) * H]

    # --- DigitalRootUnit(9*H -> per-node H): shared linear + tanh (all rows) ---
    # TODO(synk): exact DigitalRootUnit math unavailable (external package).
    X = jnp.tanh(
        jnp.dot(node_scratch[...], w_dr_ref[...],
                preferred_element_type=jnp.float32) + b_dr_ref[...])    # [M, H]

    mask = mask_ref[...]                                                # [M, M]

    # --- num_layers x (vortex layer -> attention -> norm residual) ---
    for l in range(num_layers):
        # Adjacency message passing for the whole batch tile in one matmul:
        # adjb[l] = kron(A_l, I_TB) is block-diagonal over samples.
        msg = jnp.dot(adjb_ref[l], X, preferred_element_type=jnp.float32)   # [M, H]
        V = _layer_act(
            l,
            jnp.dot(msg, w_v_ref[l],
                    preferred_element_type=jnp.float32) + b_v_ref[l:l + 1, :])

        # VortexAttention over the 9 nodes of each sample.
        # Fused Q/K/Va projection: one [M, H] x [H, 3H] matmul.
        qkv = jnp.dot(V, w_qkv_ref[l],
                      preferred_element_type=jnp.float32) + b_qkv_ref[l:l + 1, :]
        Q = qkv[:, 0 * H:1 * H]
        K = qkv[:, 1 * H:2 * H]
        Va = qkv[:, 2 * H:3 * H]

        # Scores for all rows at once; the additive mask kills cross-sample
        # entries, so the per-row softmax equals per-sample 9-node softmax.
        scores = jax.lax.dot_general(
            Q, K, (((1,), (1,)), ((), ())),
            preferred_element_type=jnp.float32) * inv_sqrt_h            # [M, M]
        scores = scores + mask
        scores = scores - jnp.max(scores, axis=-1, keepdims=True)
        p = jnp.exp(scores)
        denom = jnp.sum(p, axis=-1, keepdims=True)
        attn = p * pl.reciprocal(denom, approx=True)
        att = jnp.dot(attn, Va, preferred_element_type=jnp.float32)     # [M, H]

        # DigitalRootNorm: per-node normalization over the hidden dim.
        mu = jnp.mean(att, axis=-1, keepdims=True)
        var = jnp.mean((att - mu) ** 2, axis=-1, keepdims=True)
        normed = (gamma_ref[l:l + 1, :] * (att - mu)
                  * jax.lax.rsqrt(var + LN_EPS) + beta_ref[l:l + 1, :])

        X = V + normed                                                  # residual

    # TODO(synk): HarmonicResonanceLayer only runs when time_context is given;
    # forward is reproduced for time_context=None (the default).

    # --- output: node 8 = last TB contiguous rows in node-major layout ---
    feat = X[(N - 1) * tb:N * tb, :]                                    # [TB, H]
    out_ref[...] = jnp.dot(feat, w_out_ref[...],
                           preferred_element_type=jnp.float32) + b_out_ref[...]


# --------------------------------- wrapper -----------------------------------

def advanced_vortex_gnn_forward(x, params, num_layers, tile_b=8):
    batch, input_dim = x.shape
    hidden = params["w_dr"].shape[0]
    output_dim = params["w_out"].shape[1]
    TB = tile_b
    M = NUM_NODES * TB

    # Pad batch to a multiple of the batch tile (padded samples are independent
    # thanks to the block-diagonal adjacency / attention mask, sliced off below).
    b_pad = ((batch + TB - 1) // TB) * TB
    if b_pad != batch:
        x = jnp.pad(x, ((0, b_pad - batch), (0, 0)))
    grid = (b_pad // TB,)

    # Fuse Q/K/Va projection weights -> one lane-dense [H, 3H] matmul per layer.
    w_qkv = jnp.concatenate([params["w_q"], params["w_k"], params["w_av"]],
                            axis=-1)                                   # [L, H, 3H]
    b_qkv = jnp.concatenate([params["b_q"], params["b_k"], params["b_av"]],
                            axis=-1)                                   # [L, 3H]

    # Block-diagonal adjacency for node-major flat layout: kron(A_l, I_TB).
    eye_tb = jnp.eye(TB, dtype=jnp.float32)
    adjb = jnp.stack([jnp.kron(params["adj"][l], eye_tb)
                      for l in range(num_layers)], axis=0)             # [L, M, M]

    # Additive attention mask: only same-sample rows may attend to each other.
    same = np.kron(np.ones((NUM_NODES, NUM_NODES), np.float32),
                   np.eye(TB, dtype=np.float32))
    mask = jnp.asarray(np.where(same > 0, 0.0, MASK_NEG).astype(np.float32))

    args = (x,
            params["w_in"], params["b_in"],
            params["w_dr"], params["b_dr"],
            adjb, mask,
            params["w_v"], params["b_v"],
            w_qkv, b_qkv,
            params["gamma"], params["beta"],
            params["w_out"], params["b_out"])

    def _const_spec(arr):
        nd = arr.ndim
        return pl.BlockSpec(arr.shape, lambda i, _nd=nd: (0,) * _nd)

    in_specs = ([pl.BlockSpec((TB, input_dim), lambda i: (i, 0))]
                + [_const_spec(a) for a in args[1:]])
    out_specs = pl.BlockSpec((TB, output_dim), lambda i: (i, 0))

    kernel = functools.partial(vortex_gnn_kernel, num_layers, TB, hidden)

    out = pl.pallas_call(
        kernel,
        out_shape=jax.ShapeDtypeStruct((b_pad, output_dim), jnp.float32),
        grid=grid,
        in_specs=in_specs,
        out_specs=out_specs,
        scratch_shapes=[pltpu.VMEM((M, hidden), jnp.float32)],
        compiler_params=pltpu.CompilerParams(
            dimension_semantics=("parallel",)),
    )(*args)
    return out[:batch]


# ------------------------- deterministic parameter init -----------------------

def _vortex_adjacency(num_layers):
    # Structural "vortex math" adjacency: digit doubling digital-root cycle
    # 1->2->4->8->7->5->1, 3<->6, 9->9, plus self-loops, row-normalized.
    A = np.zeros((NUM_NODES, NUM_NODES), np.float32)
    for d in range(1, 10):
        nxt = (2 * d) % 9
        nxt = 9 if nxt == 0 else nxt
        A[d - 1, nxt - 1] += 1.0
        A[d - 1, d - 1] += 1.0
    A = A / A.sum(axis=1, keepdims=True)
    return np.broadcast_to(A, (num_layers, NUM_NODES, NUM_NODES)).copy()


def init_params(key, input_dim, hidden, output_dim, num_layers):
    keys = jax.random.split(key, 14)

    def u(k, shape, fan_in):
        bound = 1.0 / np.sqrt(fan_in)
        return jax.random.uniform(k, shape, jnp.float32, -bound, bound)

    return dict(
        w_in=u(keys[0], (input_dim, NUM_NODES * hidden), input_dim),
        b_in=u(keys[1], (1, NUM_NODES * hidden), input_dim),
        w_dr=u(keys[2], (hidden, hidden), hidden),
        b_dr=u(keys[3], (1, hidden), hidden),
        w_v=u(keys[4], (num_layers, hidden, hidden), hidden),
        b_v=u(keys[5], (num_layers, hidden), hidden),
        w_q=u(keys[6], (num_layers, hidden, hidden), hidden),
        b_q=u(keys[7], (num_layers, hidden), hidden),
        w_k=u(keys[8], (num_layers, hidden, hidden), hidden),
        b_k=u(keys[9], (num_layers, hidden), hidden),
        w_av=u(keys[10], (num_layers, hidden, hidden), hidden),
        b_av=u(keys[11], (num_layers, hidden), hidden),
        gamma=jnp.ones((num_layers, hidden), jnp.float32),
        beta=jnp.zeros((num_layers, hidden), jnp.float32),
        w_out=u(keys[12], (hidden, output_dim), hidden),
        b_out=u(keys[13], (1, output_dim), hidden),
        adj=jnp.asarray(_vortex_adjacency(num_layers), jnp.float32),
    )


# ----------------------------- pure-JAX reference ------------------------------

def reference_forward(x, p, num_layers):
    hp = jax.lax.Precision.HIGHEST
    H = p["w_dr"].shape[0]
    B = x.shape[0]

    proj = _leaky_relu(jnp.dot(x, p["w_in"], precision=hp) + p["b_in"])   # [B, 9H]
    nodes = proj.reshape(B, NUM_NODES, H)
    X = jnp.tanh(jnp.einsum("bnh,hk->bnk", nodes, p["w_dr"], precision=hp)
                 + p["b_dr"])                                             # [B, 9, H]

    for l in range(num_layers):
        msg = jnp.einsum("ij,bjh->bih", p["adj"][l], X, precision=hp)
        V = _layer_act(l, jnp.einsum("bnh,hk->bnk", msg, p["w_v"][l],
                                     precision=hp) + p["b_v"][l])
        Q = jnp.einsum("bnh,hk->bnk", V, p["w_q"][l], precision=hp) + p["b_q"][l]
        K = jnp.einsum("bnh,hk->bnk", V, p["w_k"][l], precision=hp) + p["b_k"][l]
        Va = jnp.einsum("bnh,hk->bnk", V, p["w_av"][l], precision=hp) + p["b_av"][l]
        scores = jnp.einsum("bqh,bkh->bqk", Q, K, precision=hp) / np.sqrt(float(H))
        attn = jax.nn.softmax(scores, axis=-1)
        att = jnp.einsum("bqk,bkh->bqh", attn, Va, precision=hp)
        mu = att.mean(-1, keepdims=True)
        var = ((att - mu) ** 2).mean(-1, keepdims=True)
        normed = (p["gamma"][l] * (att - mu) * jax.lax.rsqrt(var + LN_EPS)
                  + p["beta"][l])
        X = V + normed

    return jnp.dot(X[:, 8, :], p["w_out"], precision=hp) + p["b_out"]


# ------------------------------------ main -------------------------------------

if __name__ == "__main__":
    input_dim, hidden_dim, output_dim, num_layers = 16, 32, 4, 3
    batch = 2

    key = jax.random.PRNGKey(0)
    kx, kp = jax.random.split(key)
    x = jax.random.normal(kx, (batch, input_dim), jnp.float32)
    params = init_params(kp, input_dim, hidden_dim, output_dim, num_layers)

    out = advanced_vortex_gnn_forward(x, params, num_layers)
    out = jax.block_until_ready(out)

    ref = jax.block_until_ready(reference_forward(x, params, num_layers))

    assert out.shape == (batch, output_dim)
    assert bool(jnp.all(jnp.isfinite(out)))
    assert bool(jnp.allclose(out, ref, atol=3e-2, rtol=3e-2)), (out, ref)
    print("KERNEL_OK")
</pallas_src>

<mosaic_0001>
module attributes {stable_mosaic.version = 11 : i64} {
  func.func @vortex_gnn_kernel(%arg0: i32, %arg1: memref<8x16xf32, #tpu.memory_space<vmem>>, %arg2: memref<16x288xf32, #tpu.memory_space<vmem>>, %arg3: memref<1x288xf32, #tpu.memory_space<vmem>>, %arg4: memref<32x32xf32, #tpu.memory_space<vmem>>, %arg5: memref<1x32xf32, #tpu.memory_space<vmem>>, %arg6: memref<3x72x72xf32, #tpu.memory_space<vmem>>, %arg7: memref<72x72xf32, #tpu.memory_space<vmem>>, %arg8: memref<3x32x32xf32, #tpu.memory_space<vmem>>, %arg9: memref<3x32xf32, #tpu.memory_space<vmem>>, %arg10: memref<3x32x96xf32, #tpu.memory_space<vmem>>, %arg11: memref<3x96xf32, #tpu.memory_space<vmem>>, %arg12: memref<3x32xf32, #tpu.memory_space<vmem>>, %arg13: memref<3x32xf32, #tpu.memory_space<vmem>>, %arg14: memref<32x4xf32, #tpu.memory_space<vmem>>, %arg15: memref<1x4xf32, #tpu.memory_space<vmem>>, %arg16: memref<8x4xf32, #tpu.memory_space<vmem>>, %arg17: memref<72x32xf32, #tpu.memory_space<vmem>>) attributes {dimension_semantics = [#tpu.dimension_semantics<parallel>], iteration_bounds = array<i64: 1>, scalar_prefetch = 0 : i64, scratch_operands = 1 : i64, tpu.core_type = #tpu.core_type<tc>, window_params = [{transform_indices = @transform_0, window_bounds = array<i64: 8, 16>}, {pipeline_mode = #tpu.pipeline_mode<synchronous>, transform_indices = @transform_1, window_bounds = array<i64: 16, 288>}, {pipeline_mode = #tpu.pipeline_mode<synchronous>, transform_indices = @transform_2, window_bounds = array<i64: 1, 288>}, {pipeline_mode = #tpu.pipeline_mode<synchronous>, transform_indices = @transform_3, window_bounds = array<i64: 32, 32>}, {pipeline_mode = #tpu.pipeline_mode<synchronous>, transform_indices = @transform_4, window_bounds = array<i64: 1, 32>}, {pipeline_mode = #tpu.pipeline_mode<synchronous>, transform_indices = @transform_5, window_bounds = array<i64: 3, 72, 72>}, {pipeline_mode = #tpu.pipeline_mode<synchronous>, transform_indices = @transform_6, window_bounds = array<i64: 72, 72>}, {pipeline_mode = #tpu.pipeline_mode<synchronous>, transform_indices = @transform_7, window_bounds = array<i64: 3, 32, 32>}, {pipeline_mode = #tpu.pipeline_mode<synchronous>, transform_indices = @transform_8, window_bounds = array<i64: 3, 32>}, {pipeline_mode = #tpu.pipeline_mode<synchronous>, transform_indices = @transform_9, window_bounds = array<i64: 3, 32, 96>}, {pipeline_mode = #tpu.pipeline_mode<synchronous>, transform_indices = @transform_10, window_bounds = array<i64: 3, 96>}, {pipeline_mode = #tpu.pipeline_mode<synchronous>, transform_indices = @transform_11, window_bounds = array<i64: 3, 32>}, {pipeline_mode = #tpu.pipeline_mode<synchronous>, transform_indices = @transform_12, window_bounds = array<i64: 3, 32>}, {pipeline_mode = #tpu.pipeline_mode<synchronous>, transform_indices = @transform_13, window_bounds = array<i64: 32, 4>}, {pipeline_mode = #tpu.pipeline_mode<synchronous>, transform_indices = @transform_14, window_bounds = array<i64: 1, 4>}, {transform_indices = @transform_15, window_bounds = array<i64: 8, 4>}]} {
    %c0 = arith.constant 0 : index
    %c0_0 = arith.constant 0 : index
    %0 = vector.load %arg1[%c0, %c0_0] : memref<8x16xf32, #tpu.memory_space<vmem>>, vector<8x16xf32>
    %c0_1 = arith.constant 0 : index
    %c0_2 = arith.constant 0 : index
    %1 = vector.load %arg2[%c0_1, %c0_2] : memref<16x288xf32, #tpu.memory_space<vmem>>, vector<16x288xf32>
    %cst = arith.constant dense<0.000000e+00> : vector<8x288xf32>
    %2 = tpu.matmul %0, %1, %cst {dimension_numbers = #tpu.dot_dimension_numbers<[1], [0], [0], [1], [0, 0, 1, 1], [], []>} : vector<8x16xf32>, vector<16x288xf32>, vector<8x288xf32> -> vector<8x288xf32>
    %c0_3 = arith.constant 0 : index
    %c0_4 = arith.constant 0 : index
    %3 = vector.load %arg3[%c0_3, %c0_4] : memref<1x288xf32, #tpu.memory_space<vmem>>, vector<1x288xf32>
    %4 = vector.broadcast %3 : vector<1x288xf32> to vector<8x288xf32>
    %5 = arith.addf %2, %4 : vector<8x288xf32>
    %cst_5 = arith.constant 0.000000e+00 : f32
    %6 = vector.broadcast %cst_5 : f32 to vector<8x288xf32>
    %7 = arith.cmpf ogt, %5, %6 : vector<8x288xf32>
    %cst_6 = arith.constant 0.00999999977 : f32
    %8 = vector.broadcast %cst_6 : f32 to vector<8x288xf32>
    %9 = arith.mulf %8, %5 : vector<8x288xf32>
    %10 = arith.select %7, %5, %9 : vector<8x288xi1>, vector<8x288xf32>
    %11 = vector.extract_strided_slice %10 {offsets = [0, 0], sizes = [8, 32], strides = [1, 1]} : vector<8x288xf32> to vector<8x32xf32>
    %c0_7 = arith.constant 0 : index
    %c0_8 = arith.constant 0 : index
    %12 = vector.load %arg17[%c0_7, %c0_8] : memref<72x32xf32, #tpu.memory_space<vmem>>, vector<8x32xf32>
    tpu.vector_store %arg17[%c0_7, %c0_8], %11 {strides = array<i32>} : memref<72x32xf32, #tpu.memory_space<vmem>>, vector<8x32xf32>,
    %13 = vector.extract_strided_slice %10 {offsets = [0, 32], sizes = [8, 32], strides = [1, 1]} : vector<8x288xf32> to vector<8x32xf32>
    %c8 = arith.constant 8 : index
    %c0_9 = arith.constant 0 : index
    %14 = vector.load %arg17[%c8, %c0_9] : memref<72x32xf32, #tpu.memory_space<vmem>>, vector<8x32xf32>
    tpu.vector_store %arg17[%c8, %c0_9], %13 {strides = array<i32>} : memref<72x32xf32, #tpu.memory_space<vmem>>, vector<8x32xf32>,
    %15 = vector.extract_strided_slice %10 {offsets = [0, 64], sizes = [8, 32], strides = [1, 1]} : vector<8x288xf32> to vector<8x32xf32>
    %c16 = arith.constant 16 : index
    %c0_10 = arith.constant 0 : index
    %16 = vector.load %arg17[%c16, %c0_10] : memref<72x32xf32, #tpu.memory_space<vmem>>, vector<8x32xf32>
    tpu.vector_store %arg17[%c16, %c0_10], %15 {strides = array<i32>} : memref<72x32xf32, #tpu.memory_space<vmem>>, vector<8x32xf32>,
    %17 = vector.extract_strided_slice %10 {offsets = [0, 96], sizes = [8, 32], strides = [1, 1]} : vector<8x288xf32> to vector<8x32xf32>
    %c24 = arith.constant 24 : index
    %c0_11 = arith.constant 0 : index
    %18 = vector.load %arg17[%c24, %c0_11] : memref<72x32xf32, #tpu.memory_space<vmem>>, vector<8x32xf32>
    tpu.vector_store %arg17[%c24, %c0_11], %17 {strides = array<i32>} : memref<72x32xf32, #tpu.memory_space<vmem>>, vector<8x32xf32>,
    %19 = vector.extract_strided_slice %10 {offsets = [0, 128], sizes = [8, 32], strides = [1, 1]} : vector<8x288xf32> to vector<8x32xf32>
    %c32 = arith.constant 32 : index
    %c0_12 = arith.constant 0 : index
    %20 = vector.load %arg17[%c32, %c0_12] : memref<72x32xf32, #tpu.memory_space<vmem>>, vector<8x32xf32>
    tpu.vector_store %arg17[%c32, %c0_12], %19 {strides = array<i32>} : memref<72x32xf32, #tpu.memory_space<vmem>>, vector<8x32xf32>,
    %21 = vector.extract_strided_slice %10 {offsets = [0, 160], sizes = [8, 32], strides = [1, 1]} : vector<8x288xf32> to vector<8x32xf32>
    %c40 = arith.constant 40 : index
    %c0_13 = arith.constant 0 : index
    %22 = vector.load %arg17[%c40, %c0_13] : memref<72x32xf32, #tpu.memory_space<vmem>>, vector<8x32xf32>
    tpu.vector_store %arg17[%c40, %c0_13], %21 {strides = array<i32>} : memref<72x32xf32, #tpu.memory_space<vmem>>, vector<8x32xf32>,
    %23 = vector.extract_strided_slice %10 {offsets = [0, 192], sizes = [8, 32], strides = [1, 1]} : vector<8x288xf32> to vector<8x32xf32>
    %c48 = arith.constant 48 : index
    %c0_14 = arith.constant 0 : index
    %24 = vector.load %arg17[%c48, %c0_14] : memref<72x32xf32, #tpu.memory_space<vmem>>, vector<8x32xf32>
    tpu.vector_store %arg17[%c48, %c0_14], %23 {strides = array<i32>} : memref<72x32xf32, #tpu.memory_space<vmem>>, vector<8x32xf32>,
    %25 = vector.extract_strided_slice %10 {offsets = [0, 224], sizes = [8, 32], strides = [1, 1]} : vector<8x288xf32> to vector<8x32xf32>
    %c56 = arith.constant 56 : index
    %c0_15 = arith.constant 0 : index
    %26 = vector.load %arg17[%c56, %c0_15] : memref<72x32xf32, #tpu.memory_space<vmem>>, vector<8x32xf32>
    tpu.vector_store %arg17[%c56, %c0_15], %25 {strides = array<i32>} : memref<72x32xf32, #tpu.memory_space<vmem>>, vector<8x32xf32>,
    %27 = vector.extract_strided_slice %10 {offsets = [0, 256], sizes = [8, 32], strides = [1, 1]} : vector<8x288xf32> to vector<8x32xf32>
    %c64 = arith.constant 64 : index
    %c0_16 = arith.constant 0 : index
    %28 = vector.load %arg17[%c64, %c0_16] : memref<72x32xf32, #tpu.memory_space<vmem>>, vector<8x32xf32>
    tpu.vector_store %arg17[%c64, %c0_16], %27 {strides = array<i32>} : memref<72x32xf32, #tpu.memory_space<vmem>>, vector<8x32xf32>,
    %c0_17 = arith.constant 0 : index
    %c0_18 = arith.constant 0 : index
    %29 = vector.load %arg17[%c0_17, %c0_18] : memref<72x32xf32, #tpu.memory_space<vmem>>, vector<72x32xf32>
    %c0_19 = arith.constant 0 : index
    %c0_20 = arith.constant 0 : index
    %30 = vector.load %arg4[%c0_19, %c0_20] : memref<32x32xf32, #tpu.memory_space<vmem>>, vector<32x32xf32>
    %cst_21 = arith.constant dense<0.000000e+00> : vector<72x32xf32>
    %31 = tpu.matmul %29, %30, %cst_21 {dimension_numbers = #tpu.dot_dimension_numbers<[1], [0], [0], [1], [0, 0, 1, 1], [], []>} : vector<72x32xf32>, vector<32x32xf32>, vector<72x32xf32> -> vector<72x32xf32>
    %c0_22 = arith.constant 0 : index
    %c0_23 = arith.constant 0 : index
    %32 = vector.load %arg5[%c0_22, %c0_23] : memref<1x32xf32, #tpu.memory_space<vmem>>, vector<1x32xf32>
    %33 = vector.broadcast %32 : vector<1x32xf32> to vector<72x32xf32>
    %34 = arith.addf %31, %33 : vector<72x32xf32>
    %35 = math.tanh %34 : vector<72x32xf32>
    %c0_24 = arith.constant 0 : index
    %c0_25 = arith.constant 0 : index
    %36 = vector.load %arg7[%c0_24, %c0_25] : memref<72x72xf32, #tpu.memory_space<vmem>>, vector<72x72xf32>
    %c0_26 = arith.constant 0 : index
    %c0_27 = arith.constant 0 : index
    %c0_28 = arith.constant 0 : index
    %37 = vector.load %arg6[%c0_26, %c0_27, %c0_28] : memref<3x72x72xf32, #tpu.memory_space<vmem>>, vector<1x72x72xf32>
    %38 = vector.shape_cast %37 : vector<1x72x72xf32> to vector<72x72xf32>
    %cst_29 = arith.constant dense<0.000000e+00> : vector<72x32xf32>
    %39 = tpu.matmul %38, %35, %cst_29 {dimension_numbers = #tpu.dot_dimension_numbers<[1], [0], [0], [1], [0, 0, 1, 1], [], []>} : vector<72x72xf32>, vector<72x32xf32>, vector<72x32xf32> -> vector<72x32xf32>
    %c0_30 = arith.constant 0 : index
    %c0_31 = arith.constant 0 : index
    %c0_32 = arith.constant 0 : index
    %40 = vector.load %arg8[%c0_30, %c0_31, %c0_32] : memref<3x32x32xf32, #tpu.memory_space<vmem>>, vector<1x32x32xf32>
    %41 = vector.shape_cast %40 : vector<1x32x32xf32> to vector<32x32xf32>
    %cst_33 = arith.constant dense<0.000000e+00> : vector<72x32xf32>
    %42 = tpu.matmul %39, %41, %cst_33 {dimension_numbers = #tpu.dot_dimension_numbers<[1], [0], [0], [1], [0, 0, 1, 1], [], []>} : vector<72x32xf32>, vector<32x32xf32>, vector<72x32xf32> -> vector<72x32xf32>
    %c0_34 = arith.constant 0 : index
    %c0_35 = arith.constant 0 : index
    %43 = vector.load %arg9[%c0_34, %c0_35] : memref<3x32xf32, #tpu.memory_space<vmem>>, vector<1x32xf32>
    %44 = vector.broadcast %43 : vector<1x32xf32> to vector<72x32xf32>
    %45 = arith.addf %42, %44 : vector<72x32xf32>
    %46 = math.tanh %45 : vector<72x32xf32>
    %c0_36 = arith.constant 0 : index
    %c0_37 = arith.constant 0 : index
    %c0_38 = arith.constant 0 : index
    %47 = vector.load %arg10[%c0_36, %c0_37, %c0_38] : memref<3x32x96xf32, #tpu.memory_space<vmem>>, vector<1x32x96xf32>
    %48 = vector.shape_cast %47 : vector<1x32x96xf32> to vector<32x96xf32>
    %cst_39 = arith.constant dense<0.000000e+00> : vector<72x96xf32>
    %49 = tpu.matmul %46, %48, %cst_39 {dimension_numbers = #tpu.dot_dimension_numbers<[1], [0], [0], [1], [0, 0, 1, 1], [], []>} : vector<72x32xf32>, vector<32x96xf32>, vector<72x96xf32> -> vector<72x96xf32>
    %c0_40 = arith.constant 0 : index
    %c0_41 = arith.constant 0 : index
    %50 = vector.load %arg11[%c0_40, %c0_41] : memref<3x96xf32, #tpu.memory_space<vmem>>, vector<1x96xf32>
    %51 = vector.broadcast %50 : vector<1x96xf32> to vector<72x96xf32>
    %52 = arith.addf %49, %51 : vector<72x96xf32>
    %53 = vector.extract_strided_slice %52 {offsets = [0, 0], sizes = [72, 32], strides = [1, 1]} : vector<72x96xf32> to vector<72x32xf32>
    %54 = vector.extract_strided_slice %52 {offsets = [0, 32], sizes = [72, 32], strides = [1, 1]} : vector<72x96xf32> to vector<72x32xf32>
    %55 = vector.extract_strided_slice %52 {offsets = [0, 64], sizes = [72, 32], strides = [1, 1]} : vector<72x96xf32> to vector<72x32xf32>
    %cst_42 = arith.constant dense<0.000000e+00> : vector<72x72xf32>
    %56 = tpu.matmul %53, %54, %cst_42 {dimension_numbers = #tpu.dot_dimension_numbers<[1], [1], [0], [0], [0, 0, 1, 0], [], []>} : vector<72x32xf32>, vector<72x32xf32>, vector<72x72xf32> -> vector<72x72xf32>
    %cst_43 = arith.constant 0.176776692 : f32
    %57 = vector.broadcast %cst_43 : f32 to vector<72x72xf32>
    %58 = arith.mulf %56, %57 : vector<72x72xf32>
    %59 = arith.addf %58, %36 : vector<72x72xf32>
    %cst_44 = arith.constant dense<0xFF800000> : vector<72xf32>
    %60 = vector.multi_reduction <maximumf>, %59, %cst_44 [1] : vector<72x72xf32> to vector<72xf32>
    %61 = vector.shape_cast %60 : vector<72xf32> to vector<72x1xf32>
    %62 = vector.broadcast %61 : vector<72x1xf32> to vector<72x72xf32>
    %63 = arith.subf %59, %62 : vector<72x72xf32>
    %64 = math.exp %63 : vector<72x72xf32>
    %cst_45 = arith.constant dense<0.000000e+00> : vector<72xf32>
    %65 = vector.multi_reduction <add>, %64, %cst_45 [1] : vector<72x72xf32> to vector<72xf32>
    %66 = vector.shape_cast %65 : vector<72xf32> to vector<72x1xf32>
    %67 = tpu.reciprocal %66 {approx = true} : vector<72x1xf32> -> vector<72x1xf32>
    %68 = vector.broadcast %67 : vector<72x1xf32> to vector<72x72xf32>
    %69 = arith.mulf %64, %68 : vector<72x72xf32>
    %cst_46 = arith.constant dense<0.000000e+00> : vector<72x32xf32>
    %70 = tpu.matmul %69, %55, %cst_46 {dimension_numbers = #tpu.dot_dimension_numbers<[1], [0], [0], [1], [0, 0, 1, 1], [], []>} : vector<72x72xf32>, vector<72x32xf32>, vector<72x32xf32> -> vector<72x32xf32>
    %cst_47 = arith.constant dense<0.000000e+00> : vector<72xf32>
    %71 = vector.multi_reduction <add>, %70, %cst_47 [1] : vector<72x32xf32> to vector<72xf32>
    %72 = vector.shape_cast %71 : vector<72xf32> to vector<72x1xf32>
    %cst_48 = arith.constant 3.200000e+01 : f32
    %73 = vector.broadcast %cst_48 : f32 to vector<72x1xf32>
    %74 = arith.divf %72, %73 : vector<72x1xf32>
    %75 = vector.broadcast %74 : vector<72x1xf32> to vector<72x32xf32>
    %76 = arith.subf %70, %75 : vector<72x32xf32>
    %77 = arith.mulf %76, %76 : vector<72x32xf32>
    %cst_49 = arith.constant dense<0.000000e+00> : vector<72xf32>
    %78 = vector.multi_reduction <add>, %77, %cst_49 [1] : vector<72x32xf32> to vector<72xf32>
    %79 = vector.shape_cast %78 : vector<72xf32> to vector<72x1xf32>
    %cst_50 = arith.constant 3.200000e+01 : f32
    %80 = vector.broadcast %cst_50 : f32 to vector<72x1xf32>
    %81 = arith.divf %79, %80 : vector<72x1xf32>
    %c0_51 = arith.constant 0 : index
    %c0_52 = arith.constant 0 : index
    %82 = vector.load %arg12[%c0_51, %c0_52] : memref<3x32xf32, #tpu.memory_space<vmem>>, vector<1x32xf32>
    %83 = vector.broadcast %74 : vector<72x1xf32> to vector<72x32xf32>
    %84 = arith.subf %70, %83 : vector<72x32xf32>
    %85 = vector.broadcast %82 : vector<1x32xf32> to vector<72x32xf32>
    %86 = arith.mulf %85, %84 : vector<72x32xf32>
    %cst_53 = arith.constant 9.99999974E-6 : f32
    %87 = vector.broadcast %cst_53 : f32 to vector<72x1xf32>
    %88 = arith.addf %81, %87 : vector<72x1xf32>
    %89 = math.rsqrt %88 : vector<72x1xf32>
    %90 = vector.broadcast %89 : vector<72x1xf32> to vector<72x32xf32>
    %91 = arith.mulf %86, %90 : vector<72x32xf32>
    %c0_54 = arith.constant 0 : index
    %c0_55 = arith.constant 0 : index
    %92 = vector.load %arg13[%c0_54, %c0_55] : memref<3x32xf32, #tpu.memory_space<vmem>>, vector<1x32xf32>
    %93 = vector.broadcast %92 : vector<1x32xf32> to vector<72x32xf32>
    %94 = arith.addf %91, %93 : vector<72x32xf32>
    %95 = arith.addf %46, %94 : vector<72x32xf32>
    %c1 = arith.constant 1 : index
    %c0_56 = arith.constant 0 : index
    %c0_57 = arith.constant 0 : index
    %96 = vector.load %arg6[%c1, %c0_56, %c0_57] : memref<3x72x72xf32, #tpu.memory_space<vmem>>, vector<1x72x72xf32>
    %97 = vector.shape_cast %96 : vector<1x72x72xf32> to vector<72x72xf32>
    %cst_58 = arith.constant dense<0.000000e+00> : vector<72x32xf32>
    %98 = tpu.matmul %97, %95, %cst_58 {dimension_numbers = #tpu.dot_dimension_numbers<[1], [0], [0], [1], [0, 0, 1, 1], [], []>} : vector<72x72xf32>, vector<72x32xf32>, vector<72x32xf32> -> vector<72x32xf32>
    %c1_59 = arith.constant 1 : index
    %c0_60 = arith.constant 0 : index
    %c0_61 = arith.constant 0 : index
    %99 = vector.load %arg8[%c1_59, %c0_60, %c0_61] : memref<3x32x32xf32, #tpu.memory_space<vmem>>, vector<1x32x32xf32>
    %100 = vector.shape_cast %99 : vector<1x32x32xf32> to vector<32x32xf32>
    %cst_62 = arith.constant dense<0.000000e+00> : vector<72x32xf32>
    %101 = tpu.matmul %98, %100, %cst_62 {dimension_numbers = #tpu.dot_dimension_numbers<[1], [0], [0], [1], [0, 0, 1, 1], [], []>} : vector<72x32xf32>, vector<32x32xf32>, vector<72x32xf32> -> vector<72x32xf32>
    %c1_63 = arith.constant 1 : index
    %c0_64 = arith.constant 0 : index
    %102 = vector.load %arg9[%c1_63, %c0_64] : memref<3x32xf32, #tpu.memory_space<vmem>>, vector<1x32xf32>
    %103 = vector.broadcast %102 : vector<1x32xf32> to vector<72x32xf32>
    %104 = arith.addf %101, %103 : vector<72x32xf32>
    %cst_65 = arith.constant 0.000000e+00 : f32
    %105 = vector.broadcast %cst_65 : f32 to vector<72x32xf32>
    %106 = arith.cmpf ogt, %104, %105 : vector<72x32xf32>
    %cst_66 = arith.constant 0.00999999977 : f32
    %107 = vector.broadcast %cst_66 : f32 to vector<72x32xf32>
    %108 = arith.mulf %107, %104 : vector<72x32xf32>
    %109 = arith.select %106, %104, %108 : vector<72x32xi1>, vector<72x32xf32>
    %c1_67 = arith.constant 1 : index
    %c0_68 = arith.constant 0 : index
    %c0_69 = arith.constant 0 : index
    %110 = vector.load %arg10[%c1_67, %c0_68, %c0_69] : memref<3x32x96xf32, #tpu.memory_space<vmem>>, vector<1x32x96xf32>
    %111 = vector.shape_cast %110 : vector<1x32x96xf32> to vector<32x96xf32>
    %cst_70 = arith.constant dense<0.000000e+00> : vector<72x96xf32>
    %112 = tpu.matmul %109, %111, %cst_70 {dimension_numbers = #tpu.dot_dimension_numbers<[1], [0], [0], [1], [0, 0, 1, 1], [], []>} : vector<72x32xf32>, vector<32x96xf32>, vector<72x96xf32> -> vector<72x96xf32>
    %c1_71 = arith.constant 1 : index
    %c0_72 = arith.constant 0 : index
    %113 = vector.load %arg11[%c1_71, %c0_72] : memref<3x96xf32, #tpu.memory_space<vmem>>, vector<1x96xf32>
    %114 = vector.broadcast %113 : vector<1x96xf32> to vector<72x96xf32>
    %115 = arith.addf %112, %114 : vector<72x96xf32>
    %116 = vector.extract_strided_slice %115 {offsets = [0, 0], sizes = [72, 32], strides = [1, 1]} : vector<72x96xf32> to vector<72x32xf32>
    %117 = vector.extract_strided_slice %115 {offsets = [0, 32], sizes = [72, 32], strides = [1, 1]} : vector<72x96xf32> to vector<72x32xf32>
    %118 = vector.extract_strided_slice %115 {offsets = [0, 64], sizes = [72, 32], strides = [1, 1]} : vector<72x96xf32> to vector<72x32xf32>
    %cst_73 = arith.constant dense<0.000000e+00> : vector<72x72xf32>
    %119 = tpu.matmul %116, %117, %cst_73 {dimension_numbers = #tpu.dot_dimension_numbers<[1], [1], [0], [0], [0, 0, 1, 0], [], []>} : vector<72x32xf32>, vector<72x32xf32>, vector<72x72xf32> -> vector<72x72xf32>
    %cst_74 = arith.constant 0.176776692 : f32
    %120 = vector.broadcast %cst_74 : f32 to vector<72x72xf32>
    %121 = arith.mulf %119, %120 : vector<72x72xf32>
    %122 = arith.addf %121, %36 : vector<72x72xf32>
    %cst_75 = arith.constant dense<0xFF800000> : vector<72xf32>
    %123 = vector.multi_reduction <maximumf>, %122, %cst_75 [1] : vector<72x72xf32> to vector<72xf32>
    %124 = vector.shape_cast %123 : vector<72xf32> to vector<72x1xf32>
    %125 = vector.broadcast %124 : vector<72x1xf32> to vector<72x72xf32>
    %126 = arith.subf %122, %125 : vector<72x72xf32>
    %127 = math.exp %126 : vector<72x72xf32>
    %cst_76 = arith.constant dense<0.000000e+00> : vector<72xf32>
    %128 = vector.multi_reduction <add>, %127, %cst_76 [1] : vector<72x72xf32> to vector<72xf32>
    %129 = vector.shape_cast %128 : vector<72xf32> to vector<72x1xf32>
    %130 = tpu.reciprocal %129 {approx = true} : vector<72x1xf32> -> vector<72x1xf32>
    %131 = vector.broadcast %130 : vector<72x1xf32> to vector<72x72xf32>
    %132 = arith.mulf %127, %131 : vector<72x72xf32>
    %cst_77 = arith.constant dense<0.000000e+00> : vector<72x32xf32>
    %133 = tpu.matmul %132, %118, %cst_77 {dimension_numbers = #tpu.dot_dimension_numbers<[1], [0], [0], [1], [0, 0, 1, 1], [], []>} : vector<72x72xf32>, vector<72x32xf32>, vector<72x32xf32> -> vector<72x32xf32>
    %cst_78 = arith.constant dense<0.000000e+00> : vector<72xf32>
    %134 = vector.multi_reduction <add>, %133, %cst_78 [1] : vector<72x32xf32> to vector<72xf32>
    %135 = vector.shape_cast %134 : vector<72xf32> to vector<72x1xf32>
    %cst_79 = arith.constant 3.200000e+01 : f32
    %136 = vector.broadcast %cst_79 : f32 to vector<72x1xf32>
    %137 = arith.divf %135, %136 : vector<72x1xf32>
    %138 = vector.broadcast %137 : vector<72x1xf32> to vector<72x32xf32>
    %139 = arith.subf %133, %138 : vector<72x32xf32>
    %140 = arith.mulf %139, %139 : vector<72x32xf32>
    %cst_80 = arith.constant dense<0.000000e+00> : vector<72xf32>
    %141 = vector.multi_reduction <add>, %140, %cst_80 [1] : vector<72x32xf32> to vector<72xf32>
    %142 = vector.shape_cast %141 : vector<72xf32> to vector<72x1xf32>
    %cst_81 = arith.constant 3.200000e+01 : f32
    %143 = vector.broadcast %cst_81 : f32 to vector<72x1xf32>
    %144 = arith.divf %142, %143 : vector<72x1xf32>
    %c1_82 = arith.constant 1 : index
    %c0_83 = arith.constant 0 : index
    %145 = vector.load %arg12[%c1_82, %c0_83] : memref<3x32xf32, #tpu.memory_space<vmem>>, vector<1x32xf32>
    %146 = vector.broadcast %137 : vector<72x1xf32> to vector<72x32xf32>
    %147 = arith.subf %133, %146 : vector<72x32xf32>
    %148 = vector.broadcast %145 : vector<1x32xf32> to vector<72x32xf32>
    %149 = arith.mulf %148, %147 : vector<72x32xf32>
    %cst_84 = arith.constant 9.99999974E-6 : f32
    %150 = vector.broadcast %cst_84 : f32 to vector<72x1xf32>
    %151 = arith.addf %144, %150 : vector<72x1xf32>
    %152 = math.rsqrt %151 : vector<72x1xf32>
    %153 = vector.broadcast %152 : vector<72x1xf32> to vector<72x32xf32>
    %154 = arith.mulf %149, %153 : vector<72x32xf32>
    %c1_85 = arith.constant 1 : index
    %c0_86 = arith.constant 0 : index
    %155 = vector.load %arg13[%c1_85, %c0_86] : memref<3x32xf32, #tpu.memory_space<vmem>>, vector<1x32xf32>
    %156 = vector.broadcast %155 : vector<1x32xf32> to vector<72x32xf32>
    %157 = arith.addf %154, %156 : vector<72x32xf32>
    %158 = arith.addf %109, %157 : vector<72x32xf32>
    %c2 = arith.constant 2 : index
    %c0_87 = arith.constant 0 : index
    %c0_88 = arith.constant 0 : index
    %159 = vector.load %arg6[%c2, %c0_87, %c0_88] : memref<3x72x72xf32, #tpu.memory_space<vmem>>, vector<1x72x72xf32>
    %160 = vector.shape_cast %159 : vector<1x72x72xf32> to vector<72x72xf32>
    %cst_89 = arith.constant dense<0.000000e+00> : vector<72x32xf32>
    %161 = tpu.matmul %160, %158, %cst_89 {dimension_numbers = #tpu.dot_dimension_numbers<[1], [0], [0], [1], [0, 0, 1, 1], [], []>} : vector<72x72xf32>, vector<72x32xf32>, vector<72x32xf32> -> vector<72x32xf32>
    %c2_90 = arith.constant 2 : index
    %c0_91 = arith.constant 0 : index
    %c0_92 = arith.constant 0 : index
    %162 = vector.load %arg8[%c2_90, %c0_91, %c0_92] : memref<3x32x32xf32, #tpu.memory_space<vmem>>, vector<1x32x32xf32>
    %163 = vector.shape_cast %162 : vector<1x32x32xf32> to vector<32x32xf32>
    %cst_93 = arith.constant dense<0.000000e+00> : vector<72x32xf32>
    %164 = tpu.matmul %161, %163, %cst_93 {dimension_numbers = #tpu.dot_dimension_numbers<[1], [0], [0], [1], [0, 0, 1, 1], [], []>} : vector<72x32xf32>, vector<32x32xf32>, vector<72x32xf32> -> vector<72x32xf32>
    %c2_94 = arith.constant 2 : index
    %c0_95 = arith.constant 0 : index
    %165 = vector.load %arg9[%c2_94, %c0_95] : memref<3x32xf32, #tpu.memory_space<vmem>>, vector<1x32xf32>
    %166 = vector.broadcast %165 : vector<1x32xf32> to vector<72x32xf32>
    %167 = arith.addf %164, %166 : vector<72x32xf32>
    %168 = arith.negf %167 : vector<72x32xf32>
    %169 = math.exp %168 : vector<72x32xf32>
    %cst_96 = arith.constant 1.000000e+00 : f32
    %170 = vector.broadcast %cst_96 : f32 to vector<72x32xf32>
    %171 = arith.addf %170, %169 : vector<72x32xf32>
    %172 = arith.divf %170, %171 : vector<72x32xf32>
    %173 = arith.mulf %167, %172 : vector<72x32xf32>
    %c2_97 = arith.constant 2 : index
    %c0_98 = arith.constant 0 : index
    %c0_99 = arith.constant 0 : index
    %174 = vector.load %arg10[%c2_97, %c0_98, %c0_99] : memref<3x32x96xf32, #tpu.memory_space<vmem>>, vector<1x32x96xf32>
    %175 = vector.shape_cast %174 : vector<1x32x96xf32> to vector<32x96xf32>
    %cst_100 = arith.constant dense<0.000000e+00> : vector<72x96xf32>
    %176 = tpu.matmul %173, %175, %cst_100 {dimension_numbers = #tpu.dot_dimension_numbers<[1], [0], [0], [1], [0, 0, 1, 1], [], []>} : vector<72x32xf32>, vector<32x96xf32>, vector<72x96xf32> -> vector<72x96xf32>
    %c2_101 = arith.constant 2 : index
    %c0_102 = arith.constant 0 : index
    %177 = vector.load %arg11[%c2_101, %c0_102] : memref<3x96xf32, #tpu.memory_space<vmem>>, vector<1x96xf32>
    %178 = vector.broadcast %177 : vector<1x96xf32> to vector<72x96xf32>
    %179 = arith.addf %176, %178 : vector<72x96xf32>
    %180 = vector.extract_strided_slice %179 {offsets = [0, 0], sizes = [72, 32], strides = [1, 1]} : vector<72x96xf32> to vector<72x32xf32>
    %181 = vector.extract_strided_slice %179 {offsets = [0, 32], sizes = [72, 32], strides = [1, 1]} : vector<72x96xf32> to vector<72x32xf32>
    %182 = vector.extract_strided_slice %179 {offsets = [0, 64], sizes = [72, 32], strides = [1, 1]} : vector<72x96xf32> to vector<72x32xf32>
    %cst_103 = arith.constant dense<0.000000e+00> : vector<72x72xf32>
    %183 = tpu.matmul %180, %181, %cst_103 {dimension_numbers = #tpu.dot_dimension_numbers<[1], [1], [0], [0], [0, 0, 1, 0], [], []>} : vector<72x32xf32>, vector<72x32xf32>, vector<72x72xf32> -> vector<72x72xf32>
    %cst_104 = arith.constant 0.176776692 : f32
    %184 = vector.broadcast %cst_104 : f32 to vector<72x72xf32>
    %185 = arith.mulf %183, %184 : vector<72x72xf32>
    %186 = arith.addf %185, %36 : vector<72x72xf32>
    %cst_105 = arith.constant dense<0xFF800000> : vector<72xf32>
    %187 = vector.multi_reduction <maximumf>, %186, %cst_105 [1] : vector<72x72xf32> to vector<72xf32>
    %188 = vector.shape_cast %187 : vector<72xf32> to vector<72x1xf32>
    %189 = vector.broadcast %188 : vector<72x1xf32> to vector<72x72xf32>
    %190 = arith.subf %186, %189 : vector<72x72xf32>
    %191 = math.exp %190 : vector<72x72xf32>
    %cst_106 = arith.constant dense<0.000000e+00> : vector<72xf32>
    %192 = vector.multi_reduction <add>, %191, %cst_106 [1] : vector<72x72xf32> to vector<72xf32>
    %193 = vector.shape_cast %192 : vector<72xf32> to vector<72x1xf32>
    %194 = tpu.reciprocal %193 {approx = true} : vector<72x1xf32> -> vector<72x1xf32>
    %195 = vector.broadcast %194 : vector<72x1xf32> to vector<72x72xf32>
    %196 = arith.mulf %191, %195 : vector<72x72xf32>
    %cst_107 = arith.constant dense<0.000000e+00> : vector<72x32xf32>
    %197 = tpu.matmul %196, %182, %cst_107 {dimension_numbers = #tpu.dot_dimension_numbers<[1], [0], [0], [1], [0, 0, 1, 1], [], []>} : vector<72x72xf32>, vector<72x32xf32>, vector<72x32xf32> -> vector<72x32xf32>
    %cst_108 = arith.constant dense<0.000000e+00> : vector<72xf32>
    %198 = vector.multi_reduction <add>, %197, %cst_108 [1] : vector<72x32xf32> to vector<72xf32>
    %199 = vector.shape_cast %198 : vector<72xf32> to vector<72x1xf32>
    %cst_109 = arith.constant 3.200000e+01 : f32
    %200 = vector.broadcast %cst_109 : f32 to vector<72x1xf32>
    %201 = arith.divf %199, %200 : vector<72x1xf32>
    %202 = vector.broadcast %201 : vector<72x1xf32> to vector<72x32xf32>
    %203 = arith.subf %197, %202 : vector<72x32xf32>
    %204 = arith.mulf %203, %203 : vector<72x32xf32>
    %cst_110 = arith.constant dense<0.000000e+00> : vector<72xf32>
    %205 = vector.multi_reduction <add>, %204, %cst_110 [1] : vector<72x32xf32> to vector<72xf32>
    %206 = vector.shape_cast %205 : vector<72xf32> to vector<72x1xf32>
    %cst_111 = arith.constant 3.200000e+01 : f32
    %207 = vector.broadcast %cst_111 : f32 to vector<72x1xf32>
    %208 = arith.divf %206, %207 : vector<72x1xf32>
    %c2_112 = arith.constant 2 : index
    %c0_113 = arith.constant 0 : index
    %209 = vector.load %arg12[%c2_112, %c0_113] : memref<3x32xf32, #tpu.memory_space<vmem>>, vector<1x32xf32>
    %210 = vector.broadcast %201 : vector<72x1xf32> to vector<72x32xf32>
    %211 = arith.subf %197, %210 : vector<72x32xf32>
    %212 = vector.broadcast %209 : vector<1x32xf32> to vector<72x32xf32>
    %213 = arith.mulf %212, %211 : vector<72x32xf32>
    %cst_114 = arith.constant 9.99999974E-6 : f32
    %214 = vector.broadcast %cst_114 : f32 to vector<72x1xf32>
    %215 = arith.addf %208, %214 : vector<72x1xf32>
    %216 = math.rsqrt %215 : vector<72x1xf32>
    %217 = vector.broadcast %216 : vector<72x1xf32> to vector<72x32xf32>
    %218 = arith.mulf %213, %217 : vector<72x32xf32>
    %c2_115 = arith.constant 2 : index
    %c0_116 = arith.constant 0 : index
    %219 = vector.load %arg13[%c2_115, %c0_116] : memref<3x32xf32, #tpu.memory_space<vmem>>, vector<1x32xf32>
    %220 = vector.broadcast %219 : vector<1x32xf32> to vector<72x32xf32>
    %221 = arith.addf %218, %220 : vector<72x32xf32>
    %222 = arith.addf %173, %221 : vector<72x32xf32>
    %223 = vector.extract_strided_slice %222 {offsets = [64, 0], sizes = [8, 32], strides = [1, 1]} : vector<72x32xf32> to vector<8x32xf32>
    %c0_117 = arith.constant 0 : index
    %c0_118 = arith.constant 0 : index
    %224 = vector.load %arg14[%c0_117, %c0_118] : memref<32x4xf32, #tpu.memory_space<vmem>>, vector<32x4xf32>
    %cst_119 = arith.constant dense<0.000000e+00> : vector<8x4xf32>
    %225 = tpu.matmul %223, %224, %cst_119 {dimension_numbers = #tpu.dot_dimension_numbers<[1], [0], [0], [1], [0, 0, 1, 1], [], []>} : vector<8x32xf32>, vector<32x4xf32>, vector<8x4xf32> -> vector<8x4xf32>
    %c0_120 = arith.constant 0 : index
    %c0_121 = arith.constant 0 : index
    %226 = vector.load %arg15[%c0_120, %c0_121] : memref<1x4xf32, #tpu.memory_space<vmem>>, vector<1x4xf32>
    %227 = vector.broadcast %226 : vector<1x4xf32> to vector<8x4xf32>
    %228 = arith.addf %225, %227 : vector<8x4xf32>
    %c0_122 = arith.constant 0 : index
    %c0_123 = arith.constant 0 : index
    %229 = vector.load %arg16[%c0_122, %c0_123] : memref<8x4xf32, #tpu.memory_space<vmem>>, vector<8x4xf32>
    tpu.vector_store %arg16[%c0_122, %c0_123], %228 {strides = array<i32>} : memref<8x4xf32, #tpu.memory_space<vmem>>, vector<8x4xf32>,
    return
  }
  func.func @transform_0(%arg0: i32) -> (i32, i32) {
    %c0_i32 = arith.constant 0 : i32
    %c0_i32_0 = arith.constant 0 : i32
    return %arg0, %c0_i32 : i32, i32
  }
  func.func @transform_1(%arg0: i32) -> (i32, i32) {
    %c0_i32 = arith.constant 0 : i32
    %c0_i32_0 = arith.constant 0 : i32
    %c0_i32_1 = arith.constant 0 : i32
    return %c0_i32, %c0_i32_0 : i32, i32
  }
  func.func @transform_2(%arg0: i32) -> (i32, i32) {
    %c0_i32 = arith.constant 0 : i32
    %c0_i32_0 = arith.constant 0 : i32
    %c0_i32_1 = arith.constant 0 : i32
    return %c0_i32, %c0_i32_0 : i32, i32
  }
  func.func @transform_3(%arg0: i32) -> (i32, i32) {
    %c0_i32 = arith.constant 0 : i32
    %c0_i32_0 = arith.constant 0 : i32
    %c0_i32_1 = arith.constant 0 : i32
    return %c0_i32, %c0_i32_0 : i32, i32
  }
  func.func @transform_4(%arg0: i32) -> (i32, i32) {
    %c0_i32 = arith.constant 0 : i32
    %c0_i32_0 = arith.constant 0 : i32
    %c0_i32_1 = arith.constant 0 : i32
    return %c0_i32, %c0_i32_0 : i32, i32
  }
  func.func @transform_5(%arg0: i32) -> (i32, i32, i32) {
    %c0_i32 = arith.constant 0 : i32
    %c0_i32_0 = arith.constant 0 : i32
    %c0_i32_1 = arith.constant 0 : i32
    %c0_i32_2 = arith.constant 0 : i32
    return %c0_i32, %c0_i32_0, %c0_i32_1 : i32, i32, i32
  }
  func.func @transform_6(%arg0: i32) -> (i32, i32) {
    %c0_i32 = arith.constant 0 : i32
    %c0_i32_0 = arith.constant 0 : i32
    %c0_i32_1 = arith.constant 0 : i32
    return %c0_i32, %c0_i32_0 : i32, i32
  }
  func.func @transform_7(%arg0: i32) -> (i32, i32, i32) {
    %c0_i32 = arith.constant 0 : i32
    %c0_i32_0 = arith.constant 0 : i32
    %c0_i32_1 = arith.constant 0 : i32
    %c0_i32_2 = arith.constant 0 : i32
    return %c0_i32, %c0_i32_0, %c0_i32_1 : i32, i32, i32
  }
  func.func @transform_8(%arg0: i32) -> (i32, i32) {
    %c0_i32 = arith.constant 0 : i32
    %c0_i32_0 = arith.constant 0 : i32
    %c0_i32_1 = arith.constant 0 : i32
    return %c0_i32, %c0_i32_0 : i32, i32
  }
  func.func @transform_9(%arg0: i32) -> (i32, i32, i32) {
    %c0_i32 = arith.constant 0 : i32
    %c0_i32_0 = arith.constant 0 : i32
    %c0_i32_1 = arith.constant 0 : i32
    %c0_i32_2 = arith.constant 0 : i32
    return %c0_i32, %c0_i32_0, %c0_i32_1 : i32, i32, i32
  }
  func.func @transform_10(%arg0: i32) -> (i32, i32) {
    %c0_i32 = arith.constant 0 : i32
    %c0_i32_0 = arith.constant 0 : i32
    %c0_i32_1 = arith.constant 0 : i32
    return %c0_i32, %c0_i32_0 : i32, i32
  }
  func.func @transform_11(%arg0: i32) -> (i32, i32) {
    %c0_i32 = arith.constant 0 : i32
    %c0_i32_0 = arith.constant 0 : i32
    %c0_i32_1 = arith.constant 0 : i32
    return %c0_i32, %c0_i32_0 : i32, i32
  }
  func.func @transform_12(%arg0: i32) -> (i32, i32) {
    %c0_i32 = arith.constant 0 : i32
    %c0_i32_0 = arith.constant 0 : i32
    %c0_i32_1 = arith.constant 0 : i32
    return %c0_i32, %c0_i32_0 : i32, i32
  }
  func.func @transform_13(%arg0: i32) -> (i32, i32) {
    %c0_i32 = arith.constant 0 : i32
    %c0_i32_0 = arith.constant 0 : i32
    %c0_i32_1 = arith.constant 0 : i32
    return %c0_i32, %c0_i32_0 : i32, i32
  }
  func.func @transform_14(%arg0: i32) -> (i32, i32) {
    %c0_i32 = arith.constant 0 : i32
    %c0_i32_0 = arith.constant 0 : i32
    %c0_i32_1 = arith.constant 0 : i32
    return %c0_i32, %c0_i32_0 : i32, i32
  }
  func.func @transform_15(%arg0: i32) -> (i32, i32) {
    %c0_i32 = arith.constant 0 : i32
    %c0_i32_0 = arith.constant 0 : i32
    return %arg0, %c0_i32 : i32, i32
  }
}

</mosaic_0001>

<llo_original>
// kernel: tpu_custom_call.1
$region0: #{tpu_custom_call.1}
  #allocation0 [shape = 'u32[]', space=smem, size = 0x4, offset = 0x4, fixed_abs, tag = 'smem constant byte address 0x4 - core index']
  #allocation1 [shape = 'u32[144,128]{1,0:T(1,128)}', space=vmem, size = 0x12000, scoped, tag = 'internal scratch']
  #allocation2 [shape = 'f32[72,32]{1,0:T(8,128)}', space=vmem, size = 0x9000, scoped, tag = 'scratch operand']
  %s0 = inlined_call_operand.vmem [shape: f32[8,16], index: 0, kind: input, shape index: {}]
  %s1 = inlined_call_operand.hbm [shape: f32[16,288], index: 1, kind: input, shape index: {}]
  %s2 = inlined_call_operand.hbm [shape: f32[1,288], index: 2, kind: input, shape index: {}]
  %s3 = inlined_call_operand.vmem [shape: f32[32,32], index: 3, kind: input, shape index: {}]
  %s4 = inlined_call_operand.vmem [shape: f32[1,32], index: 4, kind: input, shape index: {}]
  %s5 = inlined_call_operand.hbm [shape: f32[3,72,72], index: 5, kind: input, shape index: {}]
  %s6 = inlined_call_operand.hbm [shape: f32[72,72], index: 6, kind: input, shape index: {}]
  %s7 = inlined_call_operand.hbm [shape: f32[3,32,32], index: 7, kind: input, shape index: {}]
  %s8 = inlined_call_operand.vmem [shape: f32[3,32], index: 8, kind: input, shape index: {}]
  %s9 = inlined_call_operand.hbm [shape: f32[3,32,96], index: 9, kind: input, shape index: {}]
  %s10 = inlined_call_operand.vmem [shape: f32[3,96], index: 10, kind: input, shape index: {}]
  %s11 = inlined_call_operand.vmem [shape: f32[3,32], index: 11, kind: input, shape index: {}]
  %s12 = inlined_call_operand.vmem [shape: f32[3,32], index: 12, kind: input, shape index: {}]
  %s13 = inlined_call_operand.vmem [shape: f32[32,4], index: 13, kind: input, shape index: {}]
  %s14 = inlined_call_operand.vmem [shape: f32[1,4], index: 14, kind: input, shape index: {}]
  %s15 = inlined_call_operand.vmem [shape: f32[8,4], index: 15, kind: output, shape index: {}]
  %s16 = sld [smem:[#allocation0]]
  $region94: #{tpu_custom_call.1} parent=0
    _
  %s18 = ssub.s32 1, %s16
  %s19 = scalar_select 0, %s18, %s16
  $region1: #{tpu_custom_call.1} parent=0
    #allocation3 [shape = 'u8[24576]{0}', space=vmem, size = 0x6000, scoped, tag = 'input window, operand 1, single buffered']
    #allocation4 [shape = 's32[1]{0}', space=sflag, size = 0x4, scoped, tag = 'scoped memory for tpu_custom_call.1']
    #allocation5 [shape = 'u8[1536]{0}', space=vmem, size = 0x800, scoped, tag = 'input window, operand 2, single buffered']
    #allocation6 [shape = 's32[1]{0}', space=sflag, size = 0x4, scoped, tag = 'scoped memory for tpu_custom_call.1']
    #allocation7 [shape = 'u8[110592]{0}', space=vmem, size = 0x1b000, scoped, tag = 'input window, operand 5, single buffered']
    #allocation8 [shape = 'u8[36864]{0}', space=vmem, size = 0x9000, scoped, tag = 'input window, operand 6, single buffered']
    #allocation9 [shape = 's32[1]{0}', space=sflag, size = 0x4, scoped, tag = 'scoped memory for tpu_custom_call.1']
    #allocation10 [shape = 'u8[49152]{0}', space=vmem, size = 0xc000, scoped, tag = 'input window, operand 7, single buffered']
    #allocation11 [shape = 'u8[49152]{0}', space=vmem, size = 0xc000, scoped, tag = 'input window, operand 9, single buffered']
    #allocation12 [shape = 's32[1]{0}', space=sflag, size = 0x4, scoped, tag = 'scoped memory for tpu_custom_call.1']
    %20 = vsyncpa [#allocation4], 0
    %21 = vsyncpa [#allocation6], 0
    %22 = vsyncpa [#allocation9], 0
    %23 = vsyncpa [#allocation12], 0
    // Predicated region
    $region2: #{tpu_custom_call.1} parent=1 // pred_check
      _
    $region3: #{tpu_custom_call.1} parent=1 // pred_check_branch
      %25 = sbr.rel (0) target = $region5
    $region4: #{tpu_custom_call.1} parent=1 // pred_region
      _
    $region5: #{tpu_custom_call.1} parent=1 // pred_fallthru
      _
    // Predicated region
    $region6: #{tpu_custom_call.1} parent=1 // pred_check
      _
    $region7: #{tpu_custom_call.1} parent=1 // pred_check_branch
      %27 = sbr.rel (0) target = $region9
    $region8: #{tpu_custom_call.1} parent=1 // pred_region
      %s29 = ssub.s32 768, 768
      %30 = vsyncadd [#allocation4], %s29
      %s31 = sshll.u32 [#allocation3], 4
      %s32 = int_to_ptr.vmem [resolvable:$true] %s31
      %37 = dma.hbm_to_vmem [thread:$0]  %s1, 768, %s32, [#allocation4], 384, 384, 24
    $region9: #{tpu_custom_call.1} parent=1 // pred_fallthru
      _
    // Predicated region
    $region10: #{tpu_custom_call.1} parent=1 // pred_check
      _
    $region11: #{tpu_custom_call.1} parent=1 // pred_check_branch
      %39 = sbr.rel (0) target = $region13
    $region12: #{tpu_custom_call.1} parent=1 // pred_region
      %s41 = ssub.s32 48, 48
      %42 = vsyncadd [#allocation6], %s41
      %s44 = sshll.u32 [#allocation5], 4
      %s45 = int_to_ptr.vmem [resolvable:$true] %s44
      %47 = dma.hbm_to_vmem [thread:$0]  %s2, 48, %s45, [#allocation6]
    $region13: #{tpu_custom_call.1} parent=1 // pred_fallthru
      _
    // Predicated region
    $region14: #{tpu_custom_call.1} parent=1 // pred_check
      _
    $region15: #{tpu_custom_call.1} parent=1 // pred_check_branch
      %49 = sbr.rel (0) target = $region17
    $region16: #{tpu_custom_call.1} parent=1 // pred_region
      _
    $region17: #{tpu_custom_call.1} parent=1 // pred_fallthru
      _
    // Predicated region
    $region18: #{tpu_custom_call.1} parent=1 // pred_check
      _
    $region19: #{tpu_custom_call.1} parent=1 // pred_check_branch
      %51 = sbr.rel (0) target = $region21
    $region20: #{tpu_custom_call.1} parent=1 // pred_region
      _
    $region21: #{tpu_custom_call.1} parent=1 // pred_fallthru
      _
    // Predicated region
    $region22: #{tpu_custom_call.1} parent=1 // pred_check
      _
    $region23: #{tpu_custom_call.1} parent=1 // pred_check_branch
      %53 = sbr.rel (0) target = $region25
    $region24: #{tpu_custom_call.1} parent=1 // pred_region
      %s55 = ssub.s32 3456, 3456
      %56 = vsyncadd [#allocation6], %s55
      %s57 = sshll.u32 [#allocation7], 4
      %s58 = int_to_ptr.vmem [resolvable:$true] %s57
      %63 = dma.hbm_to_vmem [thread:$0]  %s5, 3456, %s58, [#allocation6], 128, 128, 8
    $region25: #{tpu_custom_call.1} parent=1 // pred_fallthru
      _
    // Predicated region
    $region26: #{tpu_custom_call.1} parent=1 // pred_check
      _
    $region27: #{tpu_custom_call.1} parent=1 // pred_check_branch
      %65 = sbr.rel (0) target = $region29
    $region28: #{tpu_custom_call.1} parent=1 // pred_region
      %s67 = ssub.s32 1152, 1152
      %68 = vsyncadd [#allocation9], %s67
      %s69 = sshll.u32 [#allocation8], 4
      %s70 = int_to_ptr.vmem [resolvable:$true] %s69
      %75 = dma.hbm_to_vmem [thread:$0]  %s6, 1152, %s70, [#allocation9], 128, 128, 8
    $region29: #{tpu_custom_call.1} parent=1 // pred_fallthru
      _
    // Predicated region
    $region30: #{tpu_custom_call.1} parent=1 // pred_check
      _
    $region31: #{tpu_custom_call.1} parent=1 // pred_check_branch
      %77 = sbr.rel (0) target = $region33
    $region32: #{tpu_custom_call.1} parent=1 // pred_region
      %s79 = ssub.s32 1536, 1536
      %80 = vsyncadd [#allocation9], %s79
      %s81 = sshll.u32 [#allocation10], 4
      %s82 = int_to_ptr.vmem [resolvable:$true] %s81
      %87 = dma.hbm_to_vmem [thread:$0]  %s7, 1536, %s82, [#allocation9], 128, 128, 8
    $region33: #{tpu_custom_call.1} parent=1 // pred_fallthru
      _
    // Predicated region
    $region34: #{tpu_custom_call.1} parent=1 // pred_check
      _
    $region35: #{tpu_custom_call.1} parent=1 // pred_check_branch
      %89 = sbr.rel (0) target = $region37
    $region36: #{tpu_custom_call.1} parent=1 // pred_region
      _
    $region37: #{tpu_custom_call.1} parent=1 // pred_fallthru
      _
    // Predicated region
    $region38: #{tpu_custom_call.1} parent=1 // pred_check
      _
    $region39: #{tpu_custom_call.1} parent=1 // pred_check_branch
      %91 = sbr.rel (0) target = $region41
    $region40: #{tpu_custom_call.1} parent=1 // pred_region
      %s93 = ssub.s32 1536, 1536
      %94 = vsyncadd [#allocation12], %s93
      %s95 = sshll.u32 [#allocation11], 4
      %s96 = int_to_ptr.vmem [resolvable:$true] %s95
      %101 = dma.hbm_to_vmem [thread:$0]  %s9, 1536, %s96, [#allocation12], 128, 128, 8
    $region41: #{tpu_custom_call.1} parent=1 // pred_fallthru
      _
    // Predicated region
    $region42: #{tpu_custom_call.1} parent=1 // pred_check
      _
    $region43: #{tpu_custom_call.1} parent=1 // pred_check_branch
      %103 = sbr.rel (0) target = $region45
    $region44: #{tpu_custom_call.1} parent=1 // pred_region
      _
    $region45: #{tpu_custom_call.1} parent=1 // pred_fallthru
      _
    // Predicated region
    $region46: #{tpu_custom_call.1} parent=1 // pred_check
      _
    $region47: #{tpu_custom_call.1} parent=1 // pred_check_branch
      %105 = sbr.rel (0) target = $region49
    $region48: #{tpu_custom_call.1} parent=1 // pred_region
      _
    $region49: #{tpu_custom_call.1} parent=1 // pred_fallthru
      _
    // Predicated region
    $region50: #{tpu_custom_call.1} parent=1 // pred_check
      _
    $region51: #{tpu_custom_call.1} parent=1 // pred_check_branch
      %107 = sbr.rel (0) target = $region53
    $region52: #{tpu_custom_call.1} parent=1 // pred_region
      _
    $region53: #{tpu_custom_call.1} parent=1 // pred_fallthru
      _
    // Predicated region
    $region54: #{tpu_custom_call.1} parent=1 // pred_check
      _
    $region55: #{tpu_custom_call.1} parent=1 // pred_check_branch
      %109 = sbr.rel (0) target = $region57
    $region56: #{tpu_custom_call.1} parent=1 // pred_region
      _
    $region57: #{tpu_custom_call.1} parent=1 // pred_fallthru
      _
    // Predicated region
    $region58: #{tpu_custom_call.1} parent=1 // pred_check
      _
    $region59: #{tpu_custom_call.1} parent=1 // pred_check_branch
      %111 = sbr.rel (0) target = $region61
    $region60: #{tpu_custom_call.1} parent=1 // pred_region
      _
    $region61: #{tpu_custom_call.1} parent=1 // pred_fallthru
      _
    // Predicated region
    $region62: #{tpu_custom_call.1} parent=1 // pred_check
      _
    $region63: #{tpu_custom_call.1} parent=1 // pred_check_branch
      %113 = sbr.rel (0) target = $region65
    $region64: #{tpu_custom_call.1} parent=1 // pred_region
      %114 = dma.done [#allocation4], 768
    $region65: #{tpu_custom_call.1} parent=1 // pred_fallthru
      _
    // Predicated region
    $region66: #{tpu_custom_call.1} parent=1 // pred_check
      _
    $region67: #{tpu_custom_call.1} parent=1 // pred_check_branch
      %116 = sbr.rel (0) target = $region69
    $region68: #{tpu_custom_call.1} parent=1 // pred_region
      %117 = dma.done [#allocation6], 48
    $region69: #{tpu_custom_call.1} parent=1 // pred_fallthru
      _
    // Predicated region
    $region70: #{tpu_custom_call.1} parent=1 // pred_check
      _
    $region71: #{tpu_custom_call.1} parent=1 // pred_check_branch
      %119 = sbr.rel (0) target = $region73
    $region72: #{tpu_custom_call.1} parent=1 // pred_region
      %120 = dma.done [#allocation6], 3456
    $region73: #{tpu_custom_call.1} parent=1 // pred_fallthru
      _
    // Predicated region
    $region74: #{tpu_custom_call.1} parent=1 // pred_check
      _
    $region75: #{tpu_custom_call.1} parent=1 // pred_check_branch
      %122 = sbr.rel (0) target = $region77
    $region76: #{tpu_custom_call.1} parent=1 // pred_region
      %123 = dma.done [#allocation9], 1152
    $region77: #{tpu_custom_call.1} parent=1 // pred_fallthru
      _
    // Predicated region
    $region78: #{tpu_custom_call.1} parent=1 // pred_check
      _
    $region79: #{tpu_custom_call.1} parent=1 // pred_check_branch
      %125 = sbr.rel (0) target = $region81
    $region80: #{tpu_custom_call.1} parent=1 // pred_region
      %126 = dma.done [#allocation9], 1536
    $region81: #{tpu_custom_call.1} parent=1 // pred_fallthru
      _
    // Predicated region
    $region82: #{tpu_custom_call.1} parent=1 // pred_check
      _
    $region83: #{tpu_custom_call.1} parent=1 // pred_check_branch
      %128 = sbr.rel (0) target = $region85
    $region84: #{tpu_custom_call.1} parent=1 // pred_region
      %129 = dma.done [#allocation12], 1536
    $region85: #{tpu_custom_call.1} parent=1 // pred_fallthru
      _
    %v130 = vld [vmem:[%s0] sm:$0xff]
    %v131 = vld [vmem:[#allocation3] sm:$0xff]
    %v132 = vld [vmem:[#allocation3 + $0x8] sm:$0xff]
    %v133 = vld [vmem:[#allocation3 + $0x10] sm:$0xff]
    %v134 = vld [vmem:[#allocation3 + $0x18] sm:$0xff]
    %v135 = vld [vmem:[#allocation3 + $0x20] sm:$0xff]
    %v136 = vld [vmem:[#allocation3 + $0x28] sm:$0xff]
    %v137 = vld [vmem:[#allocation5] sm:$0x7]
    %v139 = vlaneseq
    %v140 = vshrl.u32 %v139, 7
    %v141 = vsub.s32 0, %v140
    %v142 = vrot.slane %v137, %v141
    %v143 = vlaneseq
    %v144 = vshrl.u32 %v143, 7
    %v145 = vsub.s32 1, %v144
    %v146 = vrot.slane %v137, %v145
    %v147 = vlaneseq
    %v148 = vshrl.u32 %v147, 7
    %v149 = vsub.s32 2, %v148
    %v150 = vrot.slane %v137, %v149
    %vm154 = vcmask 130048
    %v156 = vsel %vm154, %v130, 0
    %158 = vmatprep.subr.mxu0 %v132
    %159 = vmatpush1.msra.mxu0 %v131
    %160 = vmatprep.subr.mxu0 %v135
    %161 = vmatpush1.msra.mxu0 %v134
    %162 = vmatprep.subr.mxu0 0.0
    %163 = vmatpush1.msra.mxu0 0.0
    %164 = vmatprep.subr.mxu0 0.0
    %165 = vmatpush1.msra.mxu0 0.0
    %166 = vmatprep.subr.mxu0 0.0
    %167 = vmatpush1.msra.mxu0 0.0
    %168 = vmatprep.subr.mxu0 0.0
    %169 = vmatpush1.msra.mxu0 0.0
    %170 = vmatprep.subr.mxu0 0.0
    %171 = vmatpush1.msra.mxu0 0.0
    %172 = vmatprep.subr.mxu0 0.0
    %173 = vmatpush1.msra.mxu0 0.0
    %174 = vmatprep.subr.mxu0 0.0
    %175 = vmatpush1.msra.mxu0 0.0
    %176 = vmatprep.subr.mxu0 0.0
    %177 = vmatpush1.msra.mxu0 0.0
    %178 = vmatprep.subr.mxu0 0.0
    %179 = vmatpush1.msra.mxu0 0.0
    %180 = vmatprep.subr.mxu0 0.0
    %181 = vmatpush1.msra.mxu0 0.0
    %182 = vmatprep.subr.mxu0 0.0
    %183 = vmatpush1.msra.mxu0 0.0
    %184 = vmatprep.subr.mxu0 0.0
    %185 = vmatpush1.msra.mxu0 0.0
    %186 = vmatprep.subr.mxu0 0.0
    %187 = vmatpush1.msra.mxu0 0.0
    %188 = vmatprep.subr.mxu0 0.0
    %189 = vmatpush1.msra.mxu0 0.0
    %190 = vmatprep.subr.mxu0 0.0
    %191 = vmatpush1.msra.mxu0 0.0
    %192 = vmatprep.subr.mxu0 0.0
    %193 = vmatpush1.msra.mxu0 0.0
    %194 = vmatprep.subr.mxu0 0.0
    %195 = vmatpush1.msra.mxu0 0.0
    %196 = vmatprep.subr.mxu0 0.0
    %197 = vmatpush1.msra.mxu0 0.0
    %198 = vmatprep.subr.mxu0 0.0
    %199 = vmatpush1.msra.mxu0 0.0
    %200 = vmatprep.subr.mxu0 0.0
    %201 = vmatpush1.msra.mxu0 0.0
    %202 = vmatprep.subr.mxu0 0.0
    %203 = vmatpush1.msra.mxu0 0.0
    %204 = vmatprep.subr.mxu0 0.0
    %205 = vmatpush1.msra.mxu0 0.0
    %206 = vmatprep.subr.mxu0 0.0
    %207 = vmatpush1.msra.mxu0 0.0
    %208 = vmatprep.subr.mxu0 0.0
    %209 = vmatpush1.msra.mxu0 0.0
    %210 = vmatprep.subr.mxu0 0.0
    %211 = vmatpush1.msra.mxu0 0.0
    %212 = vmatprep.subr.mxu0 0.0
    %213 = vmatpush1.msra.mxu0 0.0
    %214 = vmatprep.subr.mxu0 0.0
    %215 = vmatpush1.msra.mxu0 0.0
    %216 = vmatprep.subr.mxu0 0.0
    %217 = vmatpush1.msra.mxu0 0.0
    %218 = vmatprep.subr.mxu0 0.0
    %219 = vmatpush1.msra.mxu0 0.0
    %220 = vmatprep.subr.mxu0 0.0
    %221 = vmatpush1.msra.mxu0 0.0
    %222 = vmatprep.mubr.f32.mxu0 0.0
    %223 = vmatmul.mubr.f32.gmra.mrb[0].mxu0 %v156
    %v224 = vpop.f32.mrb[0].mxu0
    %v225 = vadd.f32 %v142, %v224
    %v226 = vpop.f32.mrb[0].mxu0
    %v227 = vadd.f32 %v146, %v226
    %228 = vdwg.mxu0
    %229 = vmatprep.subr.mxu0 0.0
    %230 = vmatpush1.msra.mxu0 %v133
    %231 = vmatprep.subr.mxu0 0.0
    %232 = vmatpush1.msra.mxu0 %v136
    %233 = vmatprep.subr.mxu0 0.0
    %234 = vmatpush1.msra.mxu0 0.0
    %235 = vmatprep.subr.mxu0 0.0
    %236 = vmatpush1.msra.mxu0 0.0
    %237 = vmatprep.subr.mxu0 0.0
    %238 = vmatpush1.msra.mxu0 0.0
    %239 = vmatprep.subr.mxu0 0.0
    %240 = vmatpush1.msra.mxu0 0.0
    %241 = vmatprep.subr.mxu0 0.0
    %242 = vmatpush1.msra.mxu0 0.0
    %243 = vmatprep.subr.mxu0 0.0
    %244 = vmatpush1.msra.mxu0 0.0
    %245 = vmatprep.subr.mxu0 0.0
    %246 = vmatpush1.msra.mxu0 0.0
    %247 = vmatprep.subr.mxu0 0.0
    %248 = vmatpush1.msra.mxu0 0.0
    %249 = vmatprep.subr.mxu0 0.0
    %250 = vmatpush1.msra.mxu0 0.0
    %251 = vmatprep.subr.mxu0 0.0
    %252 = vmatpush1.msra.mxu0 0.0
    %253 = vmatprep.subr.mxu0 0.0
    %254 = vmatpush1.msra.mxu0 0.0
    %255 = vmatprep.subr.mxu0 0.0
    %256 = vmatpush1.msra.mxu0 0.0
    %257 = vmatprep.subr.mxu0 0.0
    %258 = vmatpush1.msra.mxu0 0.0
    %259 = vmatprep.subr.mxu0 0.0
    %260 = vmatpush1.msra.mxu0 0.0
    %261 = vmatprep.subr.mxu0 0.0
    %262 = vmatpush1.msra.mxu0 0.0
    %263 = vmatprep.subr.mxu0 0.0
    %264 = vmatpush1.msra.mxu0 0.0
    %265 = vmatprep.subr.mxu0 0.0
    %266 = vmatpush1.msra.mxu0 0.0
    %267 = vmatprep.subr.mxu0 0.0
    %268 = vmatpush1.msra.mxu0 0.0
    %269 = vmatprep.subr.mxu0 0.0
    %270 = vmatpush1.msra.mxu0 0.0
    %271 = vmatprep.subr.mxu0 0.0
    %272 = vmatpush1.msra.mxu0 0.0
    %273 = vmatprep.subr.mxu0 0.0
    %274 = vmatpush1.msra.mxu0 0.0
    %275 = vmatprep.subr.mxu0 0.0
    %276 = vmatpush1.msra.mxu0 0.0
    %277 = vmatprep.subr.mxu0 0.0
    %278 = vmatpush1.msra.mxu0 0.0
    %279 = vmatprep.subr.mxu0 0.0
    %280 = vmatpush1.msra.mxu0 0.0
    %281 = vmatprep.subr.mxu0 0.0
    %282 = vmatpush1.msra.mxu0 0.0
    %283 = vmatprep.subr.mxu0 0.0
    %284 = vmatpush1.msra.mxu0 0.0
    %285 = vmatprep.subr.mxu0 0.0
    %286 = vmatpush1.msra.mxu0 0.0
    %287 = vmatprep.subr.mxu0 0.0
    %288 = vmatpush1.msra.mxu0 0.0
    %289 = vmatprep.subr.mxu0 0.0
    %290 = vmatpush1.msra.mxu0 0.0
    %291 = vmatprep.subr.mxu0 0.0
    %292 = vmatpush1.msra.mxu0 0.0
    %293 = vmatprep.mubr.f32.mxu0 0.0
    %294 = vmatmul.mubr.f32.gmra.mrb[0].mxu0 %v156
    %v295 = vpop.f32.mrb[0].mxu0
    %v296 = vadd.f32 %v150, %v295
    %v297 = vpop.f32.mrb[0].mxu0
    %298 = vdwg.mxu0
    %vm299 = vcmp.gt.f32.partialorder %v225, 0.0
    %vm300 = vcmp.gt.f32.partialorder %v227, 0.0
    %vm301 = vcmp.gt.f32.partialorder %v296, 0.0
    %v302 = vmul.f32 %v225, 0.01
    %v303 = vmul.f32 %v227, 0.01
    %v304 = vmul.f32 %v296, 0.01
    %v305 = vsel %vm299, %v225, %v302
    %v306 = vsel %vm300, %v227, %v303
    %v307 = vsel %vm301, %v296, %v304
    %vm308 = vcmask 261120
    %309 = vst.msk [vmem:[#allocation2] sm:$0xff] %vm308, %v305
    %311 = vrot.lane.b32.xlu0 %v305, 96
    %v312 = vpop.permute.xlu0 %311
    %314 = vst.msk [vmem:[#allocation2 + $0x8] sm:$0xff] %vm308, %v312
    %315 = vrot.lane.b32.xlu0 %v305, 64
    %v316 = vpop.permute.xlu0 %315
    %318 = vst.msk [vmem:[#allocation2 + $0x10] sm:$0xff] %vm308, %v316
    %319 = vrot.lane.b32.xlu0 %v305, 32
    %v320 = vpop.permute.xlu0 %319
    %322 = vst.msk [vmem:[#allocation2 + $0x18] sm:$0xff] %vm308, %v320
    %323 = vst.msk [vmem:[#allocation2 + $0x20] sm:$0xff] %vm308, %v306
    %325 = vrot.lane.b32.xlu0 %v306, 96
    %v326 = vpop.permute.xlu0 %325
    %328 = vst.msk [vmem:[#allocation2 + $0x28] sm:$0xff] %vm308, %v326
    %329 = vrot.lane.b32.xlu0 %v306, 64
    %v330 = vpop.permute.xlu0 %329
    %332 = vst.msk [vmem:[#allocation2 + $0x30] sm:$0xff] %vm308, %v330
    %333 = vrot.lane.b32.xlu0 %v306, 32
    %v334 = vpop.permute.xlu0 %333
    %336 = vst.msk [vmem:[#allocation2 + $0x38] sm:$0xff] %vm308, %v334
    %337 = vst.msk [vmem:[#allocation2 + $0x40] sm:$0xff] %vm308, %v307
    %v338 = vld [vmem:[#allocation2] sm:$0xff]
    %v339 = vld [vmem:[#allocation2 + $0x8] sm:$0xff]
    %v340 = vld [vmem:[#allocation2 + $0x10] sm:$0xff]
    %v341 = vld [vmem:[#allocation2 + $0x18] sm:$0xff]
    %v342 = vld [vmem:[#allocation2 + $0x20] sm:$0xff]
    %v343 = vld [vmem:[#allocation2 + $0x28] sm:$0xff]
    %v344 = vld [vmem:[#allocation2 + $0x30] sm:$0xff]
    %v345 = vld [vmem:[#allocation2 + $0x38] sm:$0xff]
    %v346 = vld [vmem:[#allocation2 + $0x40] sm:$0xff]
    %v347 = vld [vmem:[%s3] sm:$0xff]
    %v348 = vld [vmem:[%s3 + $0x8] sm:$0xff]
    %v349 = vld [vmem:[%s3 + $0x10] sm:$0xff]
    %v350 = vld [vmem:[%s3 + $0x18] sm:$0xff]
    %v351 = vld [vmem:[%s4] sm:$0x1]
    %v353 = vlaneseq
    %v354 = vshrl.u32 %v353, 7
    %v355 = vsub.s32 0, %v354
    %v356 = vrot.slane %v351, %v355
    %v359 = vsel %vm308, %v338, 0
    %v362 = vsel %vm308, %v339, 0
    %v365 = vsel %vm308, %v340, 0
    %v368 = vsel %vm308, %v341, 0
    %v371 = vsel %vm308, %v342, 0
    %v374 = vsel %vm308, %v343, 0
    %v377 = vsel %vm308, %v344, 0
    %v380 = vsel %vm308, %v345, 0
    %v383 = vsel %vm308, %v346, 0
    %385 = vmatprep.subr.mxu0 0.0
    %386 = vmatpush1.msra.mxu0 %v347
    %387 = vmatprep.subr.mxu0 0.0
    %388 = vmatpush1.msra.mxu0 %v348
    %389 = vmatprep.subr.mxu0 0.0
    %390 = vmatpush1.msra.mxu0 %v349
    %391 = vmatprep.subr.mxu0 0.0
    %392 = vmatpush1.msra.mxu0 %v350
    %393 = vmatprep.subr.mxu0 0.0
    %394 = vmatpush1.msra.mxu0 0.0
    %395 = vmatprep.subr.mxu0 0.0
    %396 = vmatpush1.msra.mxu0 0.0
    %397 = vmatprep.subr.mxu0 0.0
    %398 = vmatpush1.msra.mxu0 0.0
    %399 = vmatprep.subr.mxu0 0.0
    %400 = vmatpush1.msra.mxu0 0.0
    %401 = vmatprep.subr.mxu0 0.0
    %402 = vmatpush1.msra.mxu0 0.0
    %403 = vmatprep.subr.mxu0 0.0
    %404 = vmatpush1.msra.mxu0 0.0
    %405 = vmatprep.subr.mxu0 0.0
    %406 = vmatpush1.msra.mxu0 0.0
    %407 = vmatprep.subr.mxu0 0.0
    %408 = vmatpush1.msra.mxu0 0.0
    %409 = vmatprep.subr.mxu0 0.0
    %410 = vmatpush1.msra.mxu0 0.0
    %411 = vmatprep.subr.mxu0 0.0
    %412 = vmatpush1.msra.mxu0 0.0
    %413 = vmatprep.subr.mxu0 0.0
    %414 = vmatpush1.msra.mxu0 0.0
    %415 = vmatprep.subr.mxu0 0.0
    %416 = vmatpush1.msra.mxu0 0.0
    %417 = vmatprep.subr.mxu0 0.0
    %418 = vmatpush1.msra.mxu0 0.0
    %419 = vmatprep.subr.mxu0 0.0
    %420 = vmatpush1.msra.mxu0 0.0
    %421 = vmatprep.subr.mxu0 0.0
    %422 = vmatpush1.msra.mxu0 0.0
    %423 = vmatprep.subr.mxu0 0.0
    %424 = vmatpush1.msra.mxu0 0.0
    %425 = vmatprep.subr.mxu0 0.0
    %426 = vmatpush1.msra.mxu0 0.0
    %427 = vmatprep.subr.mxu0 0.0
    %428 = vmatpush1.msra.mxu0 0.0
    %429 = vmatprep.subr.mxu0 0.0
    %430 = vmatpush1.msra.mxu0 0.0
    %431 = vmatprep.subr.mxu0 0.0
    %432 = vmatpush1.msra.mxu0 0.0
    %433 = vmatprep.subr.mxu0 0.0
    %434 = vmatpush1.msra.mxu0 0.0
    %435 = vmatprep.subr.mxu0 0.0
    %436 = vmatpush1.msra.mxu0 0.0
    %437 = vmatprep.subr.mxu0 0.0
    %438 = vmatpush1.msra.mxu0 0.0
    %439 = vmatprep.subr.mxu0 0.0
    %440 = vmatpush1.msra.mxu0 0.0
    %441 = vmatprep.subr.mxu0 0.0
    %442 = vmatpush1.msra.mxu0 0.0
    %443 = vmatprep.subr.mxu0 0.0
    %444 = vmatpush1.msra.mxu0 0.0
    %445 = vmatprep.subr.mxu0 0.0
    %446 = vmatpush1.msra.mxu0 0.0
    %447 = vmatprep.subr.mxu0 0.0
    %448 = vmatpush1.msra.mxu0 0.0
    %449 = vmatprep.mubr.f32.mxu0 0.0
    %450 = vmatmul.mubr.f32.gmra.mrb[0].mxu0 %v359
    %v451 = vpop.f32.mrb[0].mxu0
    %v452 = vadd.f32 %v356, %v451
    %v453 = vpop.f32.mrb[0].mxu0
    %454 = vmatprep.mubr.f32.mxu0 0.0
    %455 = vmatmul.mubr.f32.gmra.mrb[0].mxu0 %v362
    %v456 = vpop.f32.mrb[0].mxu0
    %v457 = vadd.f32 %v356, %v456
    %v458 = vpop.f32.mrb[0].mxu0
    %459 = vmatprep.mubr.f32.mxu0 0.0
    %460 = vmatmul.mubr.f32.gmra.mrb[0].mxu0 %v365
    %v461 = vpop.f32.mrb[0].mxu0
    %v462 = vadd.f32 %v356, %v461
    %v463 = vpop.f32.mrb[0].mxu0
    %464 = vmatprep.mubr.f32.mxu0 0.0
    %465 = vmatmul.mubr.f32.gmra.mrb[0].mxu0 %v368
    %v466 = vpop.f32.mrb[0].mxu0
    %v467 = vadd.f32 %v356, %v466
    %v468 = vpop.f32.mrb[0].mxu0
    %469 = vmatprep.mubr.f32.mxu0 0.0
    %470 = vmatmul.mubr.f32.gmra.mrb[0].mxu0 %v371
    %v471 = vpop.f32.mrb[0].mxu0
    %v472 = vadd.f32 %v356, %v471
    %v473 = vpop.f32.mrb[0].mxu0
    %474 = vmatprep.mubr.f32.mxu0 0.0
    %475 = vmatmul.mubr.f32.gmra.mrb[0].mxu0 %v374
    %v476 = vpop.f32.mrb[0].mxu0
    %v477 = vadd.f32 %v356, %v476
    %v478 = vpop.f32.mrb[0].mxu0
    %479 = vmatprep.mubr.f32.mxu0 0.0
    %480 = vmatmul.mubr.f32.gmra.mrb[0].mxu0 %v377
    %v481 = vpop.f32.mrb[0].mxu0
    %v482 = vadd.f32 %v356, %v481
    %v483 = vpop.f32.mrb[0].mxu0
    %484 = vmatprep.mubr.f32.mxu0 0.0
    %485 = vmatmul.mubr.f32.gmra.mrb[0].mxu0 %v380
    %v486 = vpop.f32.mrb[0].mxu0
    %v487 = vadd.f32 %v356, %v486
    %v488 = vpop.f32.mrb[0].mxu0
    %489 = vmatprep.mubr.f32.mxu0 0.0
    %490 = vmatmul.mubr.f32.gmra.mrb[0].mxu0 %v383
    %v491 = vpop.f32.mrb[0].mxu0
    %v492 = vadd.f32 %v356, %v491
    %v493 = vpop.f32.mrb[0].mxu0
    %494 = vdwg.mxu0
    %v495 = vtanh.pop %v452
    %v496 = vtanh.pop %v457
    %v497 = vtanh.pop %v462
    %v498 = vtanh.pop %v467
    %v499 = vtanh.pop %v472
    %v500 = vtanh.pop %v477
    %v501 = vtanh.pop %v482
    %v502 = vtanh.pop %v487
    %v503 = vtanh.pop %v492
    %v504 = vld [vmem:[#allocation8] sm:$0xff]
    %v505 = vld [vmem:[#allocation8 + $0x8] sm:$0xff]
    %v506 = vld [vmem:[#allocation8 + $0x10] sm:$0xff]
    %v507 = vld [vmem:[#allocation8 + $0x18] sm:$0xff]
    %v508 = vld [vmem:[#allocation8 + $0x20] sm:$0xff]
    %v509 = vld [vmem:[#allocation8 + $0x28] sm:$0xff]
    %v510 = vld [vmem:[#allocation8 + $0x30] sm:$0xff]
    %v511 = vld [vmem:[#allocation8 + $0x38] sm:$0xff]
    %v512 = vld [vmem:[#allocation8 + $0x40] sm:$0xff]
    %v513 = vld [vmem:[#allocation7] sm:$0xff]
    %v514 = vld [vmem:[#allocation7 + $0x8] sm:$0xff]
    %v515 = vld [vmem:[#allocation7 + $0x10] sm:$0xff]
    %v516 = vld [vmem:[#allocation7 + $0x18] sm:$0xff]
    %v517 = vld [vmem:[#allocation7 + $0x20] sm:$0xff]
    %v518 = vld [vmem:[#allocation7 + $0x28] sm:$0xff]
    %v519 = vld [vmem:[#allocation7 + $0x30] sm:$0xff]
    %v520 = vld [vmem:[#allocation7 + $0x38] sm:$0xff]
    %v521 = vld [vmem:[#allocation7 + $0x40] sm:$0xff]
    %vm522 = vcmask 588800
    %v524 = vsel %vm522, %v513, 0
    %v527 = vsel %vm522, %v514, 0
    %v530 = vsel %vm522, %v515, 0
    %v533 = vsel %vm522, %v516, 0
    %v536 = vsel %vm522, %v517, 0
    %v539 = vsel %vm522, %v518, 0
    %v542 = vsel %vm522, %v519, 0
    %v545 = vsel %vm522, %v520, 0
    %v548 = vsel %vm522, %v521, 0
    %550 = vmatprep.subr.mxu0 0.0
    %551 = vmatpush1.msra.mxu0 %v495
    %552 = vmatprep.subr.mxu0 0.0
    %553 = vmatpush1.msra.mxu0 %v496
    %554 = vmatprep.subr.mxu0 0.0
    %555 = vmatpush1.msra.mxu0 %v497
    %556 = vmatprep.subr.mxu0 0.0
    %557 = vmatpush1.msra.mxu0 %v498
    %558 = vmatprep.subr.mxu0 0.0
    %559 = vmatpush1.msra.mxu0 %v499
    %560 = vmatprep.subr.mxu0 0.0
    %561 = vmatpush1.msra.mxu0 %v500
    %562 = vmatprep.subr.mxu0 0.0
    %563 = vmatpush1.msra.mxu0 %v501
    %564 = vmatprep.subr.mxu0 0.0
    %565 = vmatpush1.msra.mxu0 %v502
    %566 = vmatprep.subr.mxu0 0.0
    %567 = vmatpush1.msra.mxu0 %v503
    %568 = vmatprep.subr.mxu0 0.0
    %569 = vmatpush1.msra.mxu0 0.0
    %570 = vmatprep.subr.mxu0 0.0
    %571 = vmatpush1.msra.mxu0 0.0
    %572 = vmatprep.subr.mxu0 0.0
    %573 = vmatpush1.msra.mxu0 0.0
    %574 = vmatprep.subr.mxu0 0.0
    %575 = vmatpush1.msra.mxu0 0.0
    %576 = vmatprep.subr.mxu0 0.0
    %577 = vmatpush1.msra.mxu0 0.0
    %578 = vmatprep.subr.mxu0 0.0
    %579 = vmatpush1.msra.mxu0 0.0
    %580 = vmatprep.subr.mxu0 0.0
    %581 = vmatpush1.msra.mxu0 0.0
    %582 = vmatprep.subr.mxu0 0.0
    %583 = vmatpush1.msra.mxu0 0.0
    %584 = vmatprep.subr.mxu0 0.0
    %585 = vmatpush1.msra.mxu0 0.0
    %586 = vmatprep.subr.mxu0 0.0
    %587 = vmatpush1.msra.mxu0 0.0
    %588 = vmatprep.subr.mxu0 0.0
    %589 = vmatpush1.msra.mxu0 0.0
    %590 = vmatprep.subr.mxu0 0.0
    %591 = vmatpush1.msra.mxu0 0.0
    %592 = vmatprep.subr.mxu0 0.0
    %593 = vmatpush1.msra.mxu0 0.0
    %594 = vmatprep.subr.mxu0 0.0
    %595 = vmatpush1.msra.mxu0 0.0
    %596 = vmatprep.subr.mxu0 0.0
    %597 = vmatpush1.msra.mxu0 0.0
    %598 = vmatprep.subr.mxu0 0.0
    %599 = vmatpush1.msra.mxu0 0.0
    %600 = vmatprep.subr.mxu0 0.0
    %601 = vmatpush1.msra.mxu0 0.0
    %602 = vmatprep.subr.mxu0 0.0
    %603 = vmatpush1.msra.mxu0 0.0
    %604 = vmatprep.subr.mxu0 0.0
    %605 = vmatpush1.msra.mxu0 0.0
    %606 = vmatprep.subr.mxu0 0.0
    %607 = vmatpush1.msra.mxu0 0.0
    %608 = vmatprep.subr.mxu0 0.0
    %609 = vmatpush1.msra.mxu0 0.0
    %610 = vmatprep.subr.mxu0 0.0
    %611 = vmatpush1.msra.mxu0 0.0
    %612 = vmatprep.subr.mxu0 0.0
    %613 = vmatpush1.msra.mxu0 0.0
    %614 = vmatprep.mubr.f32.mxu0 0.0
    %615 = vmatmul.mubr.f32.gmra.mrb[0].mxu0 %v524
    %v616 = vpop.f32.mrb[0].mxu0
    %v617 = vadd.f32 0.0, %v616
    %v618 = vpop.f32.mrb[0].mxu0
    %619 = vmatprep.mubr.f32.mxu0 0.0
    %620 = vmatmul.mubr.f32.gmra.mrb[0].mxu0 %v527
    %v621 = vpop.f32.mrb[0].mxu0
    %v622 = vadd.f32 0.0, %v621
    %v623 = vpop.f32.mrb[0].mxu0
    %624 = vmatprep.mubr.f32.mxu0 0.0
    %625 = vmatmul.mubr.f32.gmra.mrb[0].mxu0 %v530
    %v626 = vpop.f32.mrb[0].mxu0
    %v627 = vadd.f32 0.0, %v626
    %v628 = vpop.f32.mrb[0].mxu0
    %629 = vmatprep.mubr.f32.mxu0 0.0
    %630 = vmatmul.mubr.f32.gmra.mrb[0].mxu0 %v533
    %v631 = vpop.f32.mrb[0].mxu0
    %v632 = vadd.f32 0.0, %v631
    %v633 = vpop.f32.mrb[0].mxu0
    %634 = vmatprep.mubr.f32.mxu0 0.0
    %635 = vmatmul.mubr.f32.gmra.mrb[0].mxu0 %v536
    %v636 = vpop.f32.mrb[0].mxu0
    %v637 = vadd.f32 0.0, %v636
    %v638 = vpop.f32.mrb[0].mxu0
    %639 = vmatprep.mubr.f32.mxu0 0.0
    %640 = vmatmul.mubr.f32.gmra.mrb[0].mxu0 %v539
    %v641 = vpop.f32.mrb[0].mxu0
    %v642 = vadd.f32 0.0, %v641
    %v643 = vpop.f32.mrb[0].mxu0
    %644 = vmatprep.mubr.f32.mxu0 0.0
    %645 = vmatmul.mubr.f32.gmra.mrb[0].mxu0 %v542
    %v646 = vpop.f32.mrb[0].mxu0
    %v647 = vadd.f32 0.0, %v646
    %v648 = vpop.f32.mrb[0].mxu0
    %649 = vmatprep.mubr.f32.mxu0 0.0
    %650 = vmatmul.mubr.f32.gmra.mrb[0].mxu0 %v545
    %v651 = vpop.f32.mrb[0].mxu0
    %v652 = vadd.f32 0.0, %v651
    %v653 = vpop.f32.mrb[0].mxu0
    %654 = vmatprep.mubr.f32.mxu0 0.0
    %655 = vmatmul.mubr.f32.gmra.mrb[0].mxu0 %v548
    %v656 = vpop.f32.mrb[0].mxu0
    %v657 = vadd.f32 0.0, %v656
    %v658 = vpop.f32.mrb[0].mxu0
    %659 = vdwg.mxu0
    %v660 = vld [vmem:[#allocation10] sm:$0xff]
    %v661 = vld [vmem:[#allocation10 + $0x8] sm:$0xff]
    %v662 = vld [vmem:[#allocation10 + $0x10] sm:$0xff]
    %v663 = vld [vmem:[#allocation10 + $0x18] sm:$0xff]
    %v664 = vld [vmem:[%s8] sm:$0x1]
    %v665 = vlaneseq
    %v666 = vshrl.u32 %v665, 7
    %v667 = vsub.s32 0, %v666
    %v668 = vrot.slane %v664, %v667
    %v670 = vsel %vm308, %v617, 0
    %v673 = vsel %vm308, %v622, 0
    %v676 = vsel %vm308, %v627, 0
    %v679 = vsel %vm308, %v632, 0
    %v682 = vsel %vm308, %v637, 0
    %v685 = vsel %vm308, %v642, 0
    %v688 = vsel %vm308, %v647, 0
    %v691 = vsel %vm308, %v652, 0
    %v694 = vsel %vm308, %v657, 0
    %696 = vmatprep.subr.mxu0 0.0
    %697 = vmatpush1.msra.mxu0 %v660
    %698 = vmatprep.subr.mxu0 0.0
    %699 = vmatpush1.msra.mxu0 %v661
    %700 = vmatprep.subr.mxu0 0.0
    %701 = vmatpush1.msra.mxu0 %v662
    %702 = vmatprep.subr.mxu0 0.0
    %703 = vmatpush1.msra.mxu0 %v663
    %704 = vmatprep.subr.mxu0 0.0
    %705 = vmatpush1.msra.mxu0 0.0
    %706 = vmatprep.subr.mxu0 0.0
    %707 = vmatpush1.msra.mxu0 0.0
    %708 = vmatprep.subr.mxu0 0.0
    %709 = vmatpush1.msra.mxu0 0.0
    %710 = vmatprep.subr.mxu0 0.0
    %711 = vmatpush1.msra.mxu0 0.0
    %712 = vmatprep.subr.mxu0 0.0
    %713 = vmatpush1.msra.mxu0 0.0
    %714 = vmatprep.subr.mxu0 0.0
    %715 = vmatpush1.msra.mxu0 0.0
    %716 = vmatprep.subr.mxu0 0.0
    %717 = vmatpush1.msra.mxu0 0.0
    %718 = vmatprep.subr.mxu0 0.0
    %719 = vmatpush1.msra.mxu0 0.0
    %720 = vmatprep.subr.mxu0 0.0
    %721 = vmatpush1.msra.mxu0 0.0
    %722 = vmatprep.subr.mxu0 0.0
    %723 = vmatpush1.msra.mxu0 0.0
    %724 = vmatprep.subr.mxu0 0.0
    %725 = vmatpush1.msra.mxu0 0.0
    %726 = vmatprep.subr.mxu0 0.0
    %727 = vmatpush1.msra.mxu0 0.0
    %728 = vmatprep.subr.mxu0 0.0
    %729 = vmatpush1.msra.mxu0 0.0
    %730 = vmatprep.subr.mxu0 0.0
    %731 = vmatpush1.msra.mxu0 0.0
    %732 = vmatprep.subr.mxu0 0.0
    %733 = vmatpush1.msra.mxu0 0.0
    %734 = vmatprep.subr.mxu0 0.0
    %735 = vmatpush1.msra.mxu0 0.0
    %736 = vmatprep.subr.mxu0 0.0
    %737 = vmatpush1.msra.mxu0 0.0
    %738 = vmatprep.subr.mxu0 0.0
    %739 = vmatpush1.msra.mxu0 0.0
    %740 = vmatprep.subr.mxu0 0.0
    %741 = vmatpush1.msra.mxu0 0.0
    %742 = vmatprep.subr.mxu0 0.0
    %743 = vmatpush1.msra.mxu0 0.0
    %744 = vmatprep.subr.mxu0 0.0
    %745 = vmatpush1.msra.mxu0 0.0
    %746 = vmatprep.subr.mxu0 0.0
    %747 = vmatpush1.msra.mxu0 0.0
    %748 = vmatprep.subr.mxu0 0.0
    %749 = vmatpush1.msra.mxu0 0.0
    %750 = vmatprep.subr.mxu0 0.0
    %751 = vmatpush1.msra.mxu0 0.0
    %752 = vmatprep.subr.mxu0 0.0
    %753 = vmatpush1.msra.mxu0 0.0
    %754 = vmatprep.subr.mxu0 0.0
    %755 = vmatpush1.msra.mxu0 0.0
    %756 = vmatprep.subr.mxu0 0.0
    %757 = vmatpush1.msra.mxu0 0.0
    %758 = vmatprep.subr.mxu0 0.0
    %759 = vmatpush1.msra.mxu0 0.0
    %760 = vmatprep.mubr.f32.mxu0 0.0
    %761 = vmatmul.mubr.f32.gmra.mrb[0].mxu0 %v670
    %v762 = vpop.f32.mrb[0].mxu0
    %v763 = vadd.f32 %v668, %v762
    %v764 = vpop.f32.mrb[0].mxu0
    %765 = vmatprep.mubr.f32.mxu0 0.0
    %766 = vmatmul.mubr.f32.gmra.mrb[0].mxu0 %v673
    %v767 = vpop.f32.mrb[0].mxu0
    %v768 = vadd.f32 %v668, %v767
    %v769 = vpop.f32.mrb[0].mxu0
    %770 = vmatprep.mubr.f32.mxu0 0.0
    %771 = vmatmul.mubr.f32.gmra.mrb[0].mxu0 %v676
    %v772 = vpop.f32.mrb[0].mxu0
    %v773 = vadd.f32 %v668, %v772
    %v774 = vpop.f32.mrb[0].mxu0
    %775 = vmatprep.mubr.f32.mxu0 0.0
    %776 = vmatmul.mubr.f32.gmra.mrb[0].mxu0 %v679
    %v777 = vpop.f32.mrb[0].mxu0
    %v778 = vadd.f32 %v668, %v777
    %v779 = vpop.f32.mrb[0].mxu0
    %780 = vmatprep.mubr.f32.mxu0 0.0
    %781 = vmatmul.mubr.f32.gmra.mrb[0].mxu0 %v682
    %v782 = vpop.f32.mrb[0].mxu0
    %v783 = vadd.f32 %v668, %v782
    %v784 = vpop.f32.mrb[0].mxu0
    %785 = vmatprep.mubr.f32.mxu0 0.0
    %786 = vmatmul.mubr.f32.gmra.mrb[0].mxu0 %v685
    %v787 = vpop.f32.mrb[0].mxu0
    %v788 = vadd.f32 %v668, %v787
    %v789 = vpop.f32.mrb[0].mxu0
    %790 = vmatprep.mubr.f32.mxu0 0.0
    %791 = vmatmul.mubr.f32.gmra.mrb[0].mxu0 %v688
    %v792 = vpop.f32.mrb[0].mxu0
    %v793 = vadd.f32 %v668, %v792
    %v794 = vpop.f32.mrb[0].mxu0
    %795 = vmatprep.mubr.f32.mxu0 0.0
    %796 = vmatmul.mubr.f32.gmra.mrb[0].mxu0 %v691
    %v797 = vpop.f32.mrb[0].mxu0
    %v798 = vadd.f32 %v668, %v797
    %v799 = vpop.f32.mrb[0].mxu0
    %800 = vmatprep.mubr.f32.mxu0 0.0
    %801 = vmatmul.mubr.f32.gmra.mrb[0].mxu0 %v694
    %v802 = vpop.f32.mrb[0].mxu0
    %v803 = vadd.f32 %v668, %v802
    %v804 = vpop.f32.mrb[0].mxu0
    %805 = vdwg.mxu0
    %v806 = vtanh.pop %v763
    %v807 = vtanh.pop %v768
    %v808 = vtanh.pop %v773
    %v809 = vtanh.pop %v778
    %v810 = vtanh.pop %v783
    %v811 = vtanh.pop %v788
    %v812 = vtanh.pop %v793
    %v813 = vtanh.pop %v798
    %v814 = vtanh.pop %v803
    %v815 = vld [vmem:[#allocation11] sm:$0xff]
    %v816 = vld [vmem:[#allocation11 + $0x8] sm:$0xff]
    %v817 = vld [vmem:[#allocation11 + $0x10] sm:$0xff]
    %v818 = vld [vmem:[#allocation11 + $0x18] sm:$0xff]
    %v819 = vld [vmem:[%s10] sm:$0x1]
    %v820 = vlaneseq
    %v821 = vshrl.u32 %v820, 7
    %v822 = vsub.s32 0, %v821
    %v823 = vrot.slane %v819, %v822
    %v825 = vsel %vm308, %v806, 0
    %v828 = vsel %vm308, %v807, 0
    %v831 = vsel %vm308, %v808, 0
    %v834 = vsel %vm308, %v809, 0
    %v837 = vsel %vm308, %v810, 0
    %v840 = vsel %vm308, %v811, 0
    %v843 = vsel %vm308, %v812, 0
    %v846 = vsel %vm308, %v813, 0
    %v849 = vsel %vm308, %v814, 0
    %851 = vmatprep.subr.mxu0 0.0
    %852 = vmatpush1.msra.mxu0 %v815
    %853 = vmatprep.subr.mxu0 0.0
    %854 = vmatpush1.msra.mxu0 %v816
    %855 = vmatprep.subr.mxu0 0.0
    %856 = vmatpush1.msra.mxu0 %v817
    %857 = vmatprep.subr.mxu0 0.0
    %858 = vmatpush1.msra.mxu0 %v818
    %859 = vmatprep.subr.mxu0 0.0
    %860 = vmatpush1.msra.mxu0 0.0
    %861 = vmatprep.subr.mxu0 0.0
    %862 = vmatpush1.msra.mxu0 0.0
    %863 = vmatprep.subr.mxu0 0.0
    %864 = vmatpush1.msra.mxu0 0.0
    %865 = vmatprep.subr.mxu0 0.0
    %866 = vmatpush1.msra.mxu0 0.0
    %867 = vmatprep.subr.mxu0 0.0
    %868 = vmatpush1.msra.mxu0 0.0
    %869 = vmatprep.subr.mxu0 0.0
    %870 = vmatpush1.msra.mxu0 0.0
    %871 = vmatprep.subr.mxu0 0.0
    %872 = vmatpush1.msra.mxu0 0.0
    %873 = vmatprep.subr.mxu0 0.0
    %874 = vmatpush1.msra.mxu0 0.0
    %875 = vmatprep.subr.mxu0 0.0
    %876 = vmatpush1.msra.mxu0 0.0
    %877 = vmatprep.subr.mxu0 0.0
    %878 = vmatpush1.msra.mxu0 0.0
    %879 = vmatprep.subr.mxu0 0.0
    %880 = vmatpush1.msra.mxu0 0.0
    %881 = vmatprep.subr.mxu0 0.0
    %882 = vmatpush1.msra.mxu0 0.0
    %883 = vmatprep.subr.mxu0 0.0
    %884 = vmatpush1.msra.mxu0 0.0
    %885 = vmatprep.subr.mxu0 0.0
    %886 = vmatpush1.msra.mxu0 0.0
    %887 = vmatprep.subr.mxu0 0.0
    %888 = vmatpush1.msra.mxu0 0.0
    %889 = vmatprep.subr.mxu0 0.0
    %890 = vmatpush1.msra.mxu0 0.0
    %891 = vmatprep.subr.mxu0 0.0
    %892 = vmatpush1.msra.mxu0 0.0
    %893 = vmatprep.subr.mxu0 0.0
    %894 = vmatpush1.msra.mxu0 0.0
    %895 = vmatprep.subr.mxu0 0.0
    %896 = vmatpush1.msra.mxu0 0.0
    %897 = vmatprep.subr.mxu0 0.0
    %898 = vmatpush1.msra.mxu0 0.0
    %899 = vmatprep.subr.mxu0 0.0
    %900 = vmatpush1.msra.mxu0 0.0
    %901 = vmatprep.subr.mxu0 0.0
    %902 = vmatpush1.msra.mxu0 0.0
    %903 = vmatprep.subr.mxu0 0.0
    %904 = vmatpush1.msra.mxu0 0.0
    %905 = vmatprep.subr.mxu0 0.0
    %906 = vmatpush1.msra.mxu0 0.0
    %907 = vmatprep.subr.mxu0 0.0
    %908 = vmatpush1.msra.mxu0 0.0
    %909 = vmatprep.subr.mxu0 0.0
    %910 = vmatpush1.msra.mxu0 0.0
    %911 = vmatprep.subr.mxu0 0.0
    %912 = vmatpush1.msra.mxu0 0.0
    %913 = vmatprep.subr.mxu0 0.0
    %914 = vmatpush1.msra.mxu0 0.0
    %915 = vmatprep.mubr.f32.mxu0 0.0
    %916 = vmatmul.mubr.f32.gmra.mrb[0].mxu0 %v825
    %v917 = vpop.f32.mrb[0].mxu0
    %v918 = vadd.f32 %v823, %v917
    %v919 = vpop.f32.mrb[0].mxu0
    %920 = vmatprep.mubr.f32.mxu0 0.0
    %921 = vmatmul.mubr.f32.gmra.mrb[0].mxu0 %v828
    %v922 = vpop.f32.mrb[0].mxu0
    %v923 = vadd.f32 %v823, %v922
    %v924 = vpop.f32.mrb[0].mxu0
    %925 = vmatprep.mubr.f32.mxu0 0.0
    %926 = vmatmul.mubr.f32.gmra.mrb[0].mxu0 %v831
    %v927 = vpop.f32.mrb[0].mxu0
    %v928 = vadd.f32 %v823, %v927
    %v929 = vpop.f32.mrb[0].mxu0
    %930 = vmatprep.mubr.f32.mxu0 0.0
    %931 = vmatmul.mubr.f32.gmra.mrb[0].mxu0 %v834
    %v932 = vpop.f32.mrb[0].mxu0
    %v933 = vadd.f32 %v823, %v932
    %v934 = vpop.f32.mrb[0].mxu0
    %935 = vmatprep.mubr.f32.mxu0 0.0
    %936 = vmatmul.mubr.f32.gmra.mrb[0].mxu0 %v837
    %v937 = vpop.f32.mrb[0].mxu0
    %v938 = vadd.f32 %v823, %v937
    %v939 = vpop.f32.mrb[0].mxu0
    %940 = vmatprep.mubr.f32.mxu0 0.0
    %941 = vmatmul.mubr.f32.gmra.mrb[0].mxu0 %v840
    %v942 = vpop.f32.mrb[0].mxu0
    %v943 = vadd.f32 %v823, %v942
    %v944 = vpop.f32.mrb[0].mxu0
    %945 = vmatprep.mubr.f32.mxu0 0.0
    %946 = vmatmul.mubr.f32.gmra.mrb[0].mxu0 %v843
    %v947 = vpop.f32.mrb[0].mxu0
    %v948 = vadd.f32 %v823, %v947
    %v949 = vpop.f32.mrb[0].mxu0
    %950 = vmatprep.mubr.f32.mxu0 0.0
    %951 = vmatmul.mubr.f32.gmra.mrb[0].mxu0 %v846
    %v952 = vpop.f32.mrb[0].mxu0
    %v953 = vadd.f32 %v823, %v952
    %v954 = vpop.f32.mrb[0].mxu0
    %955 = vmatprep.mubr.f32.mxu0 0.0
    %956 = vmatmul.mubr.f32.gmra.mrb[0].mxu0 %v849
    %v957 = vpop.f32.mrb[0].mxu0
    %v958 = vadd.f32 %v823, %v957
    %v959 = vpop.f32.mrb[0].mxu0
    %960 = vdwg.mxu0
    %970 = vrot.lane.b32.xlu0 %v918, 96
    %v971 = vpop.permute.xlu0 %970
    %972 = vrot.lane.b32.xlu0 %v923, 96
    %v973 = vpop.permute.xlu0 %972
    %974 = vrot.lane.b32.xlu0 %v928, 96
    %v975 = vpop.permute.xlu0 %974
    %976 = vrot.lane.b32.xlu0 %v933, 96
    %v977 = vpop.permute.xlu0 %976
    %978 = vrot.lane.b32.xlu0 %v938, 96
    %v979 = vpop.permute.xlu0 %978
    %980 = vrot.lane.b32.xlu0 %v943, 96
    %v981 = vpop.permute.xlu0 %980
    %982 = vrot.lane.b32.xlu0 %v948, 96
    %v983 = vpop.permute.xlu0 %982
    %984 = vrot.lane.b32.xlu0 %v953, 96
    %v985 = vpop.permute.xlu0 %984
    %986 = vrot.lane.b32.xlu0 %v958, 96
    %v987 = vpop.permute.xlu0 %986
    %v988 = vsel %vm308, %v918, 0
    %v990 = vsel %vm308, %v923, 0
    %v992 = vsel %vm308, %v928, 0
    %v994 = vsel %vm308, %v933, 0
    %v996 = vsel %vm308, %v938, 0
    %v998 = vsel %vm308, %v943, 0
    %v1000 = vsel %vm308, %v948, 0
    %v1002 = vsel %vm308, %v953, 0
    %v1004 = vsel %vm308, %v958, 0
    %v1006 = vsel %vm308, %v971, 0
    %v1008 = vsel %vm308, %v973, 0
    %v1010 = vsel %vm308, %v975, 0
    %v1012 = vsel %vm308, %v977, 0
    %v1014 = vsel %vm308, %v979, 0
    %v1016 = vsel %vm308, %v981, 0
    %v1018 = vsel %vm308, %v983, 0
    %v1020 = vsel %vm308, %v985, 0
    %v1022 = vsel %vm308, %v987, 0
    %1024 = vmatprep.subr.mxu0 0.0
    %1025 = vmatpush1.xpose.msra.mxu0 %v1006
    %1026 = vmatprep.subr.mxu0 0.0
    %1027 = vmatpush1.xpose.msra.mxu0 %v1008
    %1028 = vmatprep.subr.mxu0 0.0
    %1029 = vmatpush1.xpose.msra.mxu0 %v1010
    %1030 = vmatprep.subr.mxu0 0.0
    %1031 = vmatpush1.xpose.msra.mxu0 %v1012
    %1032 = vmatprep.subr.mxu0 0.0
    %1033 = vmatpush1.xpose.msra.mxu0 %v1014
    %1034 = vmatprep.subr.mxu0 0.0
    %1035 = vmatpush1.xpose.msra.mxu0 %v1016
    %1036 = vmatprep.subr.mxu0 0.0
    %1037 = vmatpush1.xpose.msra.mxu0 %v1018
    %1038 = vmatprep.subr.mxu0 0.0
    %1039 = vmatpush1.xpose.msra.mxu0 %v1020
    %1040 = vmatprep.subr.mxu0 0.0
    %1041 = vmatpush1.xpose.msra.mxu0 %v1022
    %1042 = vmatprep.subr.mxu0 0.0
    %1043 = vmatpush1.xpose.msra.mxu0 0.0
    %1044 = vmatprep.subr.mxu0 0.0
    %1045 = vmatpush1.xpose.msra.mxu0 0.0
    %1046 = vmatprep.subr.mxu0 0.0
    %1047 = vmatpush1.xpose.msra.mxu0 0.0
    %1048 = vmatprep.subr.mxu0 0.0
    %1049 = vmatpush1.xpose.msra.mxu0 0.0
    %1050 = vmatprep.subr.mxu0 0.0
    %1051 = vmatpush1.xpose.msra.mxu0 0.0
    %1052 = vmatprep.subr.mxu0 0.0
    %1053 = vmatpush1.xpose.msra.mxu0 0.0
    %1054 = vmatprep.subr.mxu0 0.0
    %1055 = vmatpush1.xpose.msra.mxu0 0.0
    %1056 = vmatprep.subr.mxu0 0.0
    %1057 = vmatpush1.xpose.msra.mxu0 0.0
    %1058 = vmatprep.subr.mxu0 0.0
    %1059 = vmatpush1.xpose.msra.mxu0 0.0
    %1060 = vmatprep.subr.mxu0 0.0
    %1061 = vmatpush1.xpose.msra.mxu0 0.0
    %1062 = vmatprep.subr.mxu0 0.0
    %1063 = vmatpush1.xpose.msra.mxu0 0.0
    %1064 = vmatprep.subr.mxu0 0.0
    %1065 = vmatpush1.xpose.msra.mxu0 0.0
    %1066 = vmatprep.subr.mxu0 0.0
    %1067 = vmatpush1.xpose.msra.mxu0 0.0
    %1068 = vmatprep.subr.mxu0 0.0
    %1069 = vmatpush1.xpose.msra.mxu0 0.0
    %1070 = vmatprep.subr.mxu0 0.0
    %1071 = vmatpush1.xpose.msra.mxu0 0.0
    %1072 = vmatprep.subr.mxu0 0.0
    %1073 = vmatpush1.xpose.msra.mxu0 0.0
    %1074 = vmatprep.subr.mxu0 0.0
    %1075 = vmatpush1.xpose.msra.mxu0 0.0
    %1076 = vmatprep.subr.mxu0 0.0
    %1077 = vmatpush1.xpose.msra.mxu0 0.0
    %1078 = vmatprep.subr.mxu0 0.0
    %1079 = vmatpush1.xpose.msra.mxu0 0.0
    %1080 = vmatprep.subr.mxu0 0.0
    %1081 = vmatpush1.xpose.msra.mxu0 0.0
    %1082 = vmatprep.subr.mxu0 0.0
    %1083 = vmatpush1.xpose.msra.mxu0 0.0
    %1084 = vmatprep.subr.mxu0 0.0
    %1085 = vmatpush1.xpose.msra.mxu0 0.0
    %1086 = vmatprep.subr.mxu0 0.0
    %1087 = vmatpush1.xpose.msra.mxu0 0.0
    %1088 = vmatprep.mubr.f32.mxu0 0.0
    %1089 = vmatmul.mubr.f32.gmra.mrb[0].mxu0 %v988
    %v1090 = vpop.f32.mrb[0].mxu0
    %v1091 = vadd.f32 0.0, %v1090
    %v1092 = vpop.f32.mrb[0].mxu0
    %1093 = vmatprep.mubr.f32.mxu0 0.0
    %1094 = vmatmul.mubr.f32.gmra.mrb[0].mxu0 %v990
    %v1095 = vpop.f32.mrb[0].mxu0
    %v1096 = vadd.f32 0.0, %v1095
    %v1097 = vpop.f32.mrb[0].mxu0
    %1098 = vmatprep.mubr.f32.mxu0 0.0
    %1099 = vmatmul.mubr.f32.gmra.mrb[0].mxu0 %v992
    %v1100 = vpop.f32.mrb[0].mxu0
    %v1101 = vadd.f32 0.0, %v1100
    %v1102 = vpop.f32.mrb[0].mxu0
    %1103 = vmatprep.mubr.f32.mxu0 0.0
    %1104 = vmatmul.mubr.f32.gmra.mrb[0].mxu0 %v994
    %v1105 = vpop.f32.mrb[0].mxu0
    %v1106 = vadd.f32 0.0, %v1105
    %v1107 = vpop.f32.mrb[0].mxu0
    %1108 = vmatprep.mubr.f32.mxu0 0.0
    %1109 = vmatmul.mubr.f32.gmra.mrb[0].mxu0 %v996
    %v1110 = vpop.f32.mrb[0].mxu0
    %v1111 = vadd.f32 0.0, %v1110
    %v1112 = vpop.f32.mrb[0].mxu0
    %1113 = vmatprep.mubr.f32.mxu0 0.0
    %1114 = vmatmul.mubr.f32.gmra.mrb[0].mxu0 %v998
    %v1115 = vpop.f32.mrb[0].mxu0
    %v1116 = vadd.f32 0.0, %v1115
    %v1117 = vpop.f32.mrb[0].mxu0
    %1118 = vmatprep.mubr.f32.mxu0 0.0
    %1119 = vmatmul.mubr.f32.gmra.mrb[0].mxu0 %v1000
    %v1120 = vpop.f32.mrb[0].mxu0
    %v1121 = vadd.f32 0.0, %v1120
    %v1122 = vpop.f32.mrb[0].mxu0
    %1123 = vmatprep.mubr.f32.mxu0 0.0
    %1124 = vmatmul.mubr.f32.gmra.mrb[0].mxu0 %v1002
    %v1125 = vpop.f32.mrb[0].mxu0
    %v1126 = vadd.f32 0.0, %v1125
    %v1127 = vpop.f32.mrb[0].mxu0
    %1128 = vmatprep.mubr.f32.mxu0 0.0
    %1129 = vmatmul.mubr.f32.gmra.mrb[0].mxu0 %v1004
    %v1130 = vpop.f32.mrb[0].mxu0
    %v1131 = vadd.f32 0.0, %v1130
    %v1132 = vpop.f32.mrb[0].mxu0
    %1133 = vdwg.mxu0
    %v1134 = vmul.f32 %v1091, 0.17677669
    %v1135 = vmul.f32 %v1096, 0.17677669
    %v1136 = vmul.f32 %v1101, 0.17677669
    %v1137 = vmul.f32 %v1106, 0.17677669
    %v1138 = vmul.f32 %v1111, 0.17677669
    %v1139 = vmul.f32 %v1116, 0.17677669
    %v1140 = vmul.f32 %v1121, 0.17677669
    %v1141 = vmul.f32 %v1126, 0.17677669
    %v1142 = vmul.f32 %v1131, 0.17677669
    %v1143 = vadd.f32 %v1134, %v504
    %v1144 = vadd.f32 %v1135, %v505
    %v1145 = vadd.f32 %v1136, %v506
    %v1146 = vadd.f32 %v1137, %v507
    %v1147 = vadd.f32 %v1138, %v508
    %v1148 = vadd.f32 %v1139, %v509
    %v1149 = vadd.f32 %v1140, %v510
    %v1150 = vadd.f32 %v1141, %v511
    %v1151 = vadd.f32 %v1142, %v512
    %v1152 = vsel %vm522, %v1143, -inf
    %1153 = vmax.xlane.f32.xlu0 %v1152
    %v1154 = vpop.xlane.xlu0 %1153
    %v1155 = vsel %vm522, %v1144, -inf
    %1156 = vmax.xlane.f32.xlu0 %v1155
    %v1157 = vpop.xlane.xlu0 %1156
    %v1158 = vsel %vm522, %v1145, -inf
    %1159 = vmax.xlane.f32.xlu0 %v1158
    %v1160 = vpop.xlane.xlu0 %1159
    %v1161 = vsel %vm522, %v1146, -inf
    %1162 = vmax.xlane.f32.xlu0 %v1161
    %v1163 = vpop.xlane.xlu0 %1162
    %v1164 = vsel %vm522, %v1147, -inf
    %1165 = vmax.xlane.f32.xlu0 %v1164
    %v1166 = vpop.xlane.xlu0 %1165
    %v1167 = vsel %vm522, %v1148, -inf
    %1168 = vmax.xlane.f32.xlu0 %v1167
    %v1169 = vpop.xlane.xlu0 %1168
    %v1170 = vsel %vm522, %v1149, -inf
    %1171 = vmax.xlane.f32.xlu0 %v1170
    %v1172 = vpop.xlane.xlu0 %1171
    %v1173 = vsel %vm522, %v1150, -inf
    %1174 = vmax.xlane.f32.xlu0 %v1173
    %v1175 = vpop.xlane.xlu0 %1174
    %v1176 = vsel %vm522, %v1151, -inf
    %1177 = vmax.xlane.f32.xlu0 %v1176
    %v1178 = vpop.xlane.xlu0 %1177
    %v1179 = vsub.f32 %v1143, %v1154
    %v1180 = vsub.f32 %v1144, %v1157
    %v1181 = vsub.f32 %v1145, %v1160
    %v1182 = vsub.f32 %v1146, %v1163
    %v1183 = vsub.f32 %v1147, %v1166
    %v1184 = vsub.f32 %v1148, %v1169
    %v1185 = vsub.f32 %v1149, %v1172
    %v1186 = vsub.f32 %v1150, %v1175
    %v1187 = vsub.f32 %v1151, %v1178
    %v1188 = vmul.f32 %v1179, 1.442695
    %v1189 = vpow.pop %v1188
    %v1190 = vmul.f32 %v1180, 1.442695
    %v1191 = vpow.pop %v1190
    %v1192 = vmul.f32 %v1181, 1.442695
    %v1193 = vpow.pop %v1192
    %v1194 = vmul.f32 %v1182, 1.442695
    %v1195 = vpow.pop %v1194
    %v1196 = vmul.f32 %v1183, 1.442695
    %v1197 = vpow.pop %v1196
    %v1198 = vmul.f32 %v1184, 1.442695
    %v1199 = vpow.pop %v1198
    %v1200 = vmul.f32 %v1185, 1.442695
    %v1201 = vpow.pop %v1200
    %v1202 = vmul.f32 %v1186, 1.442695
    %v1203 = vpow.pop %v1202
    %v1204 = vmul.f32 %v1187, 1.442695
    %v1205 = vpow.pop %v1204
    %v1206 = vsel %vm522, %v1189, 0.0
    %1207 = vadd.xlane.f32.xlu0 %v1206
    %v1208 = vpop.xlane.xlu0 %1207
    %v1209 = vsel %vm522, %v1191, 0.0
    %1210 = vadd.xlane.f32.xlu0 %v1209
    %v1211 = vpop.xlane.xlu0 %1210
    %v1212 = vsel %vm522, %v1193, 0.0
    %1213 = vadd.xlane.f32.xlu0 %v1212
    %v1214 = vpop.xlane.xlu0 %1213
    %v1215 = vsel %vm522, %v1195, 0.0
    %1216 = vadd.xlane.f32.xlu0 %v1215
    %v1217 = vpop.xlane.xlu0 %1216
    %v1218 = vsel %vm522, %v1197, 0.0
    %1219 = vadd.xlane.f32.xlu0 %v1218
    %v1220 = vpop.xlane.xlu0 %1219
    %v1221 = vsel %vm522, %v1199, 0.0
    %1222 = vadd.xlane.f32.xlu0 %v1221
    %v1223 = vpop.xlane.xlu0 %1222
    %v1224 = vsel %vm522, %v1201, 0.0
    %1225 = vadd.xlane.f32.xlu0 %v1224
    %v1226 = vpop.xlane.xlu0 %1225
    %v1227 = vsel %vm522, %v1203, 0.0
    %1228 = vadd.xlane.f32.xlu0 %v1227
    %v1229 = vpop.xlane.xlu0 %1228
    %v1230 = vsel %vm522, %v1205, 0.0
    %1231 = vadd.xlane.f32.xlu0 %v1230
    %v1232 = vpop.xlane.xlu0 %1231
    %v1233 = vrcp.pop %v1208
    %v1234 = vrcp.pop %v1211
    %v1235 = vrcp.pop %v1214
    %v1236 = vrcp.pop %v1217
    %v1237 = vrcp.pop %v1220
    %v1238 = vrcp.pop %v1223
    %v1239 = vrcp.pop %v1226
    %v1240 = vrcp.pop %v1229
    %v1241 = vrcp.pop %v1232
    %v1242 = vmul.f32 %v1189, %v1233
    %v1243 = vmul.f32 %v1191, %v1234
    %v1244 = vmul.f32 %v1193, %v1235
    %v1245 = vmul.f32 %v1195, %v1236
    %v1246 = vmul.f32 %v1197, %v1237
    %v1247 = vmul.f32 %v1199, %v1238
    %v1248 = vmul.f32 %v1201, %v1239
    %v1249 = vmul.f32 %v1203, %v1240
    %v1250 = vmul.f32 %v1205, %v1241
    %1251 = vrot.lane.b32.xlu0 %v918, 64
    %v1252 = vpop.permute.xlu0 %1251
    %1253 = vrot.lane.b32.xlu0 %v923, 64
    %v1254 = vpop.permute.xlu0 %1253
    %1255 = vrot.lane.b32.xlu0 %v928, 64
    %v1256 = vpop.permute.xlu0 %1255
    %1257 = vrot.lane.b32.xlu0 %v933, 64
    %v1258 = vpop.permute.xlu0 %1257
    %1259 = vrot.lane.b32.xlu0 %v938, 64
    %v1260 = vpop.permute.xlu0 %1259
    %1261 = vrot.lane.b32.xlu0 %v943, 64
    %v1262 = vpop.permute.xlu0 %1261
    %1263 = vrot.lane.b32.xlu0 %v948, 64
    %v1264 = vpop.permute.xlu0 %1263
    %1265 = vrot.lane.b32.xlu0 %v953, 64
    %v1266 = vpop.permute.xlu0 %1265
    %1267 = vrot.lane.b32.xlu0 %v958, 64
    %v1268 = vpop.permute.xlu0 %1267
    %v1279 = vsel %vm522, %v1242, 0
    %v1282 = vsel %vm522, %v1243, 0
    %v1285 = vsel %vm522, %v1244, 0
    %v1288 = vsel %vm522, %v1245, 0
    %v1291 = vsel %vm522, %v1246, 0
    %v1294 = vsel %vm522, %v1247, 0
    %v1297 = vsel %vm522, %v1248, 0
    %v1300 = vsel %vm522, %v1249, 0
    %v1303 = vsel %vm522, %v1250, 0
    %1305 = vmatprep.subr.mxu0 0.0
    %1306 = vmatpush1.msra.mxu0 %v1252
    %1307 = vmatprep.subr.mxu0 0.0
    %1308 = vmatpush1.msra.mxu0 %v1254
    %1309 = vmatprep.subr.mxu0 0.0
    %1310 = vmatpush1.msra.mxu0 %v1256
    %1311 = vmatprep.subr.mxu0 0.0
    %1312 = vmatpush1.msra.mxu0 %v1258
    %1313 = vmatprep.subr.mxu0 0.0
    %1314 = vmatpush1.msra.mxu0 %v1260
    %1315 = vmatprep.subr.mxu0 0.0
    %1316 = vmatpush1.msra.mxu0 %v1262
    %1317 = vmatprep.subr.mxu0 0.0
    %1318 = vmatpush1.msra.mxu0 %v1264
    %1319 = vmatprep.subr.mxu0 0.0
    %1320 = vmatpush1.msra.mxu0 %v1266
    %1321 = vmatprep.subr.mxu0 0.0
    %1322 = vmatpush1.msra.mxu0 %v1268
    %1323 = vmatprep.subr.mxu0 0.0
    %1324 = vmatpush1.msra.mxu0 0.0
    %1325 = vmatprep.subr.mxu0 0.0
    %1326 = vmatpush1.msra.mxu0 0.0
    %1327 = vmatprep.subr.mxu0 0.0
    %1328 = vmatpush1.msra.mxu0 0.0
    %1329 = vmatprep.subr.mxu0 0.0
    %1330 = vmatpush1.msra.mxu0 0.0
    %1331 = vmatprep.subr.mxu0 0.0
    %1332 = vmatpush1.msra.mxu0 0.0
    %1333 = vmatprep.subr.mxu0 0.0
    %1334 = vmatpush1.msra.mxu0 0.0
    %1335 = vmatprep.subr.mxu0 0.0
    %1336 = vmatpush1.msra.mxu0 0.0
    %1337 = vmatprep.subr.mxu0 0.0
    %1338 = vmatpush1.msra.mxu0 0.0
    %1339 = vmatprep.subr.mxu0 0.0
    %1340 = vmatpush1.msra.mxu0 0.0
    %1341 = vmatprep.subr.mxu0 0.0
    %1342 = vmatpush1.msra.mxu0 0.0
    %1343 = vmatprep.subr.mxu0 0.0
    %1344 = vmatpush1.msra.mxu0 0.0
    %1345 = vmatprep.subr.mxu0 0.0
    %1346 = vmatpush1.msra.mxu0 0.0
    %1347 = vmatprep.subr.mxu0 0.0
    %1348 = vmatpush1.msra.mxu0 0.0
    %1349 = vmatprep.subr.mxu0 0.0
    %1350 = vmatpush1.msra.mxu0 0.0
    %1351 = vmatprep.subr.mxu0 0.0
    %1352 = vmatpush1.msra.mxu0 0.0
    %1353 = vmatprep.subr.mxu0 0.0
    %1354 = vmatpush1.msra.mxu0 0.0
    %1355 = vmatprep.subr.mxu0 0.0
    %1356 = vmatpush1.msra.mxu0 0.0
    %1357 = vmatprep.subr.mxu0 0.0
    %1358 = vmatpush1.msra.mxu0 0.0
    %1359 = vmatprep.subr.mxu0 0.0
    %1360 = vmatpush1.msra.mxu0 0.0
    %1361 = vmatprep.subr.mxu0 0.0
    %1362 = vmatpush1.msra.mxu0 0.0
    %1363 = vmatprep.subr.mxu0 0.0
    %1364 = vmatpush1.msra.mxu0 0.0
    %1365 = vmatprep.subr.mxu0 0.0
    %1366 = vmatpush1.msra.mxu0 0.0
    %1367 = vmatprep.subr.mxu0 0.0
    %1368 = vmatpush1.msra.mxu0 0.0
    %1369 = vmatprep.mubr.f32.mxu0 0.0
    %1370 = vmatmul.mubr.f32.gmra.mrb[0].mxu0 %v1279
    %v1371 = vpop.f32.mrb[0].mxu0
    %v1372 = vadd.f32 0.0, %v1371
    %v1373 = vpop.f32.mrb[0].mxu0
    %1374 = vmatprep.mubr.f32.mxu0 0.0
    %1375 = vmatmul.mubr.f32.gmra.mrb[0].mxu0 %v1282
    %v1376 = vpop.f32.mrb[0].mxu0
    %v1377 = vadd.f32 0.0, %v1376
    %v1378 = vpop.f32.mrb[0].mxu0
    %1379 = vmatprep.mubr.f32.mxu0 0.0
    %1380 = vmatmul.mubr.f32.gmra.mrb[0].mxu0 %v1285
    %v1381 = vpop.f32.mrb[0].mxu0
    %v1382 = vadd.f32 0.0, %v1381
    %v1383 = vpop.f32.mrb[0].mxu0
    %1384 = vmatprep.mubr.f32.mxu0 0.0
    %1385 = vmatmul.mubr.f32.gmra.mrb[0].mxu0 %v1288
    %v1386 = vpop.f32.mrb[0].mxu0
    %v1387 = vadd.f32 0.0, %v1386
    %v1388 = vpop.f32.mrb[0].mxu0
    %1389 = vmatprep.mubr.f32.mxu0 0.0
    %1390 = vmatmul.mubr.f32.gmra.mrb[0].mxu0 %v1291
    %v1391 = vpop.f32.mrb[0].mxu0
    %v1392 = vadd.f32 0.0, %v1391
    %v1393 = vpop.f32.mrb[0].mxu0
    %1394 = vmatprep.mubr.f32.mxu0 0.0
    %1395 = vmatmul.mubr.f32.gmra.mrb[0].mxu0 %v1294
    %v1396 = vpop.f32.mrb[0].mxu0
    %v1397 = vadd.f32 0.0, %v1396
    %v1398 = vpop.f32.mrb[0].mxu0
    %1399 = vmatprep.mubr.f32.mxu0 0.0
    %1400 = vmatmul.mubr.f32.gmra.mrb[0].mxu0 %v1297
    %v1401 = vpop.f32.mrb[0].mxu0
    %v1402 = vadd.f32 0.0, %v1401
    %v1403 = vpop.f32.mrb[0].mxu0
    %1404 = vmatprep.mubr.f32.mxu0 0.0
    %1405 = vmatmul.mubr.f32.gmra.mrb[0].mxu0 %v1300
    %v1406 = vpop.f32.mrb[0].mxu0
    %v1407 = vadd.f32 0.0, %v1406
    %v1408 = vpop.f32.mrb[0].mxu0
    %1409 = vmatprep.mubr.f32.mxu0 0.0
    %1410 = vmatmul.mubr.f32.gmra.mrb[0].mxu0 %v1303
    %v1411 = vpop.f32.mrb[0].mxu0
    %v1412 = vadd.f32 0.0, %v1411
    %v1413 = vpop.f32.mrb[0].mxu0
    %1414 = vdwg.mxu0
    %v1415 = vsel %vm308, %v1372, 0.0
    %1416 = vadd.xlane.f32.xlu0 %v1415
    %v1417 = vpop.xlane.xlu0 %1416
    %v1418 = vsel %vm308, %v1377, 0.0
    %1419 = vadd.xlane.f32.xlu0 %v1418
    %v1420 = vpop.xlane.xlu0 %1419
    %v1421 = vsel %vm308, %v1382, 0.0
    %1422 = vadd.xlane.f32.xlu0 %v1421
    %v1423 = vpop.xlane.xlu0 %1422
    %v1424 = vsel %vm308, %v1387, 0.0
    %1425 = vadd.xlane.f32.xlu0 %v1424
    %v1426 = vpop.xlane.xlu0 %1425
    %v1427 = vsel %vm308, %v1392, 0.0
    %1428 = vadd.xlane.f32.xlu0 %v1427
    %v1429 = vpop.xlane.xlu0 %1428
    %v1430 = vsel %vm308, %v1397, 0.0
    %1431 = vadd.xlane.f32.xlu0 %v1430
    %v1432 = vpop.xlane.xlu0 %1431
    %v1433 = vsel %vm308, %v1402, 0.0
    %1434 = vadd.xlane.f32.xlu0 %v1433
    %v1435 = vpop.xlane.xlu0 %1434
    %v1436 = vsel %vm308, %v1407, 0.0
    %1437 = vadd.xlane.f32.xlu0 %v1436
    %v1438 = vpop.xlane.xlu0 %1437
    %v1439 = vsel %vm308, %v1412, 0.0
    %1440 = vadd.xlane.f32.xlu0 %v1439
    %v1441 = vpop.xlane.xlu0 %1440
    %v1442 = vrcp.pop 32.0
    %v1443 = vmul.f32 %v1417, %v1442
    %v1444 = vmul.f32 %v1420, %v1442
    %v1445 = vmul.f32 %v1423, %v1442
    %v1446 = vmul.f32 %v1426, %v1442
    %v1447 = vmul.f32 %v1429, %v1442
    %v1448 = vmul.f32 %v1432, %v1442
    %v1449 = vmul.f32 %v1435, %v1442
    %v1450 = vmul.f32 %v1438, %v1442
    %v1451 = vmul.f32 %v1441, %v1442
    %v1452 = vsub.f32 %v1372, %v1443
    %v1453 = vsub.f32 %v1377, %v1444
    %v1454 = vsub.f32 %v1382, %v1445
    %v1455 = vsub.f32 %v1387, %v1446
    %v1456 = vsub.f32 %v1392, %v1447
    %v1457 = vsub.f32 %v1397, %v1448
    %v1458 = vsub.f32 %v1402, %v1449
    %v1459 = vsub.f32 %v1407, %v1450
    %v1460 = vsub.f32 %v1412, %v1451
    %v1461 = vmul.f32 %v1452, %v1452
    %v1462 = vmul.f32 %v1453, %v1453
    %v1463 = vmul.f32 %v1454, %v1454
    %v1464 = vmul.f32 %v1455, %v1455
    %v1465 = vmul.f32 %v1456, %v1456
    %v1466 = vmul.f32 %v1457, %v1457
    %v1467 = vmul.f32 %v1458, %v1458
    %v1468 = vmul.f32 %v1459, %v1459
    %v1469 = vmul.f32 %v1460, %v1460
    %v1470 = vsel %vm308, %v1461, 0.0
    %1471 = vadd.xlane.f32.xlu0 %v1470
    %v1472 = vpop.xlane.xlu0 %1471
    %v1473 = vsel %vm308, %v1462, 0.0
    %1474 = vadd.xlane.f32.xlu0 %v1473
    %v1475 = vpop.xlane.xlu0 %1474
    %v1476 = vsel %vm308, %v1463, 0.0
    %1477 = vadd.xlane.f32.xlu0 %v1476
    %v1478 = vpop.xlane.xlu0 %1477
    %v1479 = vsel %vm308, %v1464, 0.0
    %1480 = vadd.xlane.f32.xlu0 %v1479
    %v1481 = vpop.xlane.xlu0 %1480
    %v1482 = vsel %vm308, %v1465, 0.0
    %1483 = vadd.xlane.f32.xlu0 %v1482
    %v1484 = vpop.xlane.xlu0 %1483
    %v1485 = vsel %vm308, %v1466, 0.0
    %1486 = vadd.xlane.f32.xlu0 %v1485
    %v1487 = vpop.xlane.xlu0 %1486
    %v1488 = vsel %vm308, %v1467, 0.0
    %1489 = vadd.xlane.f32.xlu0 %v1488
    %v1490 = vpop.xlane.xlu0 %1489
    %v1491 = vsel %vm308, %v1468, 0.0
    %1492 = vadd.xlane.f32.xlu0 %v1491
    %v1493 = vpop.xlane.xlu0 %1492
    %v1494 = vsel %vm308, %v1469, 0.0
    %1495 = vadd.xlane.f32.xlu0 %v1494
    %v1496 = vpop.xlane.xlu0 %1495
    %v1497 = vmul.f32 %v1472, %v1442
    %v1498 = vmul.f32 %v1475, %v1442
    %v1499 = vmul.f32 %v1478, %v1442
    %v1500 = vmul.f32 %v1481, %v1442
    %v1501 = vmul.f32 %v1484, %v1442
    %v1502 = vmul.f32 %v1487, %v1442
    %v1503 = vmul.f32 %v1490, %v1442
    %v1504 = vmul.f32 %v1493, %v1442
    %v1505 = vmul.f32 %v1496, %v1442
    %v1506 = vld [vmem:[%s11] sm:$0x1]
    %v1507 = vlaneseq
    %v1508 = vshrl.u32 %v1507, 7
    %v1509 = vsub.s32 0, %v1508
    %v1510 = vrot.slane %v1506, %v1509
    %v1511 = vmul.f32 %v1510, %v1452
    %v1512 = vmul.f32 %v1510, %v1453
    %v1513 = vmul.f32 %v1510, %v1454
    %v1514 = vmul.f32 %v1510, %v1455
    %v1515 = vmul.f32 %v1510, %v1456
    %v1516 = vmul.f32 %v1510, %v1457
    %v1517 = vmul.f32 %v1510, %v1458
    %v1518 = vmul.f32 %v1510, %v1459
    %v1519 = vmul.f32 %v1510, %v1460
    %v1520 = vadd.f32 %v1497, 1e-05
    %v1521 = vadd.f32 %v1498, 1e-05
    %v1522 = vadd.f32 %v1499, 1e-05
    %v1523 = vadd.f32 %v1500, 1e-05
    %v1524 = vadd.f32 %v1501, 1e-05
    %v1525 = vadd.f32 %v1502, 1e-05
    %v1526 = vadd.f32 %v1503, 1e-05
    %v1527 = vadd.f32 %v1504, 1e-05
    %v1528 = vadd.f32 %v1505, 1e-05
    %v1529 = vrsqrt.pop %v1520
    %v1530 = vrsqrt.pop %v1521
    %v1531 = vrsqrt.pop %v1522
    %v1532 = vrsqrt.pop %v1523
    %v1533 = vrsqrt.pop %v1524
    %v1534 = vrsqrt.pop %v1525
    %v1535 = vrsqrt.pop %v1526
    %v1536 = vrsqrt.pop %v1527
    %v1537 = vrsqrt.pop %v1528
    %v1538 = vmul.f32 %v1511, %v1529
    %v1539 = vmul.f32 %v1512, %v1530
    %v1540 = vmul.f32 %v1513, %v1531
    %v1541 = vmul.f32 %v1514, %v1532
    %v1542 = vmul.f32 %v1515, %v1533
    %v1543 = vmul.f32 %v1516, %v1534
    %v1544 = vmul.f32 %v1517, %v1535
    %v1545 = vmul.f32 %v1518, %v1536
    %v1546 = vmul.f32 %v1519, %v1537
    %v1547 = vld [vmem:[%s12] sm:$0x1]
    %v1548 = vlaneseq
    %v1549 = vshrl.u32 %v1548, 7
    %v1550 = vsub.s32 0, %v1549
    %v1551 = vrot.slane %v1547, %v1550
    %v1552 = vadd.f32 %v1538, %v1551
    %v1553 = vadd.f32 %v1539, %v1551
    %v1554 = vadd.f32 %v1540, %v1551
    %v1555 = vadd.f32 %v1541, %v1551
    %v1556 = vadd.f32 %v1542, %v1551
    %v1557 = vadd.f32 %v1543, %v1551
    %v1558 = vadd.f32 %v1544, %v1551
    %v1559 = vadd.f32 %v1545, %v1551
    %v1560 = vadd.f32 %v1546, %v1551
    %v1561 = vadd.f32 %v806, %v1552
    %v1562 = vadd.f32 %v807, %v1553
    %v1563 = vadd.f32 %v808, %v1554
    %v1564 = vadd.f32 %v809, %v1555
    %v1565 = vadd.f32 %v810, %v1556
    %v1566 = vadd.f32 %v811, %v1557
    %v1567 = vadd.f32 %v812, %v1558
    %v1568 = vadd.f32 %v813, %v1559
    %v1569 = vadd.f32 %v814, %v1560
    %s1570 = scalar_lea.vmem [#allocation7], 72
    %v1571 = vld [vmem:[%s1570] sm:$0xff]
    %v1572 = vld [vmem:[%s1570 + $0x8] sm:$0xff]
    %v1573 = vld [vmem:[%s1570 + $0x10] sm:$0xff]
    %v1574 = vld [vmem:[%s1570 + $0x18] sm:$0xff]
    %v1575 = vld [vmem:[%s1570 + $0x20] sm:$0xff]
    %v1576 = vld [vmem:[%s1570 + $0x28] sm:$0xff]
    %v1577 = vld [vmem:[%s1570 + $0x30] sm:$0xff]
    %v1578 = vld [vmem:[%s1570 + $0x38] sm:$0xff]
    %v1579 = vld [vmem:[%s1570 + $0x40] sm:$0xff]
    %v1581 = vsel %vm522, %v1571, 0
    %v1584 = vsel %vm522, %v1572, 0
    %v1587 = vsel %vm522, %v1573, 0
    %v1590 = vsel %vm522, %v1574, 0
    %v1593 = vsel %vm522, %v1575, 0
    %v1596 = vsel %vm522, %v1576, 0
    %v1599 = vsel %vm522, %v1577, 0
    %v1602 = vsel %vm522, %v1578, 0
    %v1605 = vsel %vm522, %v1579, 0
    %1607 = vmatprep.subr.mxu0 0.0
    %1608 = vmatpush1.msra.mxu0 %v1561
    %1609 = vmatprep.subr.mxu0 0.0
    %1610 = vmatpush1.msra.mxu0 %v1562
    %1611 = vmatprep.subr.mxu0 0.0
    %1612 = vmatpush1.msra.mxu0 %v1563
    %1613 = vmatprep.subr.mxu0 0.0
    %1614 = vmatpush1.msra.mxu0 %v1564
    %1615 = vmatprep.subr.mxu0 0.0
    %1616 = vmatpush1.msra.mxu0 %v1565
    %1617 = vmatprep.subr.mxu0 0.0
    %1618 = vmatpush1.msra.mxu0 %v1566
    %1619 = vmatprep.subr.mxu0 0.0
    %1620 = vmatpush1.msra.mxu0 %v1567
    %1621 = vmatprep.subr.mxu0 0.0
    %1622 = vmatpush1.msra.mxu0 %v1568
    %1623 = vmatprep.subr.mxu0 0.0
    %1624 = vmatpush1.msra.mxu0 %v1569
    %1625 = vmatprep.subr.mxu0 0.0
    %1626 = vmatpush1.msra.mxu0 0.0
    %1627 = vmatprep.subr.mxu0 0.0
    %1628 = vmatpush1.msra.mxu0 0.0
    %1629 = vmatprep.subr.mxu0 0.0
    %1630 = vmatpush1.msra.mxu0 0.0
    %1631 = vmatprep.subr.mxu0 0.0
    %1632 = vmatpush1.msra.mxu0 0.0
    %1633 = vmatprep.subr.mxu0 0.0
    %1634 = vmatpush1.msra.mxu0 0.0
    %1635 = vmatprep.subr.mxu0 0.0
    %1636 = vmatpush1.msra.mxu0 0.0
    %1637 = vmatprep.subr.mxu0 0.0
    %1638 = vmatpush1.msra.mxu0 0.0
    %1639 = vmatprep.subr.mxu0 0.0
    %1640 = vmatpush1.msra.mxu0 0.0
    %1641 = vmatprep.subr.mxu0 0.0
    %1642 = vmatpush1.msra.mxu0 0.0
    %1643 = vmatprep.subr.mxu0 0.0
    %1644 = vmatpush1.msra.mxu0 0.0
    %1645 = vmatprep.subr.mxu0 0.0
    %1646 = vmatpush1.msra.mxu0 0.0
    %1647 = vmatprep.subr.mxu0 0.0
    %1648 = vmatpush1.msra.mxu0 0.0
    %1649 = vmatprep.subr.mxu0 0.0
    %1650 = vmatpush1.msra.mxu0 0.0
    %1651 = vmatprep.subr.mxu0 0.0
    %1652 = vmatpush1.msra.mxu0 0.0
    %1653 = vmatprep.subr.mxu0 0.0
    %1654 = vmatpush1.msra.mxu0 0.0
    %1655 = vmatprep.subr.mxu0 0.0
    %1656 = vmatpush1.msra.mxu0 0.0
    %1657 = vmatprep.subr.mxu0 0.0
    %1658 = vmatpush1.msra.mxu0 0.0
    %1659 = vmatprep.subr.mxu0 0.0
    %1660 = vmatpush1.msra.mxu0 0.0
    %1661 = vmatprep.subr.mxu0 0.0
    %1662 = vmatpush1.msra.mxu0 0.0
    %1663 = vmatprep.subr.mxu0 0.0
    %1664 = vmatpush1.msra.mxu0 0.0
    %1665 = vmatprep.subr.mxu0 0.0
    %1666 = vmatpush1.msra.mxu0 0.0
    %1667 = vmatprep.subr.mxu0 0.0
    %1668 = vmatpush1.msra.mxu0 0.0
    %1669 = vmatprep.subr.mxu0 0.0
    %1670 = vmatpush1.msra.mxu0 0.0
    %1671 = vmatprep.mubr.f32.mxu0 0.0
    %1672 = vmatmul.mubr.f32.gmra.mrb[0].mxu0 %v1581
    %v1673 = vpop.f32.mrb[0].mxu0
    %v1674 = vadd.f32 0.0, %v1673
    %v1675 = vpop.f32.mrb[0].mxu0
    %1676 = vmatprep.mubr.f32.mxu0 0.0
    %1677 = vmatmul.mubr.f32.gmra.mrb[0].mxu0 %v1584
    %v1678 = vpop.f32.mrb[0].mxu0
    %v1679 = vadd.f32 0.0, %v1678
    %v1680 = vpop.f32.mrb[0].mxu0
    %1681 = vmatprep.mubr.f32.mxu0 0.0
    %1682 = vmatmul.mubr.f32.gmra.mrb[0].mxu0 %v1587
    %v1683 = vpop.f32.mrb[0].mxu0
    %v1684 = vadd.f32 0.0, %v1683
    %v1685 = vpop.f32.mrb[0].mxu0
    %1686 = vmatprep.mubr.f32.mxu0 0.0
    %1687 = vmatmul.mubr.f32.gmra.mrb[0].mxu0 %v1590
    %v1688 = vpop.f32.mrb[0].mxu0
    %v1689 = vadd.f32 0.0, %v1688
    %v1690 = vpop.f32.mrb[0].mxu0
    %1691 = vmatprep.mubr.f32.mxu0 0.0
    %1692 = vmatmul.mubr.f32.gmra.mrb[0].mxu0 %v1593
    %v1693 = vpop.f32.mrb[0].mxu0
    %v1694 = vadd.f32 0.0, %v1693
    %v1695 = vpop.f32.mrb[0].mxu0
    %1696 = vmatprep.mubr.f32.mxu0 0.0
    %1697 = vmatmul.mubr.f32.gmra.mrb[0].mxu0 %v1596
    %v1698 = vpop.f32.mrb[0].mxu0
    %v1699 = vadd.f32 0.0, %v1698
    %v1700 = vpop.f32.mrb[0].mxu0
    %1701 = vmatprep.mubr.f32.mxu0 0.0
    %1702 = vmatmul.mubr.f32.gmra.mrb[0].mxu0 %v1599
    %v1703 = vpop.f32.mrb[0].mxu0
    %v1704 = vadd.f32 0.0, %v1703
    %v1705 = vpop.f32.mrb[0].mxu0
    %1706 = vmatprep.mubr.f32.mxu0 0.0
    %1707 = vmatmul.mubr.f32.gmra.mrb[0].mxu0 %v1602
    %v1708 = vpop.f32.mrb[0].mxu0
    %v1709 = vadd.f32 0.0, %v1708
    %v1710 = vpop.f32.mrb[0].mxu0
    %1711 = vmatprep.mubr.f32.mxu0 0.0
    %1712 = vmatmul.mubr.f32.gmra.mrb[0].mxu0 %v1605
    %v1713 = vpop.f32.mrb[0].mxu0
    %v1714 = vadd.f32 0.0, %v1713
    %v1715 = vpop.f32.mrb[0].mxu0
    %1716 = vdwg.mxu0
    %s1717 = scalar_lea.vmem [#allocation10], 32
    %v1718 = vld [vmem:[%s1717] sm:$0xff]
    %v1719 = vld [vmem:[%s1717 + $0x8] sm:$0xff]
    %v1720 = vld [vmem:[%s1717 + $0x10] sm:$0xff]
    %v1721 = vld [vmem:[%s1717 + $0x18] sm:$0xff]
    %v1722 = vld [vmem:[%s8 + $0x1] sm:$0x1]
    %v1723 = vlaneseq
    %v1724 = vshrl.u32 %v1723, 7
    %v1725 = vsub.s32 0, %v1724
    %v1726 = vrot.slane %v1722, %v1725
    %v1728 = vsel %vm308, %v1674, 0
    %v1731 = vsel %vm308, %v1679, 0
    %v1734 = vsel %vm308, %v1684, 0
    %v1737 = vsel %vm308, %v1689, 0
    %v1740 = vsel %vm308, %v1694, 0
    %v1743 = vsel %vm308, %v1699, 0
    %v1746 = vsel %vm308, %v1704, 0
    %v1749 = vsel %vm308, %v1709, 0
    %v1752 = vsel %vm308, %v1714, 0
    %1754 = vmatprep.subr.mxu0 0.0
    %1755 = vmatpush1.msra.mxu0 %v1718
    %1756 = vmatprep.subr.mxu0 0.0
    %1757 = vmatpush1.msra.mxu0 %v1719
    %1758 = vmatprep.subr.mxu0 0.0
    %1759 = vmatpush1.msra.mxu0 %v1720
    %1760 = vmatprep.subr.mxu0 0.0
    %1761 = vmatpush1.msra.mxu0 %v1721
    %1762 = vmatprep.subr.mxu0 0.0
    %1763 = vmatpush1.msra.mxu0 0.0
    %1764 = vmatprep.subr.mxu0 0.0
    %1765 = vmatpush1.msra.mxu0 0.0
    %1766 = vmatprep.subr.mxu0 0.0
    %1767 = vmatpush1.msra.mxu0 0.0
    %1768 = vmatprep.subr.mxu0 0.0
    %1769 = vmatpush1.msra.mxu0 0.0
    %1770 = vmatprep.subr.mxu0 0.0
    %1771 = vmatpush1.msra.mxu0 0.0
    %1772 = vmatprep.subr.mxu0 0.0
    %1773 = vmatpush1.msra.mxu0 0.0
    %1774 = vmatprep.subr.mxu0 0.0
    %1775 = vmatpush1.msra.mxu0 0.0
    %1776 = vmatprep.subr.mxu0 0.0
    %1777 = vmatpush1.msra.mxu0 0.0
    %1778 = vmatprep.subr.mxu0 0.0
    %1779 = vmatpush1.msra.mxu0 0.0
    %1780 = vmatprep.subr.mxu0 0.0
    %1781 = vmatpush1.msra.mxu0 0.0
    %1782 = vmatprep.subr.mxu0 0.0
    %1783 = vmatpush1.msra.mxu0 0.0
    %1784 = vmatprep.subr.mxu0 0.0
    %1785 = vmatpush1.msra.mxu0 0.0
    %1786 = vmatprep.subr.mxu0 0.0
    %1787 = vmatpush1.msra.mxu0 0.0
    %1788 = vmatprep.subr.mxu0 0.0
    %1789 = vmatpush1.msra.mxu0 0.0
    %1790 = vmatprep.subr.mxu0 0.0
    %1791 = vmatpush1.msra.mxu0 0.0
    %1792 = vmatprep.subr.mxu0 0.0
    %1793 = vmatpush1.msra.mxu0 0.0
    %1794 = vmatprep.subr.mxu0 0.0
    %1795 = vmatpush1.msra.mxu0 0.0
    %1796 = vmatprep.subr.mxu0 0.0
    %1797 = vmatpush1.msra.mxu0 0.0
    %1798 = vmatprep.subr.mxu0 0.0
    %1799 = vmatpush1.msra.mxu0 0.0
    %1800 = vmatprep.subr.mxu0 0.0
    %1801 = vmatpush1.msra.mxu0 0.0
    %1802 = vmatprep.subr.mxu0 0.0
    %1803 = vmatpush1.msra.mxu0 0.0
    %1804 = vmatprep.subr.mxu0 0.0
    %1805 = vmatpush1.msra.mxu0 0.0
    %1806 = vmatprep.subr.mxu0 0.0
    %1807 = vmatpush1.msra.mxu0 0.0
    %1808 = vmatprep.subr.mxu0 0.0
    %1809 = vmatpush1.msra.mxu0 0.0
    %1810 = vmatprep.subr.mxu0 0.0
    %1811 = vmatpush1.msra.mxu0 0.0
    %1812 = vmatprep.subr.mxu0 0.0
    %1813 = vmatpush1.msra.mxu0 0.0
    %1814 = vmatprep.subr.mxu0 0.0
    %1815 = vmatpush1.msra.mxu0 0.0
    %1816 = vmatprep.subr.mxu0 0.0
    %1817 = vmatpush1.msra.mxu0 0.0
    %1818 = vmatprep.mubr.f32.mxu0 0.0
    %1819 = vmatmul.mubr.f32.gmra.mrb[0].mxu0 %v1728
    %v1820 = vpop.f32.mrb[0].mxu0
    %v1821 = vadd.f32 %v1726, %v1820
    %v1822 = vpop.f32.mrb[0].mxu0
    %1823 = vmatprep.mubr.f32.mxu0 0.0
    %1824 = vmatmul.mubr.f32.gmra.mrb[0].mxu0 %v1731
    %v1825 = vpop.f32.mrb[0].mxu0
    %v1826 = vadd.f32 %v1726, %v1825
    %v1827 = vpop.f32.mrb[0].mxu0
    %1828 = vmatprep.mubr.f32.mxu0 0.0
    %1829 = vmatmul.mubr.f32.gmra.mrb[0].mxu0 %v1734
    %v1830 = vpop.f32.mrb[0].mxu0
    %v1831 = vadd.f32 %v1726, %v1830
    %v1832 = vpop.f32.mrb[0].mxu0
    %1833 = vmatprep.mubr.f32.mxu0 0.0
    %1834 = vmatmul.mubr.f32.gmra.mrb[0].mxu0 %v1737
    %v1835 = vpop.f32.mrb[0].mxu0
    %v1836 = vadd.f32 %v1726, %v1835
    %v1837 = vpop.f32.mrb[0].mxu0
    %1838 = vmatprep.mubr.f32.mxu0 0.0
    %1839 = vmatmul.mubr.f32.gmra.mrb[0].mxu0 %v1740
    %v1840 = vpop.f32.mrb[0].mxu0
    %v1841 = vadd.f32 %v1726, %v1840
    %v1842 = vpop.f32.mrb[0].mxu0
    %1843 = vmatprep.mubr.f32.mxu0 0.0
    %1844 = vmatmul.mubr.f32.gmra.mrb[0].mxu0 %v1743
    %v1845 = vpop.f32.mrb[0].mxu0
    %v1846 = vadd.f32 %v1726, %v1845
    %v1847 = vpop.f32.mrb[0].mxu0
    %1848 = vmatprep.mubr.f32.mxu0 0.0
    %1849 = vmatmul.mubr.f32.gmra.mrb[0].mxu0 %v1746
    %v1850 = vpop.f32.mrb[0].mxu0
    %v1851 = vadd.f32 %v1726, %v1850
    %v1852 = vpop.f32.mrb[0].mxu0
    %1853 = vmatprep.mubr.f32.mxu0 0.0
    %1854 = vmatmul.mubr.f32.gmra.mrb[0].mxu0 %v1749
    %v1855 = vpop.f32.mrb[0].mxu0
    %v1856 = vadd.f32 %v1726, %v1855
    %v1857 = vpop.f32.mrb[0].mxu0
    %1858 = vmatprep.mubr.f32.mxu0 0.0
    %1859 = vmatmul.mubr.f32.gmra.mrb[0].mxu0 %v1752
    %v1860 = vpop.f32.mrb[0].mxu0
    %v1861 = vadd.f32 %v1726, %v1860
    %v1862 = vpop.f32.mrb[0].mxu0
    %1863 = vdwg.mxu0
    %vm1864 = vcmp.gt.f32.partialorder %v1821, 0.0
    %vm1865 = vcmp.gt.f32.partialorder %v1826, 0.0
    %vm1866 = vcmp.gt.f32.partialorder %v1831, 0.0
    %vm1867 = vcmp.gt.f32.partialorder %v1836, 0.0
    %vm1868 = vcmp.gt.f32.partialorder %v1841, 0.0
    %vm1869 = vcmp.gt.f32.partialorder %v1846, 0.0
    %vm1870 = vcmp.gt.f32.partialorder %v1851, 0.0
    %vm1871 = vcmp.gt.f32.partialorder %v1856, 0.0
    %vm1872 = vcmp.gt.f32.partialorder %v1861, 0.0
    %v1873 = vmul.f32 %v1821, 0.01
    %v1874 = vmul.f32 %v1826, 0.01
    %v1875 = vmul.f32 %v1831, 0.01
    %v1876 = vmul.f32 %v1836, 0.01
    %v1877 = vmul.f32 %v1841, 0.01
    %v1878 = vmul.f32 %v1846, 0.01
    %v1879 = vmul.f32 %v1851, 0.01
    %v1880 = vmul.f32 %v1856, 0.01
    %v1881 = vmul.f32 %v1861, 0.01
    %v1882 = vsel %vm1864, %v1821, %v1873
    %v1883 = vsel %vm1865, %v1826, %v1874
    %v1884 = vsel %vm1866, %v1831, %v1875
    %v1885 = vsel %vm1867, %v1836, %v1876
    %v1886 = vsel %vm1868, %v1841, %v1877
    %v1887 = vsel %vm1869, %v1846, %v1878
    %v1888 = vsel %vm1870, %v1851, %v1879
    %v1889 = vsel %vm1871, %v1856, %v1880
    %v1890 = vsel %vm1872, %v1861, %v1881
    %s1891 = scalar_lea.vmem [#allocation11], 32
    %v1892 = vld [vmem:[%s1891] sm:$0xff]
    %v1893 = vld [vmem:[%s1891 + $0x8] sm:$0xff]
    %v1894 = vld [vmem:[%s1891 + $0x10] sm:$0xff]
    %v1895 = vld [vmem:[%s1891 + $0x18] sm:$0xff]
    %v1896 = vld [vmem:[%s10 + $0x1] sm:$0x1]
    %v1897 = vlaneseq
    %v1898 = vshrl.u32 %v1897, 7
    %v1899 = vsub.s32 0, %v1898
    %v1900 = vrot.slane %v1896, %v1899
    %v1902 = vsel %vm308, %v1882, 0
    %v1905 = vsel %vm308, %v1883, 0
    %v1908 = vsel %vm308, %v1884, 0
    %v1911 = vsel %vm308, %v1885, 0
    %v1914 = vsel %vm308, %v1886, 0
    %v1917 = vsel %vm308, %v1887, 0
    %v1920 = vsel %vm308, %v1888, 0
    %v1923 = vsel %vm308, %v1889, 0
    %v1926 = vsel %vm308, %v1890, 0
    %1928 = vmatprep.subr.mxu0 0.0
    %1929 = vmatpush1.msra.mxu0 %v1892
    %1930 = vmatprep.subr.mxu0 0.0
    %1931 = vmatpush1.msra.mxu0 %v1893
    %1932 = vmatprep.subr.mxu0 0.0
    %1933 = vmatpush1.msra.mxu0 %v1894
    %1934 = vmatprep.subr.mxu0 0.0
    %1935 = vmatpush1.msra.mxu0 %v1895
    %1936 = vmatprep.subr.mxu0 0.0
    %1937 = vmatpush1.msra.mxu0 0.0
    %1938 = vmatprep.subr.mxu0 0.0
    %1939 = vmatpush1.msra.mxu0 0.0
    %1940 = vmatprep.subr.mxu0 0.0
    %1941 = vmatpush1.msra.mxu0 0.0
    %1942 = vmatprep.subr.mxu0 0.0
    %1943 = vmatpush1.msra.mxu0 0.0
    %1944 = vmatprep.subr.mxu0 0.0
    %1945 = vmatpush1.msra.mxu0 0.0
    %1946 = vmatprep.subr.mxu0 0.0
    %1947 = vmatpush1.msra.mxu0 0.0
    %1948 = vmatprep.subr.mxu0 0.0
    %1949 = vmatpush1.msra.mxu0 0.0
    %1950 = vmatprep.subr.mxu0 0.0
    %1951 = vmatpush1.msra.mxu0 0.0
    %1952 = vmatprep.subr.mxu0 0.0
    %1953 = vmatpush1.msra.mxu0 0.0
    %1954 = vmatprep.subr.mxu0 0.0
    %1955 = vmatpush1.msra.mxu0 0.0
    %1956 = vmatprep.subr.mxu0 0.0
    %1957 = vmatpush1.msra.mxu0 0.0
    %1958 = vmatprep.subr.mxu0 0.0
    %1959 = vmatpush1.msra.mxu0 0.0
    %1960 = vmatprep.subr.mxu0 0.0
    %1961 = vmatpush1.msra.mxu0 0.0
    %1962 = vmatprep.subr.mxu0 0.0
    %1963 = vmatpush1.msra.mxu0 0.0
    %1964 = vmatprep.subr.mxu0 0.0
    %1965 = vmatpush1.msra.mxu0 0.0
    %1966 = vmatprep.subr.mxu0 0.0
    %1967 = vmatpush1.msra.mxu0 0.0
    %1968 = vmatprep.subr.mxu0 0.0
    %1969 = vmatpush1.msra.mxu0 0.0
    %1970 = vmatprep.subr.mxu0 0.0
    %1971 = vmatpush1.msra.mxu0 0.0
    %1972 = vmatprep.subr.mxu0 0.0
    %1973 = vmatpush1.msra.mxu0 0.0
    %1974 = vmatprep.subr.mxu0 0.0
    %1975 = vmatpush1.msra.mxu0 0.0
    %1976 = vmatprep.subr.mxu0 0.0
    %1977 = vmatpush1.msra.mxu0 0.0
    %1978 = vmatprep.subr.mxu0 0.0
    %1979 = vmatpush1.msra.mxu0 0.0
    %1980 = vmatprep.subr.mxu0 0.0
    %1981 = vmatpush1.msra.mxu0 0.0
    %1982 = vmatprep.subr.mxu0 0.0
    %1983 = vmatpush1.msra.mxu0 0.0
    %1984 = vmatprep.subr.mxu0 0.0
    %1985 = vmatpush1.msra.mxu0 0.0
    %1986 = vmatprep.subr.mxu0 0.0
    %1987 = vmatpush1.msra.mxu0 0.0
    %1988 = vmatprep.subr.mxu0 0.0
    %1989 = vmatpush1.msra.mxu0 0.0
    %1990 = vmatprep.subr.mxu0 0.0
    %1991 = vmatpush1.msra.mxu0 0.0
    %1992 = vmatprep.mubr.f32.mxu0 0.0
    %1993 = vmatmul.mubr.f32.gmra.mrb[0].mxu0 %v1902
    %v1994 = vpop.f32.mrb[0].mxu0
    %v1995 = vadd.f32 %v1900, %v1994
    %v1996 = vpop.f32.mrb[0].mxu0
    %1997 = vmatprep.mubr.f32.mxu0 0.0
    %1998 = vmatmul.mubr.f32.gmra.mrb[0].mxu0 %v1905
    %v1999 = vpop.f32.mrb[0].mxu0
    %v2000 = vadd.f32 %v1900, %v1999
    %v2001 = vpop.f32.mrb[0].mxu0
    %2002 = vmatprep.mubr.f32.mxu0 0.0
    %2003 = vmatmul.mubr.f32.gmra.mrb[0].mxu0 %v1908
    %v2004 = vpop.f32.mrb[0].mxu0
    %v2005 = vadd.f32 %v1900, %v2004
    %v2006 = vpop.f32.mrb[0].mxu0
    %2007 = vmatprep.mubr.f32.mxu0 0.0
    %2008 = vmatmul.mubr.f32.gmra.mrb[0].mxu0 %v1911
    %v2009 = vpop.f32.mrb[0].mxu0
    %v2010 = vadd.f32 %v1900, %v2009
    %v2011 = vpop.f32.mrb[0].mxu0
    %2012 = vmatprep.mubr.f32.mxu0 0.0
    %2013 = vmatmul.mubr.f32.gmra.mrb[0].mxu0 %v1914
    %v2014 = vpop.f32.mrb[0].mxu0
    %v2015 = vadd.f32 %v1900, %v2014
    %v2016 = vpop.f32.mrb[0].mxu0
    %2017 = vmatprep.mubr.f32.mxu0 0.0
    %2018 = vmatmul.mubr.f32.gmra.mrb[0].mxu0 %v1917
    %v2019 = vpop.f32.mrb[0].mxu0
    %v2020 = vadd.f32 %v1900, %v2019
    %v2021 = vpop.f32.mrb[0].mxu0
    %2022 = vmatprep.mubr.f32.mxu0 0.0
    %2023 = vmatmul.mubr.f32.gmra.mrb[0].mxu0 %v1920
    %v2024 = vpop.f32.mrb[0].mxu0
    %v2025 = vadd.f32 %v1900, %v2024
    %v2026 = vpop.f32.mrb[0].mxu0
    %2027 = vmatprep.mubr.f32.mxu0 0.0
    %2028 = vmatmul.mubr.f32.gmra.mrb[0].mxu0 %v1923
    %v2029 = vpop.f32.mrb[0].mxu0
    %v2030 = vadd.f32 %v1900, %v2029
    %v2031 = vpop.f32.mrb[0].mxu0
    %2032 = vmatprep.mubr.f32.mxu0 0.0
    %2033 = vmatmul.mubr.f32.gmra.mrb[0].mxu0 %v1926
    %v2034 = vpop.f32.mrb[0].mxu0
    %v2035 = vadd.f32 %v1900, %v2034
    %v2036 = vpop.f32.mrb[0].mxu0
    %2037 = vdwg.mxu0
    %2047 = vrot.lane.b32.xlu0 %v1995, 96
    %v2048 = vpop.permute.xlu0 %2047
    %2049 = vrot.lane.b32.xlu0 %v2000, 96
    %v2050 = vpop.permute.xlu0 %2049
    %2051 = vrot.lane.b32.xlu0 %v2005, 96
    %v2052 = vpop.permute.xlu0 %2051
    %2053 = vrot.lane.b32.xlu0 %v2010, 96
    %v2054 = vpop.permute.xlu0 %2053
    %2055 = vrot.lane.b32.xlu0 %v2015, 96
    %v2056 = vpop.permute.xlu0 %2055
    %2057 = vrot.lane.b32.xlu0 %v2020, 96
    %v2058 = vpop.permute.xlu0 %2057
    %2059 = vrot.lane.b32.xlu0 %v2025, 96
    %v2060 = vpop.permute.xlu0 %2059
    %2061 = vrot.lane.b32.xlu0 %v2030, 96
    %v2062 = vpop.permute.xlu0 %2061
    %2063 = vrot.lane.b32.xlu0 %v2035, 96
    %v2064 = vpop.permute.xlu0 %2063
    %v2065 = vsel %vm308, %v1995, 0
    %v2067 = vsel %vm308, %v2000, 0
    %v2069 = vsel %vm308, %v2005, 0
    %v2071 = vsel %vm308, %v2010, 0
    %v2073 = vsel %vm308, %v2015, 0
    %v2075 = vsel %vm308, %v2020, 0
    %v2077 = vsel %vm308, %v2025, 0
    %v2079 = vsel %vm308, %v2030, 0
    %v2081 = vsel %vm308, %v2035, 0
    %v2083 = vsel %vm308, %v2048, 0
    %v2085 = vsel %vm308, %v2050, 0
    %v2087 = vsel %vm308, %v2052, 0
    %v2089 = vsel %vm308, %v2054, 0
    %v2091 = vsel %vm308, %v2056, 0
    %v2093 = vsel %vm308, %v2058, 0
    %v2095 = vsel %vm308, %v2060, 0
    %v2097 = vsel %vm308, %v2062, 0
    %v2099 = vsel %vm308, %v2064, 0
    %2101 = vmatprep.subr.mxu0 0.0
    %2102 = vmatpush1.xpose.msra.mxu0 %v2083
    %2103 = vmatprep.subr.mxu0 0.0
    %2104 = vmatpush1.xpose.msra.mxu0 %v2085
    %2105 = vmatprep.subr.mxu0 0.0
    %2106 = vmatpush1.xpose.msra.mxu0 %v2087
    %2107 = vmatprep.subr.mxu0 0.0
    %2108 = vmatpush1.xpose.msra.mxu0 %v2089
    %2109 = vmatprep.subr.mxu0 0.0
    %2110 = vmatpush1.xpose.msra.mxu0 %v2091
    %2111 = vmatprep.subr.mxu0 0.0
    %2112 = vmatpush1.xpose.msra.mxu0 %v2093
    %2113 = vmatprep.subr.mxu0 0.0
    %2114 = vmatpush1.xpose.msra.mxu0 %v2095
    %2115 = vmatprep.subr.mxu0 0.0
    %2116 = vmatpush1.xpose.msra.mxu0 %v2097
    %2117 = vmatprep.subr.mxu0 0.0
    %2118 = vmatpush1.xpose.msra.mxu0 %v2099
    %2119 = vmatprep.subr.mxu0 0.0
    %2120 = vmatpush1.xpose.msra.mxu0 0.0
    %2121 = vmatprep.subr.mxu0 0.0
    %2122 = vmatpush1.xpose.msra.mxu0 0.0
    %2123 = vmatprep.subr.mxu0 0.0
    %2124 = vmatpush1.xpose.msra.mxu0 0.0
    %2125 = vmatprep.subr.mxu0 0.0
    %2126 = vmatpush1.xpose.msra.mxu0 0.0
    %2127 = vmatprep.subr.mxu0 0.0
    %2128 = vmatpush1.xpose.msra.mxu0 0.0
    %2129 = vmatprep.subr.mxu0 0.0
    %2130 = vmatpush1.xpose.msra.mxu0 0.0
    %2131 = vmatprep.subr.mxu0 0.0
    %2132 = vmatpush1.xpose.msra.mxu0 0.0
    %2133 = vmatprep.subr.mxu0 0.0
    %2134 = vmatpush1.xpose.msra.mxu0 0.0
    %2135 = vmatprep.subr.mxu0 0.0
    %2136 = vmatpush1.xpose.msra.mxu0 0.0
    %2137 = vmatprep.subr.mxu0 0.0
    %2138 = vmatpush1.xpose.msra.mxu0 0.0
    %2139 = vmatprep.subr.mxu0 0.0
    %2140 = vmatpush1.xpose.msra.mxu0 0.0
    %2141 = vmatprep.subr.mxu0 0.0
    %2142 = vmatpush1.xpose.msra.mxu0 0.0
    %2143 = vmatprep.subr.mxu0 0.0
    %2144 = vmatpush1.xpose.msra.mxu0 0.0
    %2145 = vmatprep.subr.mxu0 0.0
    %2146 = vmatpush1.xpose.msra.mxu0 0.0
    %2147 = vmatprep.subr.mxu0 0.0
    %2148 = vmatpush1.xpose.msra.mxu0 0.0
    %2149 = vmatprep.subr.mxu0 0.0
    %2150 = vmatpush1.xpose.msra.mxu0 0.0
    %2151 = vmatprep.subr.mxu0 0.0
    %2152 = vmatpush1.xpose.msra.mxu0 0.0
    %2153 = vmatprep.subr.mxu0 0.0
    %2154 = vmatpush1.xpose.msra.mxu0 0.0
    %2155 = vmatprep.subr.mxu0 0.0
    %2156 = vmatpush1.xpose.msra.mxu0 0.0
    %2157 = vmatprep.subr.mxu0 0.0
    %2158 = vmatpush1.xpose.msra.mxu0 0.0
    %2159 = vmatprep.subr.mxu0 0.0
    %2160 = vmatpush1.xpose.msra.mxu0 0.0
    %2161 = vmatprep.subr.mxu0 0.0
    %2162 = vmatpush1.xpose.msra.mxu0 0.0
    %2163 = vmatprep.subr.mxu0 0.0
    %2164 = vmatpush1.xpose.msra.mxu0 0.0
    %2165 = vmatprep.mubr.f32.mxu0 0.0
    %2166 = vmatmul.mubr.f32.gmra.mrb[0].mxu0 %v2065
    %v2167 = vpop.f32.mrb[0].mxu0
    %v2168 = vadd.f32 0.0, %v2167
    %v2169 = vpop.f32.mrb[0].mxu0
    %2170 = vmatprep.mubr.f32.mxu0 0.0
    %2171 = vmatmul.mubr.f32.gmra.mrb[0].mxu0 %v2067
    %v2172 = vpop.f32.mrb[0].mxu0
    %v2173 = vadd.f32 0.0, %v2172
    %v2174 = vpop.f32.mrb[0].mxu0
    %2175 = vmatprep.mubr.f32.mxu0 0.0
    %2176 = vmatmul.mubr.f32.gmra.mrb[0].mxu0 %v2069
    %v2177 = vpop.f32.mrb[0].mxu0
    %v2178 = vadd.f32 0.0, %v2177
    %v2179 = vpop.f32.mrb[0].mxu0
    %2180 = vmatprep.mubr.f32.mxu0 0.0
    %2181 = vmatmul.mubr.f32.gmra.mrb[0].mxu0 %v2071
    %v2182 = vpop.f32.mrb[0].mxu0
    %v2183 = vadd.f32 0.0, %v2182
    %v2184 = vpop.f32.mrb[0].mxu0
    %2185 = vmatprep.mubr.f32.mxu0 0.0
    %2186 = vmatmul.mubr.f32.gmra.mrb[0].mxu0 %v2073
    %v2187 = vpop.f32.mrb[0].mxu0
    %v2188 = vadd.f32 0.0, %v2187
    %v2189 = vpop.f32.mrb[0].mxu0
    %2190 = vmatprep.mubr.f32.mxu0 0.0
    %2191 = vmatmul.mubr.f32.gmra.mrb[0].mxu0 %v2075
    %v2192 = vpop.f32.mrb[0].mxu0
    %v2193 = vadd.f32 0.0, %v2192
    %v2194 = vpop.f32.mrb[0].mxu0
    %2195 = vmatprep.mubr.f32.mxu0 0.0
    %2196 = vmatmul.mubr.f32.gmra.mrb[0].mxu0 %v2077
    %v2197 = vpop.f32.mrb[0].mxu0
    %v2198 = vadd.f32 0.0, %v2197
    %v2199 = vpop.f32.mrb[0].mxu0
    %2200 = vmatprep.mubr.f32.mxu0 0.0
    %2201 = vmatmul.mubr.f32.gmra.mrb[0].mxu0 %v2079
    %v2202 = vpop.f32.mrb[0].mxu0
    %v2203 = vadd.f32 0.0, %v2202
    %v2204 = vpop.f32.mrb[0].mxu0
    %2205 = vmatprep.mubr.f32.mxu0 0.0
    %2206 = vmatmul.mubr.f32.gmra.mrb[0].mxu0 %v2081
    %v2207 = vpop.f32.mrb[0].mxu0
    %v2208 = vadd.f32 0.0, %v2207
    %v2209 = vpop.f32.mrb[0].mxu0
    %2210 = vdwg.mxu0
    %v2211 = vmul.f32 %v2168, 0.17677669
    %v2212 = vmul.f32 %v2173, 0.17677669
    %v2213 = vmul.f32 %v2178, 0.17677669
    %v2214 = vmul.f32 %v2183, 0.17677669
    %v2215 = vmul.f32 %v2188, 0.17677669
    %v2216 = vmul.f32 %v2193, 0.17677669
    %v2217 = vmul.f32 %v2198, 0.17677669
    %v2218 = vmul.f32 %v2203, 0.17677669
    %v2219 = vmul.f32 %v2208, 0.17677669
    %v2220 = vadd.f32 %v2211, %v504
    %v2221 = vadd.f32 %v2212, %v505
    %v2222 = vadd.f32 %v2213, %v506
    %v2223 = vadd.f32 %v2214, %v507
    %v2224 = vadd.f32 %v2215, %v508
    %v2225 = vadd.f32 %v2216, %v509
    %v2226 = vadd.f32 %v2217, %v510
    %v2227 = vadd.f32 %v2218, %v511
    %v2228 = vadd.f32 %v2219, %v512
    %v2229 = vsel %vm522, %v2220, -inf
    %2230 = vmax.xlane.f32.xlu0 %v2229
    %v2231 = vpop.xlane.xlu0 %2230
    %v2232 = vsel %vm522, %v2221, -inf
    %2233 = vmax.xlane.f32.xlu0 %v2232
    %v2234 = vpop.xlane.xlu0 %2233
    %v2235 = vsel %vm522, %v2222, -inf
    %2236 = vmax.xlane.f32.xlu0 %v2235
    %v2237 = vpop.xlane.xlu0 %2236
    %v2238 = vsel %vm522, %v2223, -inf
    %2239 = vmax.xlane.f32.xlu0 %v2238
    %v2240 = vpop.xlane.xlu0 %2239
    %v2241 = vsel %vm522, %v2224, -inf
    %2242 = vmax.xlane.f32.xlu0 %v2241
    %v2243 = vpop.xlane.xlu0 %2242
    %v2244 = vsel %vm522, %v2225, -inf
    %2245 = vmax.xlane.f32.xlu0 %v2244
    %v2246 = vpop.xlane.xlu0 %2245
    %v2247 = vsel %vm522, %v2226, -inf
    %2248 = vmax.xlane.f32.xlu0 %v2247
    %v2249 = vpop.xlane.xlu0 %2248
    %v2250 = vsel %vm522, %v2227, -inf
    %2251 = vmax.xlane.f32.xlu0 %v2250
    %v2252 = vpop.xlane.xlu0 %2251
    %v2253 = vsel %vm522, %v2228, -inf
    %2254 = vmax.xlane.f32.xlu0 %v2253
    %v2255 = vpop.xlane.xlu0 %2254
    %v2256 = vsub.f32 %v2220, %v2231
    %v2257 = vsub.f32 %v2221, %v2234
    %v2258 = vsub.f32 %v2222, %v2237
    %v2259 = vsub.f32 %v2223, %v2240
    %v2260 = vsub.f32 %v2224, %v2243
    %v2261 = vsub.f32 %v2225, %v2246
    %v2262 = vsub.f32 %v2226, %v2249
    %v2263 = vsub.f32 %v2227, %v2252
    %v2264 = vsub.f32 %v2228, %v2255
    %v2265 = vmul.f32 %v2256, 1.442695
    %v2266 = vpow.pop %v2265
    %v2267 = vmul.f32 %v2257, 1.442695
    %v2268 = vpow.pop %v2267
    %v2269 = vmul.f32 %v2258, 1.442695
    %v2270 = vpow.pop %v2269
    %v2271 = vmul.f32 %v2259, 1.442695
    %v2272 = vpow.pop %v2271
    %v2273 = vmul.f32 %v2260, 1.442695
    %v2274 = vpow.pop %v2273
    %v2275 = vmul.f32 %v2261, 1.442695
    %v2276 = vpow.pop %v2275
    %v2277 = vmul.f32 %v2262, 1.442695
    %v2278 = vpow.pop %v2277
    %v2279 = vmul.f32 %v2263, 1.442695
    %v2280 = vpow.pop %v2279
    %v2281 = vmul.f32 %v2264, 1.442695
    %v2282 = vpow.pop %v2281
    %v2283 = vsel %vm522, %v2266, 0.0
    %2284 = vadd.xlane.f32.xlu0 %v2283
    %v2285 = vpop.xlane.xlu0 %2284
    %v2286 = vsel %vm522, %v2268, 0.0
    %2287 = vadd.xlane.f32.xlu0 %v2286
    %v2288 = vpop.xlane.xlu0 %2287
    %v2289 = vsel %vm522, %v2270, 0.0
    %2290 = vadd.xlane.f32.xlu0 %v2289
    %v2291 = vpop.xlane.xlu0 %2290
    %v2292 = vsel %vm522, %v2272, 0.0
    %2293 = vadd.xlane.f32.xlu0 %v2292
    %v2294 = vpop.xlane.xlu0 %2293
    %v2295 = vsel %vm522, %v2274, 0.0
    %2296 = vadd.xlane.f32.xlu0 %v2295
    %v2297 = vpop.xlane.xlu0 %2296
    %v2298 = vsel %vm522, %v2276, 0.0
    %2299 = vadd.xlane.f32.xlu0 %v2298
    %v2300 = vpop.xlane.xlu0 %2299
    %v2301 = vsel %vm522, %v2278, 0.0
    %2302 = vadd.xlane.f32.xlu0 %v2301
    %v2303 = vpop.xlane.xlu0 %2302
    %v2304 = vsel %vm522, %v2280, 0.0
    %2305 = vadd.xlane.f32.xlu0 %v2304
    %v2306 = vpop.xlane.xlu0 %2305
    %v2307 = vsel %vm522, %v2282, 0.0
    %2308 = vadd.xlane.f32.xlu0 %v2307
    %v2309 = vpop.xlane.xlu0 %2308
    %v2310 = vrcp.pop %v2285
    %v2311 = vrcp.pop %v2288
    %v2312 = vrcp.pop %v2291
    %v2313 = vrcp.pop %v2294
    %v2314 = vrcp.pop %v2297
    %v2315 = vrcp.pop %v2300
    %v2316 = vrcp.pop %v2303
    %v2317 = vrcp.pop %v2306
    %v2318 = vrcp.pop %v2309
    %v2319 = vmul.f32 %v2266, %v2310
    %v2320 = vmul.f32 %v2268, %v2311
    %v2321 = vmul.f32 %v2270, %v2312
    %v2322 = vmul.f32 %v2272, %v2313
    %v2323 = vmul.f32 %v2274, %v2314
    %v2324 = vmul.f32 %v2276, %v2315
    %v2325 = vmul.f32 %v2278, %v2316
    %v2326 = vmul.f32 %v2280, %v2317
    %v2327 = vmul.f32 %v2282, %v2318
    %2328 = vrot.lane.b32.xlu0 %v1995, 64
    %v2329 = vpop.permute.xlu0 %2328
    %2330 = vrot.lane.b32.xlu0 %v2000, 64
    %v2331 = vpop.permute.xlu0 %2330
    %2332 = vrot.lane.b32.xlu0 %v2005, 64
    %v2333 = vpop.permute.xlu0 %2332
    %2334 = vrot.lane.b32.xlu0 %v2010, 64
    %v2335 = vpop.permute.xlu0 %2334
    %2336 = vrot.lane.b32.xlu0 %v2015, 64
    %v2337 = vpop.permute.xlu0 %2336
    %2338 = vrot.lane.b32.xlu0 %v2020, 64
    %v2339 = vpop.permute.xlu0 %2338
    %2340 = vrot.lane.b32.xlu0 %v2025, 64
    %v2341 = vpop.permute.xlu0 %2340
    %2342 = vrot.lane.b32.xlu0 %v2030, 64
    %v2343 = vpop.permute.xlu0 %2342
    %2344 = vrot.lane.b32.xlu0 %v2035, 64
    %v2345 = vpop.permute.xlu0 %2344
    %v2356 = vsel %vm522, %v2319, 0
    %v2359 = vsel %vm522, %v2320, 0
    %v2362 = vsel %vm522, %v2321, 0
    %v2365 = vsel %vm522, %v2322, 0
    %v2368 = vsel %vm522, %v2323, 0
    %v2371 = vsel %vm522, %v2324, 0
    %v2374 = vsel %vm522, %v2325, 0
    %v2377 = vsel %vm522, %v2326, 0
    %v2380 = vsel %vm522, %v2327, 0
    %2382 = vmatprep.subr.mxu0 0.0
    %2383 = vmatpush1.msra.mxu0 %v2329
    %2384 = vmatprep.subr.mxu0 0.0
    %2385 = vmatpush1.msra.mxu0 %v2331
    %2386 = vmatprep.subr.mxu0 0.0
    %2387 = vmatpush1.msra.mxu0 %v2333
    %2388 = vmatprep.subr.mxu0 0.0
    %2389 = vmatpush1.msra.mxu0 %v2335
    %2390 = vmatprep.subr.mxu0 0.0
    %2391 = vmatpush1.msra.mxu0 %v2337
    %2392 = vmatprep.subr.mxu0 0.0
    %2393 = vmatpush1.msra.mxu0 %v2339
    %2394 = vmatprep.subr.mxu0 0.0
    %2395 = vmatpush1.msra.mxu0 %v2341
    %2396 = vmatprep.subr.mxu0 0.0
    %2397 = vmatpush1.msra.mxu0 %v2343
    %2398 = vmatprep.subr.mxu0 0.0
    %2399 = vmatpush1.msra.mxu0 %v2345
    %2400 = vmatprep.subr.mxu0 0.0
    %2401 = vmatpush1.msra.mxu0 0.0
    %2402 = vmatprep.subr.mxu0 0.0
    %2403 = vmatpush1.msra.mxu0 0.0
    %2404 = vmatprep.subr.mxu0 0.0
    %2405 = vmatpush1.msra.mxu0 0.0
    %2406 = vmatprep.subr.mxu0 0.0
    %2407 = vmatpush1.msra.mxu0 0.0
    %2408 = vmatprep.subr.mxu0 0.0
    %2409 = vmatpush1.msra.mxu0 0.0
    %2410 = vmatprep.subr.mxu0 0.0
    %2411 = vmatpush1.msra.mxu0 0.0
    %2412 = vmatprep.subr.mxu0 0.0
    %2413 = vmatpush1.msra.mxu0 0.0
    %2414 = vmatprep.subr.mxu0 0.0
    %2415 = vmatpush1.msra.mxu0 0.0
    %2416 = vmatprep.subr.mxu0 0.0
    %2417 = vmatpush1.msra.mxu0 0.0
    %2418 = vmatprep.subr.mxu0 0.0
    %2419 = vmatpush1.msra.mxu0 0.0
    %2420 = vmatprep.subr.mxu0 0.0
    %2421 = vmatpush1.msra.mxu0 0.0
    %2422 = vmatprep.subr.mxu0 0.0
    %2423 = vmatpush1.msra.mxu0 0.0
    %2424 = vmatprep.subr.mxu0 0.0
    %2425 = vmatpush1.msra.mxu0 0.0
    %2426 = vmatprep.subr.mxu0 0.0
    %2427 = vmatpush1.msra.mxu0 0.0
    %2428 = vmatprep.subr.mxu0 0.0
    %2429 = vmatpush1.msra.mxu0 0.0
    %2430 = vmatprep.subr.mxu0 0.0
    %2431 = vmatpush1.msra.mxu0 0.0
    %2432 = vmatprep.subr.mxu0 0.0
    %2433 = vmatpush1.msra.mxu0 0.0
    %2434 = vmatprep.subr.mxu0 0.0
    %2435 = vmatpush1.msra.mxu0 0.0
    %2436 = vmatprep.subr.mxu0 0.0
    %2437 = vmatpush1.msra.mxu0 0.0
    %2438 = vmatprep.subr.mxu0 0.0
    %2439 = vmatpush1.msra.mxu0 0.0
    %2440 = vmatprep.subr.mxu0 0.0
    %2441 = vmatpush1.msra.mxu0 0.0
    %2442 = vmatprep.subr.mxu0 0.0
    %2443 = vmatpush1.msra.mxu0 0.0
    %2444 = vmatprep.subr.mxu0 0.0
    %2445 = vmatpush1.msra.mxu0 0.0
    %2446 = vmatprep.mubr.f32.mxu0 0.0
    %2447 = vmatmul.mubr.f32.gmra.mrb[0].mxu0 %v2356
    %v2448 = vpop.f32.mrb[0].mxu0
    %v2449 = vadd.f32 0.0, %v2448
    %v2450 = vpop.f32.mrb[0].mxu0
    %2451 = vmatprep.mubr.f32.mxu0 0.0
    %2452 = vmatmul.mubr.f32.gmra.mrb[0].mxu0 %v2359
    %v2453 = vpop.f32.mrb[0].mxu0
    %v2454 = vadd.f32 0.0, %v2453
    %v2455 = vpop.f32.mrb[0].mxu0
    %2456 = vmatprep.mubr.f32.mxu0 0.0
    %2457 = vmatmul.mubr.f32.gmra.mrb[0].mxu0 %v2362
    %v2458 = vpop.f32.mrb[0].mxu0
    %v2459 = vadd.f32 0.0, %v2458
    %v2460 = vpop.f32.mrb[0].mxu0
    %2461 = vmatprep.mubr.f32.mxu0 0.0
    %2462 = vmatmul.mubr.f32.gmra.mrb[0].mxu0 %v2365
    %v2463 = vpop.f32.mrb[0].mxu0
    %v2464 = vadd.f32 0.0, %v2463
    %v2465 = vpop.f32.mrb[0].mxu0
    %2466 = vmatprep.mubr.f32.mxu0 0.0
    %2467 = vmatmul.mubr.f32.gmra.mrb[0].mxu0 %v2368
    %v2468 = vpop.f32.mrb[0].mxu0
    %v2469 = vadd.f32 0.0, %v2468
    %v2470 = vpop.f32.mrb[0].mxu0
    %2471 = vmatprep.mubr.f32.mxu0 0.0
    %2472 = vmatmul.mubr.f32.gmra.mrb[0].mxu0 %v2371
    %v2473 = vpop.f32.mrb[0].mxu0
    %v2474 = vadd.f32 0.0, %v2473
    %v2475 = vpop.f32.mrb[0].mxu0
    %2476 = vmatprep.mubr.f32.mxu0 0.0
    %2477 = vmatmul.mubr.f32.gmra.mrb[0].mxu0 %v2374
    %v2478 = vpop.f32.mrb[0].mxu0
    %v2479 = vadd.f32 0.0, %v2478
    %v2480 = vpop.f32.mrb[0].mxu0
    %2481 = vmatprep.mubr.f32.mxu0 0.0
    %2482 = vmatmul.mubr.f32.gmra.mrb[0].mxu0 %v2377
    %v2483 = vpop.f32.mrb[0].mxu0
    %v2484 = vadd.f32 0.0, %v2483
    %v2485 = vpop.f32.mrb[0].mxu0
    %2486 = vmatprep.mubr.f32.mxu0 0.0
    %2487 = vmatmul.mubr.f32.gmra.mrb[0].mxu0 %v2380
    %v2488 = vpop.f32.mrb[0].mxu0
    %v2489 = vadd.f32 0.0, %v2488
    %v2490 = vpop.f32.mrb[0].mxu0
    %2491 = vdwg.mxu0
    %v2492 = vsel %vm308, %v2449, 0.0
    %2493 = vadd.xlane.f32.xlu0 %v2492
    %v2494 = vpop.xlane.xlu0 %2493
    %v2495 = vsel %vm308, %v2454, 0.0
    %2496 = vadd.xlane.f32.xlu0 %v2495
    %v2497 = vpop.xlane.xlu0 %2496
    %v2498 = vsel %vm308, %v2459, 0.0
    %2499 = vadd.xlane.f32.xlu0 %v2498
    %v2500 = vpop.xlane.xlu0 %2499
    %v2501 = vsel %vm308, %v2464, 0.0
    %2502 = vadd.xlane.f32.xlu0 %v2501
    %v2503 = vpop.xlane.xlu0 %2502
    %v2504 = vsel %vm308, %v2469, 0.0
    %2505 = vadd.xlane.f32.xlu0 %v2504
    %v2506 = vpop.xlane.xlu0 %2505
    %v2507 = vsel %vm308, %v2474, 0.0
    %2508 = vadd.xlane.f32.xlu0 %v2507
    %v2509 = vpop.xlane.xlu0 %2508
    %v2510 = vsel %vm308, %v2479, 0.0
    %2511 = vadd.xlane.f32.xlu0 %v2510
    %v2512 = vpop.xlane.xlu0 %2511
    %v2513 = vsel %vm308, %v2484, 0.0
    %2514 = vadd.xlane.f32.xlu0 %v2513
    %v2515 = vpop.xlane.xlu0 %2514
    %v2516 = vsel %vm308, %v2489, 0.0
    %2517 = vadd.xlane.f32.xlu0 %v2516
    %v2518 = vpop.xlane.xlu0 %2517
    %v2519 = vmul.f32 %v2494, %v1442
    %v2520 = vmul.f32 %v2497, %v1442
    %v2521 = vmul.f32 %v2500, %v1442
    %v2522 = vmul.f32 %v2503, %v1442
    %v2523 = vmul.f32 %v2506, %v1442
    %v2524 = vmul.f32 %v2509, %v1442
    %v2525 = vmul.f32 %v2512, %v1442
    %v2526 = vmul.f32 %v2515, %v1442
    %v2527 = vmul.f32 %v2518, %v1442
    %v2528 = vsub.f32 %v2449, %v2519
    %v2529 = vsub.f32 %v2454, %v2520
    %v2530 = vsub.f32 %v2459, %v2521
    %v2531 = vsub.f32 %v2464, %v2522
    %v2532 = vsub.f32 %v2469, %v2523
    %v2533 = vsub.f32 %v2474, %v2524
    %v2534 = vsub.f32 %v2479, %v2525
    %v2535 = vsub.f32 %v2484, %v2526
    %v2536 = vsub.f32 %v2489, %v2527
    %v2537 = vmul.f32 %v2528, %v2528
    %v2538 = vmul.f32 %v2529, %v2529
    %v2539 = vmul.f32 %v2530, %v2530
    %v2540 = vmul.f32 %v2531, %v2531
    %v2541 = vmul.f32 %v2532, %v2532
    %v2542 = vmul.f32 %v2533, %v2533
    %v2543 = vmul.f32 %v2534, %v2534
    %v2544 = vmul.f32 %v2535, %v2535
    %v2545 = vmul.f32 %v2536, %v2536
    %v2546 = vsel %vm308, %v2537, 0.0
    %2547 = vadd.xlane.f32.xlu0 %v2546
    %v2548 = vpop.xlane.xlu0 %2547
    %v2549 = vsel %vm308, %v2538, 0.0
    %2550 = vadd.xlane.f32.xlu0 %v2549
    %v2551 = vpop.xlane.xlu0 %2550
    %v2552 = vsel %vm308, %v2539, 0.0
    %2553 = vadd.xlane.f32.xlu0 %v2552
    %v2554 = vpop.xlane.xlu0 %2553
    %v2555 = vsel %vm308, %v2540, 0.0
    %2556 = vadd.xlane.f32.xlu0 %v2555
    %v2557 = vpop.xlane.xlu0 %2556
    %v2558 = vsel %vm308, %v2541, 0.0
    %2559 = vadd.xlane.f32.xlu0 %v2558
    %v2560 = vpop.xlane.xlu0 %2559
    %v2561 = vsel %vm308, %v2542, 0.0
    %2562 = vadd.xlane.f32.xlu0 %v2561
    %v2563 = vpop.xlane.xlu0 %2562
    %v2564 = vsel %vm308, %v2543, 0.0
    %2565 = vadd.xlane.f32.xlu0 %v2564
    %v2566 = vpop.xlane.xlu0 %2565
    %v2567 = vsel %vm308, %v2544, 0.0
    %2568 = vadd.xlane.f32.xlu0 %v2567
    %v2569 = vpop.xlane.xlu0 %2568
    %v2570 = vsel %vm308, %v2545, 0.0
    %2571 = vadd.xlane.f32.xlu0 %v2570
    %v2572 = vpop.xlane.xlu0 %2571
    %v2573 = vmul.f32 %v2548, %v1442
    %v2574 = vmul.f32 %v2551, %v1442
    %v2575 = vmul.f32 %v2554, %v1442
    %v2576 = vmul.f32 %v2557, %v1442
    %v2577 = vmul.f32 %v2560, %v1442
    %v2578 = vmul.f32 %v2563, %v1442
    %v2579 = vmul.f32 %v2566, %v1442
    %v2580 = vmul.f32 %v2569, %v1442
    %v2581 = vmul.f32 %v2572, %v1442
    %v2582 = vld [vmem:[%s11 + $0x1] sm:$0x1]
    %v2583 = vlaneseq
    %v2584 = vshrl.u32 %v2583, 7
    %v2585 = vsub.s32 0, %v2584
    %v2586 = vrot.slane %v2582, %v2585
    %v2587 = vmul.f32 %v2586, %v2528
    %v2588 = vmul.f32 %v2586, %v2529
    %v2589 = vmul.f32 %v2586, %v2530
    %v2590 = vmul.f32 %v2586, %v2531
    %v2591 = vmul.f32 %v2586, %v2532
    %v2592 = vmul.f32 %v2586, %v2533
    %v2593 = vmul.f32 %v2586, %v2534
    %v2594 = vmul.f32 %v2586, %v2535
    %v2595 = vmul.f32 %v2586, %v2536
    %v2596 = vadd.f32 %v2573, 1e-05
    %v2597 = vadd.f32 %v2574, 1e-05
    %v2598 = vadd.f32 %v2575, 1e-05
    %v2599 = vadd.f32 %v2576, 1e-05
    %v2600 = vadd.f32 %v2577, 1e-05
    %v2601 = vadd.f32 %v2578, 1e-05
    %v2602 = vadd.f32 %v2579, 1e-05
    %v2603 = vadd.f32 %v2580, 1e-05
    %v2604 = vadd.f32 %v2581, 1e-05
    %v2605 = vrsqrt.pop %v2596
    %v2606 = vrsqrt.pop %v2597
    %v2607 = vrsqrt.pop %v2598
    %v2608 = vrsqrt.pop %v2599
    %v2609 = vrsqrt.pop %v2600
    %v2610 = vrsqrt.pop %v2601
    %v2611 = vrsqrt.pop %v2602
    %v2612 = vrsqrt.pop %v2603
    %v2613 = vrsqrt.pop %v2604
    %v2614 = vmul.f32 %v2587, %v2605
    %v2615 = vmul.f32 %v2588, %v2606
    %v2616 = vmul.f32 %v2589, %v2607
    %v2617 = vmul.f32 %v2590, %v2608
    %v2618 = vmul.f32 %v2591, %v2609
    %v2619 = vmul.f32 %v2592, %v2610
    %v2620 = vmul.f32 %v2593, %v2611
    %v2621 = vmul.f32 %v2594, %v2612
    %v2622 = vmul.f32 %v2595, %v2613
    %v2623 = vld [vmem:[%s12 + $0x1] sm:$0x1]
    %v2624 = vlaneseq
    %v2625 = vshrl.u32 %v2624, 7
    %v2626 = vsub.s32 0, %v2625
    %v2627 = vrot.slane %v2623, %v2626
    %v2628 = vadd.f32 %v2614, %v2627
    %v2629 = vadd.f32 %v2615, %v2627
    %v2630 = vadd.f32 %v2616, %v2627
    %v2631 = vadd.f32 %v2617, %v2627
    %v2632 = vadd.f32 %v2618, %v2627
    %v2633 = vadd.f32 %v2619, %v2627
    %v2634 = vadd.f32 %v2620, %v2627
    %v2635 = vadd.f32 %v2621, %v2627
    %v2636 = vadd.f32 %v2622, %v2627
    %v2637 = vadd.f32 %v1882, %v2628
    %v2638 = vadd.f32 %v1883, %v2629
    %v2639 = vadd.f32 %v1884, %v2630
    %v2640 = vadd.f32 %v1885, %v2631
    %v2641 = vadd.f32 %v1886, %v2632
    %v2642 = vadd.f32 %v1887, %v2633
    %v2643 = vadd.f32 %v1888, %v2634
    %v2644 = vadd.f32 %v1889, %v2635
    %v2645 = vadd.f32 %v1890, %v2636
    %s2646 = scalar_lea.vmem [#allocation7], 144
    %v2647 = vld [vmem:[%s2646] sm:$0xff]
    %v2648 = vld [vmem:[%s2646 + $0x8] sm:$0xff]
    %v2649 = vld [vmem:[%s2646 + $0x10] sm:$0xff]
    %v2650 = vld [vmem:[%s2646 + $0x18] sm:$0xff]
    %v2651 = vld [vmem:[%s2646 + $0x20] sm:$0xff]
    %v2652 = vld [vmem:[%s2646 + $0x28] sm:$0xff]
    %v2653 = vld [vmem:[%s2646 + $0x30] sm:$0xff]
    %v2654 = vld [vmem:[%s2646 + $0x38] sm:$0xff]
    %v2655 = vld [vmem:[%s2646 + $0x40] sm:$0xff]
    %v2657 = vsel %vm522, %v2647, 0
    %v2660 = vsel %vm522, %v2648, 0
    %v2663 = vsel %vm522, %v2649, 0
    %v2666 = vsel %vm522, %v2650, 0
    %v2669 = vsel %vm522, %v2651, 0
    %v2672 = vsel %vm522, %v2652, 0
    %v2675 = vsel %vm522, %v2653, 0
    %v2678 = vsel %vm522, %v2654, 0
    %v2681 = vsel %vm522, %v2655, 0
    %2683 = vmatprep.subr.mxu0 0.0
    %2684 = vmatpush1.msra.mxu0 %v2637
    %2685 = vmatprep.subr.mxu0 0.0
    %2686 = vmatpush1.msra.mxu0 %v2638
    %2687 = vmatprep.subr.mxu0 0.0
    %2688 = vmatpush1.msra.mxu0 %v2639
    %2689 = vmatprep.subr.mxu0 0.0
    %2690 = vmatpush1.msra.mxu0 %v2640
    %2691 = vmatprep.subr.mxu0 0.0
    %2692 = vmatpush1.msra.mxu0 %v2641
    %2693 = vmatprep.subr.mxu0 0.0
    %2694 = vmatpush1.msra.mxu0 %v2642
    %2695 = vmatprep.subr.mxu0 0.0
    %2696 = vmatpush1.msra.mxu0 %v2643
    %2697 = vmatprep.subr.mxu0 0.0
    %2698 = vmatpush1.msra.mxu0 %v2644
    %2699 = vmatprep.subr.mxu0 0.0
    %2700 = vmatpush1.msra.mxu0 %v2645
    %2701 = vmatprep.subr.mxu0 0.0
    %2702 = vmatpush1.msra.mxu0 0.0
    %2703 = vmatprep.subr.mxu0 0.0
    %2704 = vmatpush1.msra.mxu0 0.0
    %2705 = vmatprep.subr.mxu0 0.0
    %2706 = vmatpush1.msra.mxu0 0.0
    %2707 = vmatprep.subr.mxu0 0.0
    %2708 = vmatpush1.msra.mxu0 0.0
    %2709 = vmatprep.subr.mxu0 0.0
    %2710 = vmatpush1.msra.mxu0 0.0
    %2711 = vmatprep.subr.mxu0 0.0
    %2712 = vmatpush1.msra.mxu0 0.0
    %2713 = vmatprep.subr.mxu0 0.0
    %2714 = vmatpush1.msra.mxu0 0.0
    %2715 = vmatprep.subr.mxu0 0.0
    %2716 = vmatpush1.msra.mxu0 0.0
    %2717 = vmatprep.subr.mxu0 0.0
    %2718 = vmatpush1.msra.mxu0 0.0
    %2719 = vmatprep.subr.mxu0 0.0
    %2720 = vmatpush1.msra.mxu0 0.0
    %2721 = vmatprep.subr.mxu0 0.0
    %2722 = vmatpush1.msra.mxu0 0.0
    %2723 = vmatprep.subr.mxu0 0.0
    %2724 = vmatpush1.msra.mxu0 0.0
    %2725 = vmatprep.subr.mxu0 0.0
    %2726 = vmatpush1.msra.mxu0 0.0
    %2727 = vmatprep.subr.mxu0 0.0
    %2728 = vmatpush1.msra.mxu0 0.0
    %2729 = vmatprep.subr.mxu0 0.0
    %2730 = vmatpush1.msra.mxu0 0.0
    %2731 = vmatprep.subr.mxu0 0.0
    %2732 = vmatpush1.msra.mxu0 0.0
    %2733 = vmatprep.subr.mxu0 0.0
    %2734 = vmatpush1.msra.mxu0 0.0
    %2735 = vmatprep.subr.mxu0 0.0
    %2736 = vmatpush1.msra.mxu0 0.0
    %2737 = vmatprep.subr.mxu0 0.0
    %2738 = vmatpush1.msra.mxu0 0.0
    %2739 = vmatprep.subr.mxu0 0.0
    %2740 = vmatpush1.msra.mxu0 0.0
    %2741 = vmatprep.subr.mxu0 0.0
    %2742 = vmatpush1.msra.mxu0 0.0
    %2743 = vmatprep.subr.mxu0 0.0
    %2744 = vmatpush1.msra.mxu0 0.0
    %2745 = vmatprep.subr.mxu0 0.0
    %2746 = vmatpush1.msra.mxu0 0.0
    %2747 = vmatprep.mubr.f32.mxu0 0.0
    %2748 = vmatmul.mubr.f32.gmra.mrb[0].mxu0 %v2657
    %v2749 = vpop.f32.mrb[0].mxu0
    %v2750 = vadd.f32 0.0, %v2749
    %v2751 = vpop.f32.mrb[0].mxu0
    %2752 = vmatprep.mubr.f32.mxu0 0.0
    %2753 = vmatmul.mubr.f32.gmra.mrb[0].mxu0 %v2660
    %v2754 = vpop.f32.mrb[0].mxu0
    %v2755 = vadd.f32 0.0, %v2754
    %v2756 = vpop.f32.mrb[0].mxu0
    %2757 = vmatprep.mubr.f32.mxu0 0.0
    %2758 = vmatmul.mubr.f32.gmra.mrb[0].mxu0 %v2663
    %v2759 = vpop.f32.mrb[0].mxu0
    %v2760 = vadd.f32 0.0, %v2759
    %v2761 = vpop.f32.mrb[0].mxu0
    %2762 = vmatprep.mubr.f32.mxu0 0.0
    %2763 = vmatmul.mubr.f32.gmra.mrb[0].mxu0 %v2666
    %v2764 = vpop.f32.mrb[0].mxu0
    %v2765 = vadd.f32 0.0, %v2764
    %v2766 = vpop.f32.mrb[0].mxu0
    %2767 = vmatprep.mubr.f32.mxu0 0.0
    %2768 = vmatmul.mubr.f32.gmra.mrb[0].mxu0 %v2669
    %v2769 = vpop.f32.mrb[0].mxu0
    %v2770 = vadd.f32 0.0, %v2769
    %v2771 = vpop.f32.mrb[0].mxu0
    %2772 = vmatprep.mubr.f32.mxu0 0.0
    %2773 = vmatmul.mubr.f32.gmra.mrb[0].mxu0 %v2672
    %v2774 = vpop.f32.mrb[0].mxu0
    %v2775 = vadd.f32 0.0, %v2774
    %v2776 = vpop.f32.mrb[0].mxu0
    %2777 = vmatprep.mubr.f32.mxu0 0.0
    %2778 = vmatmul.mubr.f32.gmra.mrb[0].mxu0 %v2675
    %v2779 = vpop.f32.mrb[0].mxu0
    %v2780 = vadd.f32 0.0, %v2779
    %v2781 = vpop.f32.mrb[0].mxu0
    %2782 = vmatprep.mubr.f32.mxu0 0.0
    %2783 = vmatmul.mubr.f32.gmra.mrb[0].mxu0 %v2678
    %v2784 = vpop.f32.mrb[0].mxu0
    %v2785 = vadd.f32 0.0, %v2784
    %v2786 = vpop.f32.mrb[0].mxu0
    %2787 = vmatprep.mubr.f32.mxu0 0.0
    %2788 = vmatmul.mubr.f32.gmra.mrb[0].mxu0 %v2681
    %v2789 = vpop.f32.mrb[0].mxu0
    %v2790 = vadd.f32 0.0, %v2789
    %v2791 = vpop.f32.mrb[0].mxu0
    %2792 = vdwg.mxu0
    %s2793 = scalar_lea.vmem [#allocation10], 64
    %v2794 = vld [vmem:[%s2793] sm:$0xff]
    %v2795 = vld [vmem:[%s2793 + $0x8] sm:$0xff]
    %v2796 = vld [vmem:[%s2793 + $0x10] sm:$0xff]
    %v2797 = vld [vmem:[%s2793 + $0x18] sm:$0xff]
    %v2798 = vld [vmem:[%s8 + $0x2] sm:$0x1]
    %v2799 = vlaneseq
    %v2800 = vshrl.u32 %v2799, 7
    %v2801 = vsub.s32 0, %v2800
    %v2802 = vrot.slane %v2798, %v2801
    %v2804 = vsel %vm308, %v2750, 0
    %v2807 = vsel %vm308, %v2755, 0
    %v2810 = vsel %vm308, %v2760, 0
    %v2813 = vsel %vm308, %v2765, 0
    %v2816 = vsel %vm308, %v2770, 0
    %v2819 = vsel %vm308, %v2775, 0
    %v2822 = vsel %vm308, %v2780, 0
    %v2825 = vsel %vm308, %v2785, 0
    %v2828 = vsel %vm308, %v2790, 0
    %2830 = vmatprep.subr.mxu0 0.0
    %2831 = vmatpush1.msra.mxu0 %v2794
    %2832 = vmatprep.subr.mxu0 0.0
    %2833 = vmatpush1.msra.mxu0 %v2795
    %2834 = vmatprep.subr.mxu0 0.0
    %2835 = vmatpush1.msra.mxu0 %v2796
    %2836 = vmatprep.subr.mxu0 0.0
    %2837 = vmatpush1.msra.mxu0 %v2797
    %2838 = vmatprep.subr.mxu0 0.0
    %2839 = vmatpush1.msra.mxu0 0.0
    %2840 = vmatprep.subr.mxu0 0.0
    %2841 = vmatpush1.msra.mxu0 0.0
    %2842 = vmatprep.subr.mxu0 0.0
    %2843 = vmatpush1.msra.mxu0 0.0
    %2844 = vmatprep.subr.mxu0 0.0
    %2845 = vmatpush1.msra.mxu0 0.0
    %2846 = vmatprep.subr.mxu0 0.0
    %2847 = vmatpush1.msra.mxu0 0.0
    %2848 = vmatprep.subr.mxu0 0.0
    %2849 = vmatpush1.msra.mxu0 0.0
    %2850 = vmatprep.subr.mxu0 0.0
    %2851 = vmatpush1.msra.mxu0 0.0
    %2852 = vmatprep.subr.mxu0 0.0
    %2853 = vmatpush1.msra.mxu0 0.0
    %2854 = vmatprep.subr.mxu0 0.0
    %2855 = vmatpush1.msra.mxu0 0.0
    %2856 = vmatprep.subr.mxu0 0.0
    %2857 = vmatpush1.msra.mxu0 0.0
    %2858 = vmatprep.subr.mxu0 0.0
    %2859 = vmatpush1.msra.mxu0 0.0
    %2860 = vmatprep.subr.mxu0 0.0
    %2861 = vmatpush1.msra.mxu0 0.0
    %2862 = vmatprep.subr.mxu0 0.0
    %2863 = vmatpush1.msra.mxu0 0.0
    %2864 = vmatprep.subr.mxu0 0.0
    %2865 = vmatpush1.msra.mxu0 0.0
    %2866 = vmatprep.subr.mxu0 0.0
    %2867 = vmatpush1.msra.mxu0 0.0
    %2868 = vmatprep.subr.mxu0 0.0
    %2869 = vmatpush1.msra.mxu0 0.0
    %2870 = vmatprep.subr.mxu0 0.0
    %2871 = vmatpush1.msra.mxu0 0.0
    %2872 = vmatprep.subr.mxu0 0.0
    %2873 = vmatpush1.msra.mxu0 0.0
    %2874 = vmatprep.subr.mxu0 0.0
    %2875 = vmatpush1.msra.mxu0 0.0
    %2876 = vmatprep.subr.mxu0 0.0
    %2877 = vmatpush1.msra.mxu0 0.0
    %2878 = vmatprep.subr.mxu0 0.0
    %2879 = vmatpush1.msra.mxu0 0.0
    %2880 = vmatprep.subr.mxu0 0.0
    %2881 = vmatpush1.msra.mxu0 0.0
    %2882 = vmatprep.subr.mxu0 0.0
    %2883 = vmatpush1.msra.mxu0 0.0
    %2884 = vmatprep.subr.mxu0 0.0
    %2885 = vmatpush1.msra.mxu0 0.0
    %2886 = vmatprep.subr.mxu0 0.0
    %2887 = vmatpush1.msra.mxu0 0.0
    %2888 = vmatprep.subr.mxu0 0.0
    %2889 = vmatpush1.msra.mxu0 0.0
    %2890 = vmatprep.subr.mxu0 0.0
    %2891 = vmatpush1.msra.mxu0 0.0
    %2892 = vmatprep.subr.mxu0 0.0
    %2893 = vmatpush1.msra.mxu0 0.0
    %2894 = vmatprep.mubr.f32.mxu0 0.0
    %2895 = vmatmul.mubr.f32.gmra.mrb[0].mxu0 %v2804
    %v2896 = vpop.f32.mrb[0].mxu0
    %v2897 = vadd.f32 %v2802, %v2896
    %v2898 = vpop.f32.mrb[0].mxu0
    %2899 = vmatprep.mubr.f32.mxu0 0.0
    %2900 = vmatmul.mubr.f32.gmra.mrb[0].mxu0 %v2807
    %v2901 = vpop.f32.mrb[0].mxu0
    %v2902 = vadd.f32 %v2802, %v2901
    %v2903 = vpop.f32.mrb[0].mxu0
    %2904 = vmatprep.mubr.f32.mxu0 0.0
    %2905 = vmatmul.mubr.f32.gmra.mrb[0].mxu0 %v2810
    %v2906 = vpop.f32.mrb[0].mxu0
    %v2907 = vadd.f32 %v2802, %v2906
    %v2908 = vpop.f32.mrb[0].mxu0
    %2909 = vmatprep.mubr.f32.mxu0 0.0
    %2910 = vmatmul.mubr.f32.gmra.mrb[0].mxu0 %v2813
    %v2911 = vpop.f32.mrb[0].mxu0
    %v2912 = vadd.f32 %v2802, %v2911
    %v2913 = vpop.f32.mrb[0].mxu0
    %2914 = vmatprep.mubr.f32.mxu0 0.0
    %2915 = vmatmul.mubr.f32.gmra.mrb[0].mxu0 %v2816
    %v2916 = vpop.f32.mrb[0].mxu0
    %v2917 = vadd.f32 %v2802, %v2916
    %v2918 = vpop.f32.mrb[0].mxu0
    %2919 = vmatprep.mubr.f32.mxu0 0.0
    %2920 = vmatmul.mubr.f32.gmra.mrb[0].mxu0 %v2819
    %v2921 = vpop.f32.mrb[0].mxu0
    %v2922 = vadd.f32 %v2802, %v2921
    %v2923 = vpop.f32.mrb[0].mxu0
    %2924 = vmatprep.mubr.f32.mxu0 0.0
    %2925 = vmatmul.mubr.f32.gmra.mrb[0].mxu0 %v2822
    %v2926 = vpop.f32.mrb[0].mxu0
    %v2927 = vadd.f32 %v2802, %v2926
    %v2928 = vpop.f32.mrb[0].mxu0
    %2929 = vmatprep.mubr.f32.mxu0 0.0
    %2930 = vmatmul.mubr.f32.gmra.mrb[0].mxu0 %v2825
    %v2931 = vpop.f32.mrb[0].mxu0
    %v2932 = vadd.f32 %v2802, %v2931
    %v2933 = vpop.f32.mrb[0].mxu0
    %2934 = vmatprep.mubr.f32.mxu0 0.0
    %2935 = vmatmul.mubr.f32.gmra.mrb[0].mxu0 %v2828
    %v2936 = vpop.f32.mrb[0].mxu0
    %v2937 = vadd.f32 %v2802, %v2936
    %v2938 = vpop.f32.mrb[0].mxu0
    %2939 = vdwg.mxu0
    %v2940 = vxor.u32 %v2897, 2147483648
    %v2941 = vxor.u32 %v2902, 2147483648
    %v2942 = vxor.u32 %v2907, 2147483648
    %v2943 = vxor.u32 %v2912, 2147483648
    %v2944 = vxor.u32 %v2917, 2147483648
    %v2945 = vxor.u32 %v2922, 2147483648
    %v2946 = vxor.u32 %v2927, 2147483648
    %v2947 = vxor.u32 %v2932, 2147483648
    %v2948 = vxor.u32 %v2937, 2147483648
    %v2949 = vmul.f32 %v2940, 1.442695
    %v2950 = vpow.pop %v2949
    %v2951 = vmul.f32 %v2941, 1.442695
    %v2952 = vpow.pop %v2951
    %v2953 = vmul.f32 %v2942, 1.442695
    %v2954 = vpow.pop %v2953
    %v2955 = vmul.f32 %v2943, 1.442695
    %v2956 = vpow.pop %v2955
    %v2957 = vmul.f32 %v2944, 1.442695
    %v2958 = vpow.pop %v2957
    %v2959 = vmul.f32 %v2945, 1.442695
    %v2960 = vpow.pop %v2959
    %v2961 = vmul.f32 %v2946, 1.442695
    %v2962 = vpow.pop %v2961
    %v2963 = vmul.f32 %v2947, 1.442695
    %v2964 = vpow.pop %v2963
    %v2965 = vmul.f32 %v2948, 1.442695
    %v2966 = vpow.pop %v2965
    %v2967 = vadd.f32 %v2950, 1.0
    %v2968 = vadd.f32 %v2952, 1.0
    %v2969 = vadd.f32 %v2954, 1.0
    %v2970 = vadd.f32 %v2956, 1.0
    %v2971 = vadd.f32 %v2958, 1.0
    %v2972 = vadd.f32 %v2960, 1.0
    %v2973 = vadd.f32 %v2962, 1.0
    %v2974 = vadd.f32 %v2964, 1.0
    %v2975 = vadd.f32 %v2966, 1.0
    %v2976 = vrcp.pop %v2967
    %v2977 = vmul.f32 1.0, %v2976
    %v2978 = vrcp.pop %v2968
    %v2979 = vmul.f32 1.0, %v2978
    %v2980 = vrcp.pop %v2969
    %v2981 = vmul.f32 1.0, %v2980
    %v2982 = vrcp.pop %v2970
    %v2983 = vmul.f32 1.0, %v2982
    %v2984 = vrcp.pop %v2971
    %v2985 = vmul.f32 1.0, %v2984
    %v2986 = vrcp.pop %v2972
    %v2987 = vmul.f32 1.0, %v2986
    %v2988 = vrcp.pop %v2973
    %v2989 = vmul.f32 1.0, %v2988
    %v2990 = vrcp.pop %v2974
    %v2991 = vmul.f32 1.0, %v2990
    %v2992 = vrcp.pop %v2975
    %v2993 = vmul.f32 1.0, %v2992
    %v2994 = vmul.f32 %v2897, %v2977
    %v2995 = vmul.f32 %v2902, %v2979
    %v2996 = vmul.f32 %v2907, %v2981
    %v2997 = vmul.f32 %v2912, %v2983
    %v2998 = vmul.f32 %v2917, %v2985
    %v2999 = vmul.f32 %v2922, %v2987
    %v3000 = vmul.f32 %v2927, %v2989
    %v3001 = vmul.f32 %v2932, %v2991
    %v3002 = vmul.f32 %v2937, %v2993
    %s3003 = scalar_lea.vmem [#allocation11], 64
    %v3004 = vld [vmem:[%s3003] sm:$0xff]
    %v3005 = vld [vmem:[%s3003 + $0x8] sm:$0xff]
    %v3006 = vld [vmem:[%s3003 + $0x10] sm:$0xff]
    %v3007 = vld [vmem:[%s3003 + $0x18] sm:$0xff]
    %v3008 = vld [vmem:[%s10 + $0x2] sm:$0x1]
    %v3009 = vlaneseq
    %v3010 = vshrl.u32 %v3009, 7
    %v3011 = vsub.s32 0, %v3010
    %v3012 = vrot.slane %v3008, %v3011
    %v3014 = vsel %vm308, %v2994, 0
    %v3017 = vsel %vm308, %v2995, 0
    %v3020 = vsel %vm308, %v2996, 0
    %v3023 = vsel %vm308, %v2997, 0
    %v3026 = vsel %vm308, %v2998, 0
    %v3029 = vsel %vm308, %v2999, 0
    %v3032 = vsel %vm308, %v3000, 0
    %v3035 = vsel %vm308, %v3001, 0
    %v3038 = vsel %vm308, %v3002, 0
    %3040 = vmatprep.subr.mxu0 0.0
    %3041 = vmatpush1.msra.mxu0 %v3004
    %3042 = vmatprep.subr.mxu0 0.0
    %3043 = vmatpush1.msra.mxu0 %v3005
    %3044 = vmatprep.subr.mxu0 0.0
    %3045 = vmatpush1.msra.mxu0 %v3006
    %3046 = vmatprep.subr.mxu0 0.0
    %3047 = vmatpush1.msra.mxu0 %v3007
    %3048 = vmatprep.subr.mxu0 0.0
    %3049 = vmatpush1.msra.mxu0 0.0
    %3050 = vmatprep.subr.mxu0 0.0
    %3051 = vmatpush1.msra.mxu0 0.0
    %3052 = vmatprep.subr.mxu0 0.0
    %3053 = vmatpush1.msra.mxu0 0.0
    %3054 = vmatprep.subr.mxu0 0.0
    %3055 = vmatpush1.msra.mxu0 0.0
    %3056 = vmatprep.subr.mxu0 0.0
    %3057 = vmatpush1.msra.mxu0 0.0
    %3058 = vmatprep.subr.mxu0 0.0
    %3059 = vmatpush1.msra.mxu0 0.0
    %3060 = vmatprep.subr.mxu0 0.0
    %3061 = vmatpush1.msra.mxu0 0.0
    %3062 = vmatprep.subr.mxu0 0.0
    %3063 = vmatpush1.msra.mxu0 0.0
    %3064 = vmatprep.subr.mxu0 0.0
    %3065 = vmatpush1.msra.mxu0 0.0
    %3066 = vmatprep.subr.mxu0 0.0
    %3067 = vmatpush1.msra.mxu0 0.0
    %3068 = vmatprep.subr.mxu0 0.0
    %3069 = vmatpush1.msra.mxu0 0.0
    %3070 = vmatprep.subr.mxu0 0.0
    %3071 = vmatpush1.msra.mxu0 0.0
    %3072 = vmatprep.subr.mxu0 0.0
    %3073 = vmatpush1.msra.mxu0 0.0
    %3074 = vmatprep.subr.mxu0 0.0
    %3075 = vmatpush1.msra.mxu0 0.0
    %3076 = vmatprep.subr.mxu0 0.0
    %3077 = vmatpush1.msra.mxu0 0.0
    %3078 = vmatprep.subr.mxu0 0.0
    %3079 = vmatpush1.msra.mxu0 0.0
    %3080 = vmatprep.subr.mxu0 0.0
    %3081 = vmatpush1.msra.mxu0 0.0
    %3082 = vmatprep.subr.mxu0 0.0
    %3083 = vmatpush1.msra.mxu0 0.0
    %3084 = vmatprep.subr.mxu0 0.0
    %3085 = vmatpush1.msra.mxu0 0.0
    %3086 = vmatprep.subr.mxu0 0.0
    %3087 = vmatpush1.msra.mxu0 0.0
    %3088 = vmatprep.subr.mxu0 0.0
    %3089 = vmatpush1.msra.mxu0 0.0
    %3090 = vmatprep.subr.mxu0 0.0
    %3091 = vmatpush1.msra.mxu0 0.0
    %3092 = vmatprep.subr.mxu0 0.0
    %3093 = vmatpush1.msra.mxu0 0.0
    %3094 = vmatprep.subr.mxu0 0.0
    %3095 = vmatpush1.msra.mxu0 0.0
    %3096 = vmatprep.subr.mxu0 0.0
    %3097 = vmatpush1.msra.mxu0 0.0
    %3098 = vmatprep.subr.mxu0 0.0
    %3099 = vmatpush1.msra.mxu0 0.0
    %3100 = vmatprep.subr.mxu0 0.0
    %3101 = vmatpush1.msra.mxu0 0.0
    %3102 = vmatprep.subr.mxu0 0.0
    %3103 = vmatpush1.msra.mxu0 0.0
    %3104 = vmatprep.mubr.f32.mxu0 0.0
    %3105 = vmatmul.mubr.f32.gmra.mrb[0].mxu0 %v3014
    %v3106 = vpop.f32.mrb[0].mxu0
    %v3107 = vadd.f32 %v3012, %v3106
    %v3108 = vpop.f32.mrb[0].mxu0
    %3109 = vmatprep.mubr.f32.mxu0 0.0
    %3110 = vmatmul.mubr.f32.gmra.mrb[0].mxu0 %v3017
    %v3111 = vpop.f32.mrb[0].mxu0
    %v3112 = vadd.f32 %v3012, %v3111
    %v3113 = vpop.f32.mrb[0].mxu0
    %3114 = vmatprep.mubr.f32.mxu0 0.0
    %3115 = vmatmul.mubr.f32.gmra.mrb[0].mxu0 %v3020
    %v3116 = vpop.f32.mrb[0].mxu0
    %v3117 = vadd.f32 %v3012, %v3116
    %v3118 = vpop.f32.mrb[0].mxu0
    %3119 = vmatprep.mubr.f32.mxu0 0.0
    %3120 = vmatmul.mubr.f32.gmra.mrb[0].mxu0 %v3023
    %v3121 = vpop.f32.mrb[0].mxu0
    %v3122 = vadd.f32 %v3012, %v3121
    %v3123 = vpop.f32.mrb[0].mxu0
    %3124 = vmatprep.mubr.f32.mxu0 0.0
    %3125 = vmatmul.mubr.f32.gmra.mrb[0].mxu0 %v3026
    %v3126 = vpop.f32.mrb[0].mxu0
    %v3127 = vadd.f32 %v3012, %v3126
    %v3128 = vpop.f32.mrb[0].mxu0
    %3129 = vmatprep.mubr.f32.mxu0 0.0
    %3130 = vmatmul.mubr.f32.gmra.mrb[0].mxu0 %v3029
    %v3131 = vpop.f32.mrb[0].mxu0
    %v3132 = vadd.f32 %v3012, %v3131
    %v3133 = vpop.f32.mrb[0].mxu0
    %3134 = vmatprep.mubr.f32.mxu0 0.0
    %3135 = vmatmul.mubr.f32.gmra.mrb[0].mxu0 %v3032
    %v3136 = vpop.f32.mrb[0].mxu0
    %v3137 = vadd.f32 %v3012, %v3136
    %v3138 = vpop.f32.mrb[0].mxu0
    %3139 = vmatprep.mubr.f32.mxu0 0.0
    %3140 = vmatmul.mubr.f32.gmra.mrb[0].mxu0 %v3035
    %v3141 = vpop.f32.mrb[0].mxu0
    %v3142 = vadd.f32 %v3012, %v3141
    %v3143 = vpop.f32.mrb[0].mxu0
    %3144 = vmatprep.mubr.f32.mxu0 0.0
    %3145 = vmatmul.mubr.f32.gmra.mrb[0].mxu0 %v3038
    %v3146 = vpop.f32.mrb[0].mxu0
    %v3147 = vadd.f32 %v3012, %v3146
    %v3148 = vpop.f32.mrb[0].mxu0
    %3149 = vdwg.mxu0
    %3159 = vrot.lane.b32.xlu0 %v3107, 96
    %v3160 = vpop.permute.xlu0 %3159
    %3161 = vrot.lane.b32.xlu0 %v3112, 96
    %v3162 = vpop.permute.xlu0 %3161
    %3163 = vrot.lane.b32.xlu0 %v3117, 96
    %v3164 = vpop.permute.xlu0 %3163
    %3165 = vrot.lane.b32.xlu0 %v3122, 96
    %v3166 = vpop.permute.xlu0 %3165
    %3167 = vrot.lane.b32.xlu0 %v3127, 96
    %v3168 = vpop.permute.xlu0 %3167
    %3169 = vrot.lane.b32.xlu0 %v3132, 96
    %v3170 = vpop.permute.xlu0 %3169
    %3171 = vrot.lane.b32.xlu0 %v3137, 96
    %v3172 = vpop.permute.xlu0 %3171
    %3173 = vrot.lane.b32.xlu0 %v3142, 96
    %v3174 = vpop.permute.xlu0 %3173
    %3175 = vrot.lane.b32.xlu0 %v3147, 96
    %v3176 = vpop.permute.xlu0 %3175
    %v3177 = vsel %vm308, %v3107, 0
    %v3179 = vsel %vm308, %v3112, 0
    %v3181 = vsel %vm308, %v3117, 0
    %v3183 = vsel %vm308, %v3122, 0
    %v3185 = vsel %vm308, %v3127, 0
    %v3187 = vsel %vm308, %v3132, 0
    %v3189 = vsel %vm308, %v3137, 0
    %v3191 = vsel %vm308, %v3142, 0
    %v3193 = vsel %vm308, %v3147, 0
    %v3195 = vsel %vm308, %v3160, 0
    %v3197 = vsel %vm308, %v3162, 0
    %v3199 = vsel %vm308, %v3164, 0
    %v3201 = vsel %vm308, %v3166, 0
    %v3203 = vsel %vm308, %v3168, 0
    %v3205 = vsel %vm308, %v3170, 0
    %v3207 = vsel %vm308, %v3172, 0
    %v3209 = vsel %vm308, %v3174, 0
    %v3211 = vsel %vm308, %v3176, 0
    %3213 = vmatprep.subr.mxu0 0.0
    %3214 = vmatpush1.xpose.msra.mxu0 %v3195
    %3215 = vmatprep.subr.mxu0 0.0
    %3216 = vmatpush1.xpose.msra.mxu0 %v3197
    %3217 = vmatprep.subr.mxu0 0.0
    %3218 = vmatpush1.xpose.msra.mxu0 %v3199
    %3219 = vmatprep.subr.mxu0 0.0
    %3220 = vmatpush1.xpose.msra.mxu0 %v3201
    %3221 = vmatprep.subr.mxu0 0.0
    %3222 = vmatpush1.xpose.msra.mxu0 %v3203
    %3223 = vmatprep.subr.mxu0 0.0
    %3224 = vmatpush1.xpose.msra.mxu0 %v3205
    %3225 = vmatprep.subr.mxu0 0.0
    %3226 = vmatpush1.xpose.msra.mxu0 %v3207
    %3227 = vmatprep.subr.mxu0 0.0
    %3228 = vmatpush1.xpose.msra.mxu0 %v3209
    %3229 = vmatprep.subr.mxu0 0.0
    %3230 = vmatpush1.xpose.msra.mxu0 %v3211
    %3231 = vmatprep.subr.mxu0 0.0
    %3232 = vmatpush1.xpose.msra.mxu0 0.0
    %3233 = vmatprep.subr.mxu0 0.0
    %3234 = vmatpush1.xpose.msra.mxu0 0.0
    %3235 = vmatprep.subr.mxu0 0.0
    %3236 = vmatpush1.xpose.msra.mxu0 0.0
    %3237 = vmatprep.subr.mxu0 0.0
    %3238 = vmatpush1.xpose.msra.mxu0 0.0
    %3239 = vmatprep.subr.mxu0 0.0
    %3240 = vmatpush1.xpose.msra.mxu0 0.0
    %3241 = vmatprep.subr.mxu0 0.0
    %3242 = vmatpush1.xpose.msra.mxu0 0.0
    %3243 = vmatprep.subr.mxu0 0.0
    %3244 = vmatpush1.xpose.msra.mxu0 0.0
    %3245 = vmatprep.subr.mxu0 0.0
    %3246 = vmatpush1.xpose.msra.mxu0 0.0
    %3247 = vmatprep.subr.mxu0 0.0
    %3248 = vmatpush1.xpose.msra.mxu0 0.0
    %3249 = vmatprep.subr.mxu0 0.0
    %3250 = vmatpush1.xpose.msra.mxu0 0.0
    %3251 = vmatprep.subr.mxu0 0.0
    %3252 = vmatpush1.xpose.msra.mxu0 0.0
    %3253 = vmatprep.subr.mxu0 0.0
    %3254 = vmatpush1.xpose.msra.mxu0 0.0
    %3255 = vmatprep.subr.mxu0 0.0
    %3256 = vmatpush1.xpose.msra.mxu0 0.0
    %3257 = vmatprep.subr.mxu0 0.0
    %3258 = vmatpush1.xpose.msra.mxu0 0.0
    %3259 = vmatprep.subr.mxu0 0.0
    %3260 = vmatpush1.xpose.msra.mxu0 0.0
    %3261 = vmatprep.subr.mxu0 0.0
    %3262 = vmatpush1.xpose.msra.mxu0 0.0
    %3263 = vmatprep.subr.mxu0 0.0
    %3264 = vmatpush1.xpose.msra.mxu0 0.0
    %3265 = vmatprep.subr.mxu0 0.0
    %3266 = vmatpush1.xpose.msra.mxu0 0.0
    %3267 = vmatprep.subr.mxu0 0.0
    %3268 = vmatpush1.xpose.msra.mxu0 0.0
    %3269 = vmatprep.subr.mxu0 0.0
    %3270 = vmatpush1.xpose.msra.mxu0 0.0
    %3271 = vmatprep.subr.mxu0 0.0
    %3272 = vmatpush1.xpose.msra.mxu0 0.0
    %3273 = vmatprep.subr.mxu0 0.0
    %3274 = vmatpush1.xpose.msra.mxu0 0.0
    %3275 = vmatprep.subr.mxu0 0.0
    %3276 = vmatpush1.xpose.msra.mxu0 0.0
    %3277 = vmatprep.mubr.f32.mxu0 0.0
    %3278 = vmatmul.mubr.f32.gmra.mrb[0].mxu0 %v3177
    %v3279 = vpop.f32.mrb[0].mxu0
    %v3280 = vadd.f32 0.0, %v3279
    %v3281 = vpop.f32.mrb[0].mxu0
    %3282 = vmatprep.mubr.f32.mxu0 0.0
    %3283 = vmatmul.mubr.f32.gmra.mrb[0].mxu0 %v3179
    %v3284 = vpop.f32.mrb[0].mxu0
    %v3285 = vadd.f32 0.0, %v3284
    %v3286 = vpop.f32.mrb[0].mxu0
    %3287 = vmatprep.mubr.f32.mxu0 0.0
    %3288 = vmatmul.mubr.f32.gmra.mrb[0].mxu0 %v3181
    %v3289 = vpop.f32.mrb[0].mxu0
    %v3290 = vadd.f32 0.0, %v3289
    %v3291 = vpop.f32.mrb[0].mxu0
    %3292 = vmatprep.mubr.f32.mxu0 0.0
    %3293 = vmatmul.mubr.f32.gmra.mrb[0].mxu0 %v3183
    %v3294 = vpop.f32.mrb[0].mxu0
    %v3295 = vadd.f32 0.0, %v3294
    %v3296 = vpop.f32.mrb[0].mxu0
    %3297 = vmatprep.mubr.f32.mxu0 0.0
    %3298 = vmatmul.mubr.f32.gmra.mrb[0].mxu0 %v3185
    %v3299 = vpop.f32.mrb[0].mxu0
    %v3300 = vadd.f32 0.0, %v3299
    %v3301 = vpop.f32.mrb[0].mxu0
    %3302 = vmatprep.mubr.f32.mxu0 0.0
    %3303 = vmatmul.mubr.f32.gmra.mrb[0].mxu0 %v3187
    %v3304 = vpop.f32.mrb[0].mxu0
    %v3305 = vadd.f32 0.0, %v3304
    %v3306 = vpop.f32.mrb[0].mxu0
    %3307 = vmatprep.mubr.f32.mxu0 0.0
    %3308 = vmatmul.mubr.f32.gmra.mrb[0].mxu0 %v3189
    %v3309 = vpop.f32.mrb[0].mxu0
    %v3310 = vadd.f32 0.0, %v3309
    %v3311 = vpop.f32.mrb[0].mxu0
    %3312 = vmatprep.mubr.f32.mxu0 0.0
    %3313 = vmatmul.mubr.f32.gmra.mrb[0].mxu0 %v3191
    %v3314 = vpop.f32.mrb[0].mxu0
    %v3315 = vadd.f32 0.0, %v3314
    %v3316 = vpop.f32.mrb[0].mxu0
    %3317 = vmatprep.mubr.f32.mxu0 0.0
    %3318 = vmatmul.mubr.f32.gmra.mrb[0].mxu0 %v3193
    %v3319 = vpop.f32.mrb[0].mxu0
    %v3320 = vadd.f32 0.0, %v3319
    %v3321 = vpop.f32.mrb[0].mxu0
    %3322 = vdwg.mxu0
    %v3323 = vmul.f32 %v3280, 0.17677669
    %v3324 = vmul.f32 %v3285, 0.17677669
    %v3325 = vmul.f32 %v3290, 0.17677669
    %v3326 = vmul.f32 %v3295, 0.17677669
    %v3327 = vmul.f32 %v3300, 0.17677669
    %v3328 = vmul.f32 %v3305, 0.17677669
    %v3329 = vmul.f32 %v3310, 0.17677669
    %v3330 = vmul.f32 %v3315, 0.17677669
    %v3331 = vmul.f32 %v3320, 0.17677669
    %v3332 = vadd.f32 %v3323, %v504
    %v3333 = vadd.f32 %v3324, %v505
    %v3334 = vadd.f32 %v3325, %v506
    %v3335 = vadd.f32 %v3326, %v507
    %v3336 = vadd.f32 %v3327, %v508
    %v3337 = vadd.f32 %v3328, %v509
    %v3338 = vadd.f32 %v3329, %v510
    %v3339 = vadd.f32 %v3330, %v511
    %v3340 = vadd.f32 %v3331, %v512
    %v3341 = vsel %vm522, %v3332, -inf
    %3342 = vmax.xlane.f32.xlu0 %v3341
    %v3343 = vpop.xlane.xlu0 %3342
    %v3344 = vsel %vm522, %v3333, -inf
    %3345 = vmax.xlane.f32.xlu0 %v3344
    %v3346 = vpop.xlane.xlu0 %3345
    %v3347 = vsel %vm522, %v3334, -inf
    %3348 = vmax.xlane.f32.xlu0 %v3347
    %v3349 = vpop.xlane.xlu0 %3348
    %v3350 = vsel %vm522, %v3335, -inf
    %3351 = vmax.xlane.f32.xlu0 %v3350
    %v3352 = vpop.xlane.xlu0 %3351
    %v3353 = vsel %vm522, %v3336, -inf
    %3354 = vmax.xlane.f32.xlu0 %v3353
    %v3355 = vpop.xlane.xlu0 %3354
    %v3356 = vsel %vm522, %v3337, -inf
    %3357 = vmax.xlane.f32.xlu0 %v3356
    %v3358 = vpop.xlane.xlu0 %3357
    %v3359 = vsel %vm522, %v3338, -inf
    %3360 = vmax.xlane.f32.xlu0 %v3359
    %v3361 = vpop.xlane.xlu0 %3360
    %v3362 = vsel %vm522, %v3339, -inf
    %3363 = vmax.xlane.f32.xlu0 %v3362
    %v3364 = vpop.xlane.xlu0 %3363
    %v3365 = vsel %vm522, %v3340, -inf
    %3366 = vmax.xlane.f32.xlu0 %v3365
    %v3367 = vpop.xlane.xlu0 %3366
    %v3368 = vsub.f32 %v3332, %v3343
    %v3369 = vsub.f32 %v3333, %v3346
    %v3370 = vsub.f32 %v3334, %v3349
    %v3371 = vsub.f32 %v3335, %v3352
    %v3372 = vsub.f32 %v3336, %v3355
    %v3373 = vsub.f32 %v3337, %v3358
    %v3374 = vsub.f32 %v3338, %v3361
    %v3375 = vsub.f32 %v3339, %v3364
    %v3376 = vsub.f32 %v3340, %v3367
    %v3377 = vmul.f32 %v3368, 1.442695
    %v3378 = vpow.pop %v3377
    %v3379 = vmul.f32 %v3369, 1.442695
    %v3380 = vpow.pop %v3379
    %v3381 = vmul.f32 %v3370, 1.442695
    %v3382 = vpow.pop %v3381
    %v3383 = vmul.f32 %v3371, 1.442695
    %v3384 = vpow.pop %v3383
    %v3385 = vmul.f32 %v3372, 1.442695
    %v3386 = vpow.pop %v3385
    %v3387 = vmul.f32 %v3373, 1.442695
    %v3388 = vpow.pop %v3387
    %v3389 = vmul.f32 %v3374, 1.442695
    %v3390 = vpow.pop %v3389
    %v3391 = vmul.f32 %v3375, 1.442695
    %v3392 = vpow.pop %v3391
    %v3393 = vmul.f32 %v3376, 1.442695
    %v3394 = vpow.pop %v3393
    %v3395 = vsel %vm522, %v3378, 0.0
    %3396 = vadd.xlane.f32.xlu0 %v3395
    %v3397 = vpop.xlane.xlu0 %3396
    %v3398 = vsel %vm522, %v3380, 0.0
    %3399 = vadd.xlane.f32.xlu0 %v3398
    %v3400 = vpop.xlane.xlu0 %3399
    %v3401 = vsel %vm522, %v3382, 0.0
    %3402 = vadd.xlane.f32.xlu0 %v3401
    %v3403 = vpop.xlane.xlu0 %3402
    %v3404 = vsel %vm522, %v3384, 0.0
    %3405 = vadd.xlane.f32.xlu0 %v3404
    %v3406 = vpop.xlane.xlu0 %3405
    %v3407 = vsel %vm522, %v3386, 0.0
    %3408 = vadd.xlane.f32.xlu0 %v3407
    %v3409 = vpop.xlane.xlu0 %3408
    %v3410 = vsel %vm522, %v3388, 0.0
    %3411 = vadd.xlane.f32.xlu0 %v3410
    %v3412 = vpop.xlane.xlu0 %3411
    %v3413 = vsel %vm522, %v3390, 0.0
    %3414 = vadd.xlane.f32.xlu0 %v3413
    %v3415 = vpop.xlane.xlu0 %3414
    %v3416 = vsel %vm522, %v3392, 0.0
    %3417 = vadd.xlane.f32.xlu0 %v3416
    %v3418 = vpop.xlane.xlu0 %3417
    %v3419 = vsel %vm522, %v3394, 0.0
    %3420 = vadd.xlane.f32.xlu0 %v3419
    %v3421 = vpop.xlane.xlu0 %3420
    %v3422 = vrcp.pop %v3397
    %v3423 = vrcp.pop %v3400
    %v3424 = vrcp.pop %v3403
    %v3425 = vrcp.pop %v3406
    %v3426 = vrcp.pop %v3409
    %v3427 = vrcp.pop %v3412
    %v3428 = vrcp.pop %v3415
    %v3429 = vrcp.pop %v3418
    %v3430 = vrcp.pop %v3421
    %v3431 = vmul.f32 %v3378, %v3422
    %v3432 = vmul.f32 %v3380, %v3423
    %v3433 = vmul.f32 %v3382, %v3424
    %v3434 = vmul.f32 %v3384, %v3425
    %v3435 = vmul.f32 %v3386, %v3426
    %v3436 = vmul.f32 %v3388, %v3427
    %v3437 = vmul.f32 %v3390, %v3428
    %v3438 = vmul.f32 %v3392, %v3429
    %v3439 = vmul.f32 %v3394, %v3430
    %3440 = vrot.lane.b32.xlu0 %v3107, 64
    %v3441 = vpop.permute.xlu0 %3440
    %3442 = vrot.lane.b32.xlu0 %v3112, 64
    %v3443 = vpop.permute.xlu0 %3442
    %3444 = vrot.lane.b32.xlu0 %v3117, 64
    %v3445 = vpop.permute.xlu0 %3444
    %3446 = vrot.lane.b32.xlu0 %v3122, 64
    %v3447 = vpop.permute.xlu0 %3446
    %3448 = vrot.lane.b32.xlu0 %v3127, 64
    %v3449 = vpop.permute.xlu0 %3448
    %3450 = vrot.lane.b32.xlu0 %v3132, 64
    %v3451 = vpop.permute.xlu0 %3450
    %3452 = vrot.lane.b32.xlu0 %v3137, 64
    %v3453 = vpop.permute.xlu0 %3452
    %3454 = vrot.lane.b32.xlu0 %v3142, 64
    %v3455 = vpop.permute.xlu0 %3454
    %3456 = vrot.lane.b32.xlu0 %v3147, 64
    %v3457 = vpop.permute.xlu0 %3456
    %v3468 = vsel %vm522, %v3431, 0
    %v3471 = vsel %vm522, %v3432, 0
    %v3474 = vsel %vm522, %v3433, 0
    %v3477 = vsel %vm522, %v3434, 0
    %v3480 = vsel %vm522, %v3435, 0
    %v3483 = vsel %vm522, %v3436, 0
    %v3486 = vsel %vm522, %v3437, 0
    %v3489 = vsel %vm522, %v3438, 0
    %v3492 = vsel %vm522, %v3439, 0
    %3494 = vmatprep.subr.mxu0 0.0
    %3495 = vmatpush1.msra.mxu0 %v3441
    %3496 = vmatprep.subr.mxu0 0.0
    %3497 = vmatpush1.msra.mxu0 %v3443
    %3498 = vmatprep.subr.mxu0 0.0
    %3499 = vmatpush1.msra.mxu0 %v3445
    %3500 = vmatprep.subr.mxu0 0.0
    %3501 = vmatpush1.msra.mxu0 %v3447
    %3502 = vmatprep.subr.mxu0 0.0
    %3503 = vmatpush1.msra.mxu0 %v3449
    %3504 = vmatprep.subr.mxu0 0.0
    %3505 = vmatpush1.msra.mxu0 %v3451
    %3506 = vmatprep.subr.mxu0 0.0
    %3507 = vmatpush1.msra.mxu0 %v3453
    %3508 = vmatprep.subr.mxu0 0.0
    %3509 = vmatpush1.msra.mxu0 %v3455
    %3510 = vmatprep.subr.mxu0 0.0
    %3511 = vmatpush1.msra.mxu0 %v3457
    %3512 = vmatprep.subr.mxu0 0.0
    %3513 = vmatpush1.msra.mxu0 0.0
    %3514 = vmatprep.subr.mxu0 0.0
    %3515 = vmatpush1.msra.mxu0 0.0
    %3516 = vmatprep.subr.mxu0 0.0
    %3517 = vmatpush1.msra.mxu0 0.0
    %3518 = vmatprep.subr.mxu0 0.0
    %3519 = vmatpush1.msra.mxu0 0.0
    %3520 = vmatprep.subr.mxu0 0.0
    %3521 = vmatpush1.msra.mxu0 0.0
    %3522 = vmatprep.subr.mxu0 0.0
    %3523 = vmatpush1.msra.mxu0 0.0
    %3524 = vmatprep.subr.mxu0 0.0
    %3525 = vmatpush1.msra.mxu0 0.0
    %3526 = vmatprep.subr.mxu0 0.0
    %3527 = vmatpush1.msra.mxu0 0.0
    %3528 = vmatprep.subr.mxu0 0.0
    %3529 = vmatpush1.msra.mxu0 0.0
    %3530 = vmatprep.subr.mxu0 0.0
    %3531 = vmatpush1.msra.mxu0 0.0
    %3532 = vmatprep.subr.mxu0 0.0
    %3533 = vmatpush1.msra.mxu0 0.0
    %3534 = vmatprep.subr.mxu0 0.0
    %3535 = vmatpush1.msra.mxu0 0.0
    %3536 = vmatprep.subr.mxu0 0.0
    %3537 = vmatpush1.msra.mxu0 0.0
    %3538 = vmatprep.subr.mxu0 0.0
    %3539 = vmatpush1.msra.mxu0 0.0
    %3540 = vmatprep.subr.mxu0 0.0
    %3541 = vmatpush1.msra.mxu0 0.0
    %3542 = vmatprep.subr.mxu0 0.0
    %3543 = vmatpush1.msra.mxu0 0.0
    %3544 = vmatprep.subr.mxu0 0.0
    %3545 = vmatpush1.msra.mxu0 0.0
    %3546 = vmatprep.subr.mxu0 0.0
    %3547 = vmatpush1.msra.mxu0 0.0
    %3548 = vmatprep.subr.mxu0 0.0
    %3549 = vmatpush1.msra.mxu0 0.0
    %3550 = vmatprep.subr.mxu0 0.0
    %3551 = vmatpush1.msra.mxu0 0.0
    %3552 = vmatprep.subr.mxu0 0.0
    %3553 = vmatpush1.msra.mxu0 0.0
    %3554 = vmatprep.subr.mxu0 0.0
    %3555 = vmatpush1.msra.mxu0 0.0
    %3556 = vmatprep.subr.mxu0 0.0
    %3557 = vmatpush1.msra.mxu0 0.0
    %3558 = vmatprep.mubr.f32.mxu0 0.0
    %3559 = vmatmul.mubr.f32.gmra.mrb[0].mxu0 %v3468
    %v3560 = vpop.f32.mrb[0].mxu0
    %v3561 = vpop.f32.mrb[0].mxu0
    %3562 = vmatprep.mubr.f32.mxu0 0.0
    %3563 = vmatmul.mubr.f32.gmra.mrb[0].mxu0 %v3471
    %v3564 = vpop.f32.mrb[0].mxu0
    %v3565 = vpop.f32.mrb[0].mxu0
    %3566 = vmatprep.mubr.f32.mxu0 0.0
    %3567 = vmatmul.mubr.f32.gmra.mrb[0].mxu0 %v3474
    %v3568 = vpop.f32.mrb[0].mxu0
    %v3569 = vpop.f32.mrb[0].mxu0
    %3570 = vmatprep.mubr.f32.mxu0 0.0
    %3571 = vmatmul.mubr.f32.gmra.mrb[0].mxu0 %v3477
    %v3572 = vpop.f32.mrb[0].mxu0
    %v3573 = vpop.f32.mrb[0].mxu0
    %3574 = vmatprep.mubr.f32.mxu0 0.0
    %3575 = vmatmul.mubr.f32.gmra.mrb[0].mxu0 %v3480
    %v3576 = vpop.f32.mrb[0].mxu0
    %v3577 = vpop.f32.mrb[0].mxu0
    %3578 = vmatprep.mubr.f32.mxu0 0.0
    %3579 = vmatmul.mubr.f32.gmra.mrb[0].mxu0 %v3483
    %v3580 = vpop.f32.mrb[0].mxu0
    %v3581 = vpop.f32.mrb[0].mxu0
    %3582 = vmatprep.mubr.f32.mxu0 0.0
    %3583 = vmatmul.mubr.f32.gmra.mrb[0].mxu0 %v3486
    %v3584 = vpop.f32.mrb[0].mxu0
    %v3585 = vpop.f32.mrb[0].mxu0
    %3586 = vmatprep.mubr.f32.mxu0 0.0
    %3587 = vmatmul.mubr.f32.gmra.mrb[0].mxu0 %v3489
    %v3588 = vpop.f32.mrb[0].mxu0
    %v3589 = vpop.f32.mrb[0].mxu0
    %3590 = vmatprep.mubr.f32.mxu0 0.0
    %3591 = vmatmul.mubr.f32.gmra.mrb[0].mxu0 %v3492
    %v3592 = vpop.f32.mrb[0].mxu0
    %v3593 = vadd.f32 0.0, %v3592
    %v3594 = vpop.f32.mrb[0].mxu0
    %3595 = vdwg.mxu0
    %v3596 = vsel %vm308, %v3593, 0.0
    %3597 = vadd.xlane.f32.xlu0 %v3596
    %v3598 = vpop.xlane.xlu0 %3597
    %v3599 = vmul.f32 %v3598, %v1442
    %v3600 = vsub.f32 %v3593, %v3599
    %v3601 = vmul.f32 %v3600, %v3600
    %v3602 = vsel %vm308, %v3601, 0.0
    %3603 = vadd.xlane.f32.xlu0 %v3602
    %v3604 = vpop.xlane.xlu0 %3603
    %v3605 = vmul.f32 %v3604, %v1442
    %v3606 = vld [vmem:[%s11 + $0x2] sm:$0x1]
    %v3607 = vlaneseq
    %v3608 = vshrl.u32 %v3607, 7
    %v3609 = vsub.s32 0, %v3608
    %v3610 = vrot.slane %v3606, %v3609
    %v3611 = vmul.f32 %v3610, %v3600
    %v3612 = vadd.f32 %v3605, 1e-05
    %v3613 = vrsqrt.pop %v3612
    %v3614 = vmul.f32 %v3611, %v3613
    %v3615 = vld [vmem:[%s12 + $0x2] sm:$0x1]
    %v3616 = vlaneseq
    %v3617 = vshrl.u32 %v3616, 7
    %v3618 = vsub.s32 0, %v3617
    %v3619 = vrot.slane %v3615, %v3618
    %v3620 = vadd.f32 %v3614, %v3619
    %v3621 = vadd.f32 %v3002, %v3620
    %v3622 = vld [vmem:[%s13] sm:$0xff]
    %v3623 = vld [vmem:[%s13 + $0x8] sm:$0xff]
    %v3624 = vld [vmem:[%s13 + $0x10] sm:$0xff]
    %v3625 = vld [vmem:[%s13 + $0x18] sm:$0xff]
    %v3626 = vld [vmem:[%s14] sm:$0x1]
    %v3628 = vlaneseq
    %v3629 = vshrl.u32 %v3628, 7
    %v3630 = vsub.s32 0, %v3629
    %v3631 = vrot.slane %v3626, %v3630
    %v3634 = vsel %vm308, %v3621, 0
    %3636 = vmatprep.subr.mxu0 0.0
    %3637 = vmatpush1.msra.mxu0 %v3622
    %3638 = vmatprep.subr.mxu0 0.0
    %3639 = vmatpush1.msra.mxu0 %v3623
    %3640 = vmatprep.subr.mxu0 0.0
    %3641 = vmatpush1.msra.mxu0 %v3624
    %3642 = vmatprep.subr.mxu0 0.0
    %3643 = vmatpush1.msra.mxu0 %v3625
    %3644 = vmatprep.subr.mxu0 0.0
    %3645 = vmatpush1.msra.mxu0 0.0
    %3646 = vmatprep.subr.mxu0 0.0
    %3647 = vmatpush1.msra.mxu0 0.0
    %3648 = vmatprep.subr.mxu0 0.0
    %3649 = vmatpush1.msra.mxu0 0.0
    %3650 = vmatprep.subr.mxu0 0.0
    %3651 = vmatpush1.msra.mxu0 0.0
    %3652 = vmatprep.subr.mxu0 0.0
    %3653 = vmatpush1.msra.mxu0 0.0
    %3654 = vmatprep.subr.mxu0 0.0
    %3655 = vmatpush1.msra.mxu0 0.0
    %3656 = vmatprep.subr.mxu0 0.0
    %3657 = vmatpush1.msra.mxu0 0.0
    %3658 = vmatprep.subr.mxu0 0.0
    %3659 = vmatpush1.msra.mxu0 0.0
    %3660 = vmatprep.subr.mxu0 0.0
    %3661 = vmatpush1.msra.mxu0 0.0
    %3662 = vmatprep.subr.mxu0 0.0
    %3663 = vmatpush1.msra.mxu0 0.0
    %3664 = vmatprep.subr.mxu0 0.0
    %3665 = vmatpush1.msra.mxu0 0.0
    %3666 = vmatprep.subr.mxu0 0.0
    %3667 = vmatpush1.msra.mxu0 0.0
    %3668 = vmatprep.subr.mxu0 0.0
    %3669 = vmatpush1.msra.mxu0 0.0
    %3670 = vmatprep.subr.mxu0 0.0
    %3671 = vmatpush1.msra.mxu0 0.0
    %3672 = vmatprep.subr.mxu0 0.0
    %3673 = vmatpush1.msra.mxu0 0.0
    %3674 = vmatprep.subr.mxu0 0.0
    %3675 = vmatpush1.msra.mxu0 0.0
    %3676 = vmatprep.subr.mxu0 0.0
    %3677 = vmatpush1.msra.mxu0 0.0
    %3678 = vmatprep.subr.mxu0 0.0
    %3679 = vmatpush1.msra.mxu0 0.0
    %3680 = vmatprep.subr.mxu0 0.0
    %3681 = vmatpush1.msra.mxu0 0.0
    %3682 = vmatprep.subr.mxu0 0.0
    %3683 = vmatpush1.msra.mxu0 0.0
    %3684 = vmatprep.subr.mxu0 0.0
    %3685 = vmatpush1.msra.mxu0 0.0
    %3686 = vmatprep.subr.mxu0 0.0
    %3687 = vmatpush1.msra.mxu0 0.0
    %3688 = vmatprep.subr.mxu0 0.0
    %3689 = vmatpush1.msra.mxu0 0.0
    %3690 = vmatprep.subr.mxu0 0.0
    %3691 = vmatpush1.msra.mxu0 0.0
    %3692 = vmatprep.subr.mxu0 0.0
    %3693 = vmatpush1.msra.mxu0 0.0
    %3694 = vmatprep.subr.mxu0 0.0
    %3695 = vmatpush1.msra.mxu0 0.0
    %3696 = vmatprep.subr.mxu0 0.0
    %3697 = vmatpush1.msra.mxu0 0.0
    %3698 = vmatprep.subr.mxu0 0.0
    %3699 = vmatpush1.msra.mxu0 0.0
    %3700 = vmatprep.mubr.f32.mxu0 0.0
    %3701 = vmatmul.mubr.f32.gmra.mrb[0].mxu0 %v3634
    %v3702 = vpop.f32.mrb[0].mxu0
    %v3703 = vadd.f32 %v3631, %v3702
    %v3704 = vpop.f32.mrb[0].mxu0
    %3705 = vdwg.mxu0
    %vm3706 = vcmask 31744
    %3707 = vst.msk [vmem:[%s15] sm:$0xff] %vm3706, %v3703
    // Predicated region
    $region86: #{tpu_custom_call.1} parent=1 // pred_check
      _
    $region87: #{tpu_custom_call.1} parent=1 // pred_check_branch
      %3709 = sbr.rel (0) target = $region89
    $region88: #{tpu_custom_call.1} parent=1 // pred_region
      _
    $region89: #{tpu_custom_call.1} parent=1 // pred_fallthru
      _
    // Predicated region
    $region90: #{tpu_custom_call.1} parent=1 // pred_check
      _
    $region91: #{tpu_custom_call.1} parent=1 // pred_check_branch
      %3711 = sbr.rel (0) target = $region93
    $region92: #{tpu_custom_call.1} parent=1 // pred_region
      _
    $region93: #{tpu_custom_call.1} parent=1 // pred_fallthru
      _
    %3712 = vsyncpa [#allocation4], 1
    %3713 = vsyncpa [#allocation6], 1
    %3714 = vsyncpa [#allocation9], 1
    %3715 = vsyncpa [#allocation12], 1

</llo_original>
